<compile_context>
chip_gen: v7x
topology: tpu7x:2x2x1
jax: 0.10.0
libtpu: 0.0.40
codegen_flags: <defaults>
</compile_context>

<pallas_src>
import functools

import jax
import jax.numpy as jnp
from jax.experimental import pallas as pl
from jax.experimental.pallas import tpu as pltpu

# ---------------- small synthetic config (consistent with the module) ----------------
VOCAB = 256
HIDDEN = 32
N_HEADS = 4
N_KV_HEADS = 2
HEAD_DIM = HIDDEN // N_HEADS
INTER = 64
N_LAYERS = 2
RMS_EPS = 1e-6
ROPE_THETA = 10000.0
CHUNK_SIZE = 512  # >= seq_len, so the "hybrid" attention degenerates to causal attention

VMEM = pl.BlockSpec(memory_space=pltpu.MemorySpace.VMEM)
_NEG_INF = -1e30


# ---------------------------------- fused kernel --------------------------------------
def _fused_decoder_kernel(ids_ref, cos_ref, sin_ref, bias_ref, embed_ref,
                          final_ln_ref, lm_head_ref, *refs):
    """Whole forward in a single VMEM-resident invocation (no grid).

    refs = 6 refs per layer (ln1, wqkv, wo, ln2, wgu, wd) followed by the output ref.
    """
    out_ref = refs[-1]
    layer_refs = refs[:-1]
    n_layers = len(layer_refs) // 6

    bs = ids_ref.shape[0]                      # batch * seq rows
    scale = 1.0 / (HEAD_DIM ** 0.5)
    half = HEAD_DIM // 2
    q_sz = N_HEADS * HEAD_DIM
    kv_sz = N_KV_HEADS * HEAD_DIM
    group = N_HEADS // N_KV_HEADS

    # ---- token embedding: one-hot @ table keeps the "gather" on the MXU, in-kernel ----
    ids = ids_ref[...]                                                   # [BS, 1] int32
    vocab_iota = jax.lax.broadcasted_iota(jnp.int32, (bs, VOCAB), 1)
    one_hot = (vocab_iota == ids).astype(jnp.float32)                    # [BS, VOCAB]
    h = jnp.dot(one_hot, embed_ref[...], preferred_element_type=jnp.float32)  # [BS, H]

    cos = cos_ref[...]                                                   # [BS, D]
    sin = sin_ref[...]
    bias = bias_ref[...]                                                 # [BS, BS] additive

    def rms(x, w):
        var = jnp.mean(x * x, axis=-1, keepdims=True)
        return x * jax.lax.rsqrt(var + RMS_EPS) * w

    def rope(x):                                                         # x: [BS, D]
        rot = jnp.concatenate([-x[:, half:], x[:, :half]], axis=-1)
        return x * cos + rot * sin

    for l in range(n_layers):
        ln1, wqkv, wo, ln2, wgu, wd = layer_refs[6 * l: 6 * l + 6]

        # ---------------- attention block ----------------
        residual = h
        xn = rms(h, ln1[...])
        # fused Q|K|V projection: one MXU launch, [BS, 64]
        qkv = jnp.dot(xn, wqkv[...], preferred_element_type=jnp.float32)

        # GQA without repeat_kv: index the KV head slice directly.
        k_heads = [rope(qkv[:, q_sz + i * HEAD_DIM: q_sz + (i + 1) * HEAD_DIM])
                   for i in range(N_KV_HEADS)]
        v_heads = [qkv[:, q_sz + kv_sz + i * HEAD_DIM: q_sz + kv_sz + (i + 1) * HEAD_DIM]
                   for i in range(N_KV_HEADS)]

        heads = []
        for hq in range(N_HEADS):
            qh = rope(qkv[:, hq * HEAD_DIM:(hq + 1) * HEAD_DIM])          # [BS, D]
            kh = k_heads[hq // group]
            vh = v_heads[hq // group]
            # All batches at once; the block-diagonal causal bias keeps attention
            # inside each batch's own causal window (equivalent to per-batch causal).
            s = jax.lax.dot_general(qh, kh, (((1,), (1,)), ((), ())),
                                    preferred_element_type=jnp.float32) * scale + bias
            m = jnp.max(s, axis=-1, keepdims=True)
            p = jnp.exp(s - m)
            p = p * pl.reciprocal(jnp.sum(p, axis=-1, keepdims=True), approx=True)
            heads.append(jnp.dot(p, vh, preferred_element_type=jnp.float32))
        attn = jnp.concatenate(heads, axis=-1)                            # [BS, H*D]
        h = residual + jnp.dot(attn, wo[...], preferred_element_type=jnp.float32)

        # ---------------- SwiGLU MLP block ----------------
        residual = h
        xn = rms(h, ln2[...])
        # fused gate|up projection: [BS, 2*INTER] = 128 lanes (dense vregs)
        gu = jnp.dot(xn, wgu[...], preferred_element_type=jnp.float32)
        g = gu[:, :INTER]
        u = gu[:, INTER:]
        act = g * jax.nn.sigmoid(g) * u
        h = residual + jnp.dot(act, wd[...], preferred_element_type=jnp.float32)

    xn = rms(h, final_ln_ref[...])
    # lane-dense [BS, VOCAB=256] f32 store
    out_ref[...] = jnp.dot(xn, lm_head_ref[...], preferred_element_type=jnp.float32)


# ------------------------------ RoPE tables (glue) --------------------------------------
def rope_cos_sin(seq_len, dim):
    inv_freq = 1.0 / (ROPE_THETA ** (jnp.arange(0, dim, 2, dtype=jnp.float32) / dim))
    pos = jnp.arange(seq_len, dtype=jnp.float32)
    freqs = jnp.outer(pos, inv_freq)
    emb = jnp.concatenate([freqs, freqs], axis=-1)
    return jnp.cos(emb), jnp.sin(emb)


# ------------------------------ param fusion (once) --------------------------------------
def fuse_params(params):
    """Concatenate wq/wk/wv -> wqkv and wg/wu -> wgu once, up-front."""
    fused = {
        "embed": params["embed"],
        "final_ln": params["final_ln"].reshape(1, -1),
        "lm_head": params["lm_head"],
        "layers": [],
    }
    for lp in params["layers"]:
        fused["layers"].append({
            "ln1": lp["input_ln"].reshape(1, -1),
            "wqkv": jnp.concatenate([lp["wq"], lp["wk"], lp["wv"]], axis=1),   # [H, 64]
            "wo": lp["wo"],                                                    # [H, H]
            "ln2": lp["post_ln"].reshape(1, -1),
            "wgu": jnp.concatenate([lp["wg"], lp["wu"]], axis=1),              # [H, 128]
            "wd": lp["wd"],                                                    # [INTER, H]
        })
    return fused


# ---------------------------------- forward ----------------------------------------------
@jax.jit
def decoder_forward(fused, input_ids, labels=None):
    # == model_forward / model_model_forward (prefill=False, generation=False,
    #    kv_caches=None) ==
    B, S = input_ids.shape
    bs = B * S

    # RoPE tables computed ONCE, tiled over batch, shared by all layers.
    cos, sin = rope_cos_sin(S, HEAD_DIM)
    cos_bs = jnp.tile(cos, (B, 1)).astype(jnp.float32)
    sin_bs = jnp.tile(sin, (B, 1)).astype(jnp.float32)

    # Block-diagonal causal additive bias over flattened (batch*seq) rows.
    pos = jnp.arange(bs, dtype=jnp.int32)
    same_batch = (pos[:, None] // S) == (pos[None, :] // S)
    causal = pos[:, None] >= pos[None, :]
    bias = jnp.where(same_batch & causal, 0.0, _NEG_INF).astype(jnp.float32)

    ids2 = input_ids.reshape(bs, 1).astype(jnp.int32)

    flat = [ids2, cos_bs, sin_bs, bias,
            fused["embed"], fused["final_ln"], fused["lm_head"]]
    for lp in fused["layers"]:
        flat += [lp["ln1"], lp["wqkv"], lp["wo"], lp["ln2"], lp["wgu"], lp["wd"]]

    # TODO(synk): `do_hybird_attn` (chunked hybrid attention) is not defined in the
    # reference source; with chunk_size >= seq_len it reduces to standard causal
    # attention, which is what the kernel computes.
    logits = pl.pallas_call(
        _fused_decoder_kernel,
        out_shape=jax.ShapeDtypeStruct((bs, VOCAB), jnp.float32),
        in_specs=[VMEM] * len(flat),
        out_specs=VMEM,
    )(*flat)
    logits = logits.reshape(B, S, VOCAB)

    loss = None
    if labels is not None:
        shift_logits = logits[:, :-1, :].reshape(-1, VOCAB)
        shift_labels = labels[:, 1:].reshape(-1)
        logp = jax.nn.log_softmax(shift_logits, axis=-1)
        nll = -jnp.take_along_axis(logp, shift_labels[:, None], axis=-1)[:, 0]
        loss = jnp.mean(nll)
    return logits, loss


# ------------------------------- deterministic params ----------------------------------
def init_params(key):
    def w(key, shape, scale=0.05):
        return scale * jax.random.normal(key, shape, dtype=jnp.float32)

    keys = jax.random.split(key, 2 + 8 * N_LAYERS)
    ki = iter(keys)
    params = {
        "embed": w(next(ki), (VOCAB, HIDDEN)),
        "final_ln": jnp.ones((HIDDEN,), jnp.float32),
        "lm_head": w(next(ki), (HIDDEN, VOCAB)),
        "layers": [],
    }
    for _ in range(N_LAYERS):
        params["layers"].append(
            {
                "input_ln": jnp.ones((HIDDEN,), jnp.float32),
                "post_ln": jnp.ones((HIDDEN,), jnp.float32),
                "wq": w(next(ki), (HIDDEN, N_HEADS * HEAD_DIM)),
                "wk": w(next(ki), (HIDDEN, N_KV_HEADS * HEAD_DIM)),
                "wv": w(next(ki), (HIDDEN, N_KV_HEADS * HEAD_DIM)),
                "wo": w(next(ki), (N_HEADS * HEAD_DIM, HIDDEN)),
                "wg": w(next(ki), (HIDDEN, INTER)),
                "wu": w(next(ki), (HIDDEN, INTER)),
                "wd": w(next(ki), (INTER, HIDDEN)),
            }
        )
    return params


# ---------------------------------------- main ------------------------------------------
if __name__ == "__main__":
    B, S = 2, 8
    params = init_params(jax.random.PRNGKey(0))
    fused = fuse_params(params)
    input_ids = jax.random.randint(jax.random.PRNGKey(1), (B, S), 0, VOCAB)
    labels = jax.random.randint(jax.random.PRNGKey(2), (B, S), 0, VOCAB)

    logits, loss = decoder_forward(fused, input_ids, labels)
    jax.block_until_ready(logits)
    jax.block_until_ready(loss)

    assert logits.shape == (B, S, VOCAB) and logits.dtype == jnp.float32
    assert bool(jnp.isfinite(loss)) and bool(jnp.all(jnp.isfinite(logits)))
    print("KERNEL_OK")
</pallas_src>

<mosaic_0001>
module attributes {stable_mosaic.version = 11 : i64} {
  func.func @_fused_decoder_kernel(%arg0: memref<16x1xi32, #tpu.memory_space<vmem>>, %arg1: memref<16x8xf32, #tpu.memory_space<vmem>>, %arg2: memref<16x8xf32, #tpu.memory_space<vmem>>, %arg3: memref<16x16xf32, #tpu.memory_space<vmem>>, %arg4: memref<256x32xf32, #tpu.memory_space<vmem>>, %arg5: memref<1x32xf32, #tpu.memory_space<vmem>>, %arg6: memref<32x256xf32, #tpu.memory_space<vmem>>, %arg7: memref<1x32xf32, #tpu.memory_space<vmem>>, %arg8: memref<32x64xf32, #tpu.memory_space<vmem>>, %arg9: memref<32x32xf32, #tpu.memory_space<vmem>>, %arg10: memref<1x32xf32, #tpu.memory_space<vmem>>, %arg11: memref<32x128xf32, #tpu.memory_space<vmem>>, %arg12: memref<64x32xf32, #tpu.memory_space<vmem>>, %arg13: memref<1x32xf32, #tpu.memory_space<vmem>>, %arg14: memref<32x64xf32, #tpu.memory_space<vmem>>, %arg15: memref<32x32xf32, #tpu.memory_space<vmem>>, %arg16: memref<1x32xf32, #tpu.memory_space<vmem>>, %arg17: memref<32x128xf32, #tpu.memory_space<vmem>>, %arg18: memref<64x32xf32, #tpu.memory_space<vmem>>, %arg19: memref<16x256xf32, #tpu.memory_space<vmem>>) attributes {dimension_semantics = [], scalar_prefetch = 0 : i64, scratch_operands = 0 : i64, tpu.core_type = #tpu.core_type<tc>} {
    %c0 = arith.constant 0 : index
    %c0_0 = arith.constant 0 : index
    %0 = vector.load %arg0[%c0, %c0_0] : memref<16x1xi32, #tpu.memory_space<vmem>>, vector<16x1xi32>
    %1 = tpu.iota {dimensions = array<i32: 1>} : vector<16x256xi32>
    %2 = vector.broadcast %0 : vector<16x1xi32> to vector<16x256xi32>
    %3 = arith.cmpi eq, %1, %2 : vector<16x256xi32>
    %4 = arith.extui %3 : vector<16x256xi1> to vector<16x256xi32>
    %5 = arith.sitofp %4 : vector<16x256xi32> to vector<16x256xf32>
    %c0_1 = arith.constant 0 : index
    %c0_2 = arith.constant 0 : index
    %6 = vector.load %arg4[%c0_1, %c0_2] : memref<256x32xf32, #tpu.memory_space<vmem>>, vector<256x32xf32>
    %cst = arith.constant dense<0.000000e+00> : vector<16x32xf32>
    %7 = tpu.matmul %5, %6, %cst {dimension_numbers = #tpu.dot_dimension_numbers<[1], [0], [0], [1], [0, 0, 1, 1], [], []>} : vector<16x256xf32>, vector<256x32xf32>, vector<16x32xf32> -> vector<16x32xf32>
    %c0_3 = arith.constant 0 : index
    %c0_4 = arith.constant 0 : index
    %8 = vector.load %arg1[%c0_3, %c0_4] : memref<16x8xf32, #tpu.memory_space<vmem>>, vector<16x8xf32>
    %c0_5 = arith.constant 0 : index
    %c0_6 = arith.constant 0 : index
    %9 = vector.load %arg2[%c0_5, %c0_6] : memref<16x8xf32, #tpu.memory_space<vmem>>, vector<16x8xf32>
    %c0_7 = arith.constant 0 : index
    %c0_8 = arith.constant 0 : index
    %10 = vector.load %arg3[%c0_7, %c0_8] : memref<16x16xf32, #tpu.memory_space<vmem>>, vector<16x16xf32>
    %c0_9 = arith.constant 0 : index
    %c0_10 = arith.constant 0 : index
    %11 = vector.load %arg7[%c0_9, %c0_10] : memref<1x32xf32, #tpu.memory_space<vmem>>, vector<1x32xf32>
    %12 = arith.mulf %7, %7 : vector<16x32xf32>
    %cst_11 = arith.constant dense<0.000000e+00> : vector<16xf32>
    %13 = vector.multi_reduction <add>, %12, %cst_11 [1] : vector<16x32xf32> to vector<16xf32>
    %14 = vector.shape_cast %13 : vector<16xf32> to vector<16x1xf32>
    %cst_12 = arith.constant 3.200000e+01 : f32
    %15 = vector.broadcast %cst_12 : f32 to vector<16x1xf32>
    %16 = arith.divf %14, %15 : vector<16x1xf32>
    %cst_13 = arith.constant 9.99999997E-7 : f32
    %17 = vector.broadcast %cst_13 : f32 to vector<16x1xf32>
    %18 = arith.addf %16, %17 : vector<16x1xf32>
    %19 = math.rsqrt %18 : vector<16x1xf32>
    %20 = vector.broadcast %19 : vector<16x1xf32> to vector<16x32xf32>
    %21 = arith.mulf %7, %20 : vector<16x32xf32>
    %22 = vector.broadcast %11 : vector<1x32xf32> to vector<16x32xf32>
    %23 = arith.mulf %21, %22 : vector<16x32xf32>
    %c0_14 = arith.constant 0 : index
    %c0_15 = arith.constant 0 : index
    %24 = vector.load %arg8[%c0_14, %c0_15] : memref<32x64xf32, #tpu.memory_space<vmem>>, vector<32x64xf32>
    %cst_16 = arith.constant dense<0.000000e+00> : vector<16x64xf32>
    %25 = tpu.matmul %23, %24, %cst_16 {dimension_numbers = #tpu.dot_dimension_numbers<[1], [0], [0], [1], [0, 0, 1, 1], [], []>} : vector<16x32xf32>, vector<32x64xf32>, vector<16x64xf32> -> vector<16x64xf32>
    %26 = vector.extract_strided_slice %25 {offsets = [0, 32], sizes = [16, 8], strides = [1, 1]} : vector<16x64xf32> to vector<16x8xf32>
    %27 = vector.extract_strided_slice %26 {offsets = [0, 4], sizes = [16, 4], strides = [1, 1]} : vector<16x8xf32> to vector<16x4xf32>
    %cst_17 = arith.constant 0.000000e+00 : f32
    %28 = vector.broadcast %cst_17 : f32 to vector<16x4xf32>
    %29 = arith.subf %28, %27 : vector<16x4xf32>
    %30 = vector.extract_strided_slice %26 {offsets = [0, 0], sizes = [16, 4], strides = [1, 1]} : vector<16x8xf32> to vector<16x4xf32>
    %31 = tpu.concatenate %29, %30 in 1 : vector<16x4xf32>, vector<16x4xf32> -> vector<16x8xf32>
    %32 = arith.mulf %26, %8 : vector<16x8xf32>
    %33 = arith.mulf %31, %9 : vector<16x8xf32>
    %34 = arith.addf %32, %33 : vector<16x8xf32>
    %35 = vector.extract_strided_slice %25 {offsets = [0, 40], sizes = [16, 8], strides = [1, 1]} : vector<16x64xf32> to vector<16x8xf32>
    %36 = vector.extract_strided_slice %35 {offsets = [0, 4], sizes = [16, 4], strides = [1, 1]} : vector<16x8xf32> to vector<16x4xf32>
    %cst_18 = arith.constant 0.000000e+00 : f32
    %37 = vector.broadcast %cst_18 : f32 to vector<16x4xf32>
    %38 = arith.subf %37, %36 : vector<16x4xf32>
    %39 = vector.extract_strided_slice %35 {offsets = [0, 0], sizes = [16, 4], strides = [1, 1]} : vector<16x8xf32> to vector<16x4xf32>
    %40 = tpu.concatenate %38, %39 in 1 : vector<16x4xf32>, vector<16x4xf32> -> vector<16x8xf32>
    %41 = arith.mulf %35, %8 : vector<16x8xf32>
    %42 = arith.mulf %40, %9 : vector<16x8xf32>
    %43 = arith.addf %41, %42 : vector<16x8xf32>
    %44 = vector.extract_strided_slice %25 {offsets = [0, 48], sizes = [16, 8], strides = [1, 1]} : vector<16x64xf32> to vector<16x8xf32>
    %45 = vector.extract_strided_slice %25 {offsets = [0, 56], sizes = [16, 8], strides = [1, 1]} : vector<16x64xf32> to vector<16x8xf32>
    %46 = vector.extract_strided_slice %25 {offsets = [0, 0], sizes = [16, 8], strides = [1, 1]} : vector<16x64xf32> to vector<16x8xf32>
    %47 = vector.extract_strided_slice %46 {offsets = [0, 4], sizes = [16, 4], strides = [1, 1]} : vector<16x8xf32> to vector<16x4xf32>
    %cst_19 = arith.constant 0.000000e+00 : f32
    %48 = vector.broadcast %cst_19 : f32 to vector<16x4xf32>
    %49 = arith.subf %48, %47 : vector<16x4xf32>
    %50 = vector.extract_strided_slice %46 {offsets = [0, 0], sizes = [16, 4], strides = [1, 1]} : vector<16x8xf32> to vector<16x4xf32>
    %51 = tpu.concatenate %49, %50 in 1 : vector<16x4xf32>, vector<16x4xf32> -> vector<16x8xf32>
    %52 = arith.mulf %46, %8 : vector<16x8xf32>
    %53 = arith.mulf %51, %9 : vector<16x8xf32>
    %54 = arith.addf %52, %53 : vector<16x8xf32>
    %cst_20 = arith.constant dense<0.000000e+00> : vector<16x16xf32>
    %55 = tpu.matmul %54, %34, %cst_20 {dimension_numbers = #tpu.dot_dimension_numbers<[1], [1], [0], [0], [0, 0, 1, 0], [], []>} : vector<16x8xf32>, vector<16x8xf32>, vector<16x16xf32> -> vector<16x16xf32>
    %cst_21 = arith.constant 0.353553385 : f32
    %56 = vector.broadcast %cst_21 : f32 to vector<16x16xf32>
    %57 = arith.mulf %55, %56 : vector<16x16xf32>
    %58 = arith.addf %57, %10 : vector<16x16xf32>
    %cst_22 = arith.constant dense<0xFF800000> : vector<16xf32>
    %59 = vector.multi_reduction <maximumf>, %58, %cst_22 [1] : vector<16x16xf32> to vector<16xf32>
    %60 = vector.shape_cast %59 : vector<16xf32> to vector<16x1xf32>
    %61 = vector.broadcast %60 : vector<16x1xf32> to vector<16x16xf32>
    %62 = arith.subf %58, %61 : vector<16x16xf32>
    %63 = math.exp %62 : vector<16x16xf32>
    %cst_23 = arith.constant dense<0.000000e+00> : vector<16xf32>
    %64 = vector.multi_reduction <add>, %63, %cst_23 [1] : vector<16x16xf32> to vector<16xf32>
    %65 = vector.shape_cast %64 : vector<16xf32> to vector<16x1xf32>
    %66 = tpu.reciprocal %65 {approx = true} : vector<16x1xf32> -> vector<16x1xf32>
    %67 = vector.broadcast %66 : vector<16x1xf32> to vector<16x16xf32>
    %68 = arith.mulf %63, %67 : vector<16x16xf32>
    %cst_24 = arith.constant dense<0.000000e+00> : vector<16x8xf32>
    %69 = tpu.matmul %68, %44, %cst_24 {dimension_numbers = #tpu.dot_dimension_numbers<[1], [0], [0], [1], [0, 0, 1, 1], [], []>} : vector<16x16xf32>, vector<16x8xf32>, vector<16x8xf32> -> vector<16x8xf32>
    %70 = vector.extract_strided_slice %25 {offsets = [0, 8], sizes = [16, 8], strides = [1, 1]} : vector<16x64xf32> to vector<16x8xf32>
    %71 = vector.extract_strided_slice %70 {offsets = [0, 4], sizes = [16, 4], strides = [1, 1]} : vector<16x8xf32> to vector<16x4xf32>
    %cst_25 = arith.constant 0.000000e+00 : f32
    %72 = vector.broadcast %cst_25 : f32 to vector<16x4xf32>
    %73 = arith.subf %72, %71 : vector<16x4xf32>
    %74 = vector.extract_strided_slice %70 {offsets = [0, 0], sizes = [16, 4], strides = [1, 1]} : vector<16x8xf32> to vector<16x4xf32>
    %75 = tpu.concatenate %73, %74 in 1 : vector<16x4xf32>, vector<16x4xf32> -> vector<16x8xf32>
    %76 = arith.mulf %70, %8 : vector<16x8xf32>
    %77 = arith.mulf %75, %9 : vector<16x8xf32>
    %78 = arith.addf %76, %77 : vector<16x8xf32>
    %cst_26 = arith.constant dense<0.000000e+00> : vector<16x16xf32>
    %79 = tpu.matmul %78, %34, %cst_26 {dimension_numbers = #tpu.dot_dimension_numbers<[1], [1], [0], [0], [0, 0, 1, 0], [], []>} : vector<16x8xf32>, vector<16x8xf32>, vector<16x16xf32> -> vector<16x16xf32>
    %cst_27 = arith.constant 0.353553385 : f32
    %80 = vector.broadcast %cst_27 : f32 to vector<16x16xf32>
    %81 = arith.mulf %79, %80 : vector<16x16xf32>
    %82 = arith.addf %81, %10 : vector<16x16xf32>
    %cst_28 = arith.constant dense<0xFF800000> : vector<16xf32>
    %83 = vector.multi_reduction <maximumf>, %82, %cst_28 [1] : vector<16x16xf32> to vector<16xf32>
    %84 = vector.shape_cast %83 : vector<16xf32> to vector<16x1xf32>
    %85 = vector.broadcast %84 : vector<16x1xf32> to vector<16x16xf32>
    %86 = arith.subf %82, %85 : vector<16x16xf32>
    %87 = math.exp %86 : vector<16x16xf32>
    %cst_29 = arith.constant dense<0.000000e+00> : vector<16xf32>
    %88 = vector.multi_reduction <add>, %87, %cst_29 [1] : vector<16x16xf32> to vector<16xf32>
    %89 = vector.shape_cast %88 : vector<16xf32> to vector<16x1xf32>
    %90 = tpu.reciprocal %89 {approx = true} : vector<16x1xf32> -> vector<16x1xf32>
    %91 = vector.broadcast %90 : vector<16x1xf32> to vector<16x16xf32>
    %92 = arith.mulf %87, %91 : vector<16x16xf32>
    %cst_30 = arith.constant dense<0.000000e+00> : vector<16x8xf32>
    %93 = tpu.matmul %92, %44, %cst_30 {dimension_numbers = #tpu.dot_dimension_numbers<[1], [0], [0], [1], [0, 0, 1, 1], [], []>} : vector<16x16xf32>, vector<16x8xf32>, vector<16x8xf32> -> vector<16x8xf32>
    %94 = vector.extract_strided_slice %25 {offsets = [0, 16], sizes = [16, 8], strides = [1, 1]} : vector<16x64xf32> to vector<16x8xf32>
    %95 = vector.extract_strided_slice %94 {offsets = [0, 4], sizes = [16, 4], strides = [1, 1]} : vector<16x8xf32> to vector<16x4xf32>
    %cst_31 = arith.constant 0.000000e+00 : f32
    %96 = vector.broadcast %cst_31 : f32 to vector<16x4xf32>
    %97 = arith.subf %96, %95 : vector<16x4xf32>
    %98 = vector.extract_strided_slice %94 {offsets = [0, 0], sizes = [16, 4], strides = [1, 1]} : vector<16x8xf32> to vector<16x4xf32>
    %99 = tpu.concatenate %97, %98 in 1 : vector<16x4xf32>, vector<16x4xf32> -> vector<16x8xf32>
    %100 = arith.mulf %94, %8 : vector<16x8xf32>
    %101 = arith.mulf %99, %9 : vector<16x8xf32>
    %102 = arith.addf %100, %101 : vector<16x8xf32>
    %cst_32 = arith.constant dense<0.000000e+00> : vector<16x16xf32>
    %103 = tpu.matmul %102, %43, %cst_32 {dimension_numbers = #tpu.dot_dimension_numbers<[1], [1], [0], [0], [0, 0, 1, 0], [], []>} : vector<16x8xf32>, vector<16x8xf32>, vector<16x16xf32> -> vector<16x16xf32>
    %cst_33 = arith.constant 0.353553385 : f32
    %104 = vector.broadcast %cst_33 : f32 to vector<16x16xf32>
    %105 = arith.mulf %103, %104 : vector<16x16xf32>
    %106 = arith.addf %105, %10 : vector<16x16xf32>
    %cst_34 = arith.constant dense<0xFF800000> : vector<16xf32>
    %107 = vector.multi_reduction <maximumf>, %106, %cst_34 [1] : vector<16x16xf32> to vector<16xf32>
    %108 = vector.shape_cast %107 : vector<16xf32> to vector<16x1xf32>
    %109 = vector.broadcast %108 : vector<16x1xf32> to vector<16x16xf32>
    %110 = arith.subf %106, %109 : vector<16x16xf32>
    %111 = math.exp %110 : vector<16x16xf32>
    %cst_35 = arith.constant dense<0.000000e+00> : vector<16xf32>
    %112 = vector.multi_reduction <add>, %111, %cst_35 [1] : vector<16x16xf32> to vector<16xf32>
    %113 = vector.shape_cast %112 : vector<16xf32> to vector<16x1xf32>
    %114 = tpu.reciprocal %113 {approx = true} : vector<16x1xf32> -> vector<16x1xf32>
    %115 = vector.broadcast %114 : vector<16x1xf32> to vector<16x16xf32>
    %116 = arith.mulf %111, %115 : vector<16x16xf32>
    %cst_36 = arith.constant dense<0.000000e+00> : vector<16x8xf32>
    %117 = tpu.matmul %116, %45, %cst_36 {dimension_numbers = #tpu.dot_dimension_numbers<[1], [0], [0], [1], [0, 0, 1, 1], [], []>} : vector<16x16xf32>, vector<16x8xf32>, vector<16x8xf32> -> vector<16x8xf32>
    %118 = vector.extract_strided_slice %25 {offsets = [0, 24], sizes = [16, 8], strides = [1, 1]} : vector<16x64xf32> to vector<16x8xf32>
    %119 = vector.extract_strided_slice %118 {offsets = [0, 4], sizes = [16, 4], strides = [1, 1]} : vector<16x8xf32> to vector<16x4xf32>
    %cst_37 = arith.constant 0.000000e+00 : f32
    %120 = vector.broadcast %cst_37 : f32 to vector<16x4xf32>
    %121 = arith.subf %120, %119 : vector<16x4xf32>
    %122 = vector.extract_strided_slice %118 {offsets = [0, 0], sizes = [16, 4], strides = [1, 1]} : vector<16x8xf32> to vector<16x4xf32>
    %123 = tpu.concatenate %121, %122 in 1 : vector<16x4xf32>, vector<16x4xf32> -> vector<16x8xf32>
    %124 = arith.mulf %118, %8 : vector<16x8xf32>
    %125 = arith.mulf %123, %9 : vector<16x8xf32>
    %126 = arith.addf %124, %125 : vector<16x8xf32>
    %cst_38 = arith.constant dense<0.000000e+00> : vector<16x16xf32>
    %127 = tpu.matmul %126, %43, %cst_38 {dimension_numbers = #tpu.dot_dimension_numbers<[1], [1], [0], [0], [0, 0, 1, 0], [], []>} : vector<16x8xf32>, vector<16x8xf32>, vector<16x16xf32> -> vector<16x16xf32>
    %cst_39 = arith.constant 0.353553385 : f32
    %128 = vector.broadcast %cst_39 : f32 to vector<16x16xf32>
    %129 = arith.mulf %127, %128 : vector<16x16xf32>
    %130 = arith.addf %129, %10 : vector<16x16xf32>
    %cst_40 = arith.constant dense<0xFF800000> : vector<16xf32>
    %131 = vector.multi_reduction <maximumf>, %130, %cst_40 [1] : vector<16x16xf32> to vector<16xf32>
    %132 = vector.shape_cast %131 : vector<16xf32> to vector<16x1xf32>
    %133 = vector.broadcast %132 : vector<16x1xf32> to vector<16x16xf32>
    %134 = arith.subf %130, %133 : vector<16x16xf32>
    %135 = math.exp %134 : vector<16x16xf32>
    %cst_41 = arith.constant dense<0.000000e+00> : vector<16xf32>
    %136 = vector.multi_reduction <add>, %135, %cst_41 [1] : vector<16x16xf32> to vector<16xf32>
    %137 = vector.shape_cast %136 : vector<16xf32> to vector<16x1xf32>
    %138 = tpu.reciprocal %137 {approx = true} : vector<16x1xf32> -> vector<16x1xf32>
    %139 = vector.broadcast %138 : vector<16x1xf32> to vector<16x16xf32>
    %140 = arith.mulf %135, %139 : vector<16x16xf32>
    %cst_42 = arith.constant dense<0.000000e+00> : vector<16x8xf32>
    %141 = tpu.matmul %140, %45, %cst_42 {dimension_numbers = #tpu.dot_dimension_numbers<[1], [0], [0], [1], [0, 0, 1, 1], [], []>} : vector<16x16xf32>, vector<16x8xf32>, vector<16x8xf32> -> vector<16x8xf32>
    %142 = tpu.concatenate %69, %93, %117, %141 in 1 : vector<16x8xf32>, vector<16x8xf32>, vector<16x8xf32>, vector<16x8xf32> -> vector<16x32xf32>
    %c0_43 = arith.constant 0 : index
    %c0_44 = arith.constant 0 : index
    %143 = vector.load %arg9[%c0_43, %c0_44] : memref<32x32xf32, #tpu.memory_space<vmem>>, vector<32x32xf32>
    %cst_45 = arith.constant dense<0.000000e+00> : vector<16x32xf32>
    %144 = tpu.matmul %142, %143, %cst_45 {dimension_numbers = #tpu.dot_dimension_numbers<[1], [0], [0], [1], [0, 0, 1, 1], [], []>} : vector<16x32xf32>, vector<32x32xf32>, vector<16x32xf32> -> vector<16x32xf32>
    %145 = arith.addf %7, %144 : vector<16x32xf32>
    %c0_46 = arith.constant 0 : index
    %c0_47 = arith.constant 0 : index
    %146 = vector.load %arg10[%c0_46, %c0_47] : memref<1x32xf32, #tpu.memory_space<vmem>>, vector<1x32xf32>
    %147 = arith.mulf %145, %145 : vector<16x32xf32>
    %cst_48 = arith.constant dense<0.000000e+00> : vector<16xf32>
    %148 = vector.multi_reduction <add>, %147, %cst_48 [1] : vector<16x32xf32> to vector<16xf32>
    %149 = vector.shape_cast %148 : vector<16xf32> to vector<16x1xf32>
    %cst_49 = arith.constant 3.200000e+01 : f32
    %150 = vector.broadcast %cst_49 : f32 to vector<16x1xf32>
    %151 = arith.divf %149, %150 : vector<16x1xf32>
    %cst_50 = arith.constant 9.99999997E-7 : f32
    %152 = vector.broadcast %cst_50 : f32 to vector<16x1xf32>
    %153 = arith.addf %151, %152 : vector<16x1xf32>
    %154 = math.rsqrt %153 : vector<16x1xf32>
    %155 = vector.broadcast %154 : vector<16x1xf32> to vector<16x32xf32>
    %156 = arith.mulf %145, %155 : vector<16x32xf32>
    %157 = vector.broadcast %146 : vector<1x32xf32> to vector<16x32xf32>
    %158 = arith.mulf %156, %157 : vector<16x32xf32>
    %c0_51 = arith.constant 0 : index
    %c0_52 = arith.constant 0 : index
    %159 = vector.load %arg11[%c0_51, %c0_52] : memref<32x128xf32, #tpu.memory_space<vmem>>, vector<32x128xf32>
    %cst_53 = arith.constant dense<0.000000e+00> : vector<16x128xf32>
    %160 = tpu.matmul %158, %159, %cst_53 {dimension_numbers = #tpu.dot_dimension_numbers<[1], [0], [0], [1], [0, 0, 1, 1], [], []>} : vector<16x32xf32>, vector<32x128xf32>, vector<16x128xf32> -> vector<16x128xf32>
    %161 = vector.extract_strided_slice %160 {offsets = [0, 0], sizes = [16, 64], strides = [1, 1]} : vector<16x128xf32> to vector<16x64xf32>
    %162 = vector.extract_strided_slice %160 {offsets = [0, 64], sizes = [16, 64], strides = [1, 1]} : vector<16x128xf32> to vector<16x64xf32>
    %163 = arith.negf %161 : vector<16x64xf32>
    %164 = math.exp %163 : vector<16x64xf32>
    %cst_54 = arith.constant 1.000000e+00 : f32
    %165 = vector.broadcast %cst_54 : f32 to vector<16x64xf32>
    %166 = arith.addf %165, %164 : vector<16x64xf32>
    %167 = arith.divf %165, %166 : vector<16x64xf32>
    %168 = arith.mulf %161, %167 : vector<16x64xf32>
    %169 = arith.mulf %168, %162 : vector<16x64xf32>
    %c0_55 = arith.constant 0 : index
    %c0_56 = arith.constant 0 : index
    %170 = vector.load %arg12[%c0_55, %c0_56] : memref<64x32xf32, #tpu.memory_space<vmem>>, vector<64x32xf32>
    %cst_57 = arith.constant dense<0.000000e+00> : vector<16x32xf32>
    %171 = tpu.matmul %169, %170, %cst_57 {dimension_numbers = #tpu.dot_dimension_numbers<[1], [0], [0], [1], [0, 0, 1, 1], [], []>} : vector<16x64xf32>, vector<64x32xf32>, vector<16x32xf32> -> vector<16x32xf32>
    %172 = arith.addf %145, %171 : vector<16x32xf32>
    %c0_58 = arith.constant 0 : index
    %c0_59 = arith.constant 0 : index
    %173 = vector.load %arg13[%c0_58, %c0_59] : memref<1x32xf32, #tpu.memory_space<vmem>>, vector<1x32xf32>
    %174 = arith.mulf %172, %172 : vector<16x32xf32>
    %cst_60 = arith.constant dense<0.000000e+00> : vector<16xf32>
    %175 = vector.multi_reduction <add>, %174, %cst_60 [1] : vector<16x32xf32> to vector<16xf32>
    %176 = vector.shape_cast %175 : vector<16xf32> to vector<16x1xf32>
    %cst_61 = arith.constant 3.200000e+01 : f32
    %177 = vector.broadcast %cst_61 : f32 to vector<16x1xf32>
    %178 = arith.divf %176, %177 : vector<16x1xf32>
    %cst_62 = arith.constant 9.99999997E-7 : f32
    %179 = vector.broadcast %cst_62 : f32 to vector<16x1xf32>
    %180 = arith.addf %178, %179 : vector<16x1xf32>
    %181 = math.rsqrt %180 : vector<16x1xf32>
    %182 = vector.broadcast %181 : vector<16x1xf32> to vector<16x32xf32>
    %183 = arith.mulf %172, %182 : vector<16x32xf32>
    %184 = vector.broadcast %173 : vector<1x32xf32> to vector<16x32xf32>
    %185 = arith.mulf %183, %184 : vector<16x32xf32>
    %c0_63 = arith.constant 0 : index
    %c0_64 = arith.constant 0 : index
    %186 = vector.load %arg14[%c0_63, %c0_64] : memref<32x64xf32, #tpu.memory_space<vmem>>, vector<32x64xf32>
    %cst_65 = arith.constant dense<0.000000e+00> : vector<16x64xf32>
    %187 = tpu.matmul %185, %186, %cst_65 {dimension_numbers = #tpu.dot_dimension_numbers<[1], [0], [0], [1], [0, 0, 1, 1], [], []>} : vector<16x32xf32>, vector<32x64xf32>, vector<16x64xf32> -> vector<16x64xf32>
    %188 = vector.extract_strided_slice %187 {offsets = [0, 32], sizes = [16, 8], strides = [1, 1]} : vector<16x64xf32> to vector<16x8xf32>
    %189 = vector.extract_strided_slice %188 {offsets = [0, 4], sizes = [16, 4], strides = [1, 1]} : vector<16x8xf32> to vector<16x4xf32>
    %cst_66 = arith.constant 0.000000e+00 : f32
    %190 = vector.broadcast %cst_66 : f32 to vector<16x4xf32>
    %191 = arith.subf %190, %189 : vector<16x4xf32>
    %192 = vector.extract_strided_slice %188 {offsets = [0, 0], sizes = [16, 4], strides = [1, 1]} : vector<16x8xf32> to vector<16x4xf32>
    %193 = tpu.concatenate %191, %192 in 1 : vector<16x4xf32>, vector<16x4xf32> -> vector<16x8xf32>
    %194 = arith.mulf %188, %8 : vector<16x8xf32>
    %195 = arith.mulf %193, %9 : vector<16x8xf32>
    %196 = arith.addf %194, %195 : vector<16x8xf32>
    %197 = vector.extract_strided_slice %187 {offsets = [0, 40], sizes = [16, 8], strides = [1, 1]} : vector<16x64xf32> to vector<16x8xf32>
    %198 = vector.extract_strided_slice %197 {offsets = [0, 4], sizes = [16, 4], strides = [1, 1]} : vector<16x8xf32> to vector<16x4xf32>
    %cst_67 = arith.constant 0.000000e+00 : f32
    %199 = vector.broadcast %cst_67 : f32 to vector<16x4xf32>
    %200 = arith.subf %199, %198 : vector<16x4xf32>
    %201 = vector.extract_strided_slice %197 {offsets = [0, 0], sizes = [16, 4], strides = [1, 1]} : vector<16x8xf32> to vector<16x4xf32>
    %202 = tpu.concatenate %200, %201 in 1 : vector<16x4xf32>, vector<16x4xf32> -> vector<16x8xf32>
    %203 = arith.mulf %197, %8 : vector<16x8xf32>
    %204 = arith.mulf %202, %9 : vector<16x8xf32>
    %205 = arith.addf %203, %204 : vector<16x8xf32>
    %206 = vector.extract_strided_slice %187 {offsets = [0, 48], sizes = [16, 8], strides = [1, 1]} : vector<16x64xf32> to vector<16x8xf32>
    %207 = vector.extract_strided_slice %187 {offsets = [0, 56], sizes = [16, 8], strides = [1, 1]} : vector<16x64xf32> to vector<16x8xf32>
    %208 = vector.extract_strided_slice %187 {offsets = [0, 0], sizes = [16, 8], strides = [1, 1]} : vector<16x64xf32> to vector<16x8xf32>
    %209 = vector.extract_strided_slice %208 {offsets = [0, 4], sizes = [16, 4], strides = [1, 1]} : vector<16x8xf32> to vector<16x4xf32>
    %cst_68 = arith.constant 0.000000e+00 : f32
    %210 = vector.broadcast %cst_68 : f32 to vector<16x4xf32>
    %211 = arith.subf %210, %209 : vector<16x4xf32>
    %212 = vector.extract_strided_slice %208 {offsets = [0, 0], sizes = [16, 4], strides = [1, 1]} : vector<16x8xf32> to vector<16x4xf32>
    %213 = tpu.concatenate %211, %212 in 1 : vector<16x4xf32>, vector<16x4xf32> -> vector<16x8xf32>
    %214 = arith.mulf %208, %8 : vector<16x8xf32>
    %215 = arith.mulf %213, %9 : vector<16x8xf32>
    %216 = arith.addf %214, %215 : vector<16x8xf32>
    %cst_69 = arith.constant dense<0.000000e+00> : vector<16x16xf32>
    %217 = tpu.matmul %216, %196, %cst_69 {dimension_numbers = #tpu.dot_dimension_numbers<[1], [1], [0], [0], [0, 0, 1, 0], [], []>} : vector<16x8xf32>, vector<16x8xf32>, vector<16x16xf32> -> vector<16x16xf32>
    %cst_70 = arith.constant 0.353553385 : f32
    %218 = vector.broadcast %cst_70 : f32 to vector<16x16xf32>
    %219 = arith.mulf %217, %218 : vector<16x16xf32>
    %220 = arith.addf %219, %10 : vector<16x16xf32>
    %cst_71 = arith.constant dense<0xFF800000> : vector<16xf32>
    %221 = vector.multi_reduction <maximumf>, %220, %cst_71 [1] : vector<16x16xf32> to vector<16xf32>
    %222 = vector.shape_cast %221 : vector<16xf32> to vector<16x1xf32>
    %223 = vector.broadcast %222 : vector<16x1xf32> to vector<16x16xf32>
    %224 = arith.subf %220, %223 : vector<16x16xf32>
    %225 = math.exp %224 : vector<16x16xf32>
    %cst_72 = arith.constant dense<0.000000e+00> : vector<16xf32>
    %226 = vector.multi_reduction <add>, %225, %cst_72 [1] : vector<16x16xf32> to vector<16xf32>
    %227 = vector.shape_cast %226 : vector<16xf32> to vector<16x1xf32>
    %228 = tpu.reciprocal %227 {approx = true} : vector<16x1xf32> -> vector<16x1xf32>
    %229 = vector.broadcast %228 : vector<16x1xf32> to vector<16x16xf32>
    %230 = arith.mulf %225, %229 : vector<16x16xf32>
    %cst_73 = arith.constant dense<0.000000e+00> : vector<16x8xf32>
    %231 = tpu.matmul %230, %206, %cst_73 {dimension_numbers = #tpu.dot_dimension_numbers<[1], [0], [0], [1], [0, 0, 1, 1], [], []>} : vector<16x16xf32>, vector<16x8xf32>, vector<16x8xf32> -> vector<16x8xf32>
    %232 = vector.extract_strided_slice %187 {offsets = [0, 8], sizes = [16, 8], strides = [1, 1]} : vector<16x64xf32> to vector<16x8xf32>
    %233 = vector.extract_strided_slice %232 {offsets = [0, 4], sizes = [16, 4], strides = [1, 1]} : vector<16x8xf32> to vector<16x4xf32>
    %cst_74 = arith.constant 0.000000e+00 : f32
    %234 = vector.broadcast %cst_74 : f32 to vector<16x4xf32>
    %235 = arith.subf %234, %233 : vector<16x4xf32>
    %236 = vector.extract_strided_slice %232 {offsets = [0, 0], sizes = [16, 4], strides = [1, 1]} : vector<16x8xf32> to vector<16x4xf32>
    %237 = tpu.concatenate %235, %236 in 1 : vector<16x4xf32>, vector<16x4xf32> -> vector<16x8xf32>
    %238 = arith.mulf %232, %8 : vector<16x8xf32>
    %239 = arith.mulf %237, %9 : vector<16x8xf32>
    %240 = arith.addf %238, %239 : vector<16x8xf32>
    %cst_75 = arith.constant dense<0.000000e+00> : vector<16x16xf32>
    %241 = tpu.matmul %240, %196, %cst_75 {dimension_numbers = #tpu.dot_dimension_numbers<[1], [1], [0], [0], [0, 0, 1, 0], [], []>} : vector<16x8xf32>, vector<16x8xf32>, vector<16x16xf32> -> vector<16x16xf32>
    %cst_76 = arith.constant 0.353553385 : f32
    %242 = vector.broadcast %cst_76 : f32 to vector<16x16xf32>
    %243 = arith.mulf %241, %242 : vector<16x16xf32>
    %244 = arith.addf %243, %10 : vector<16x16xf32>
    %cst_77 = arith.constant dense<0xFF800000> : vector<16xf32>
    %245 = vector.multi_reduction <maximumf>, %244, %cst_77 [1] : vector<16x16xf32> to vector<16xf32>
    %246 = vector.shape_cast %245 : vector<16xf32> to vector<16x1xf32>
    %247 = vector.broadcast %246 : vector<16x1xf32> to vector<16x16xf32>
    %248 = arith.subf %244, %247 : vector<16x16xf32>
    %249 = math.exp %248 : vector<16x16xf32>
    %cst_78 = arith.constant dense<0.000000e+00> : vector<16xf32>
    %250 = vector.multi_reduction <add>, %249, %cst_78 [1] : vector<16x16xf32> to vector<16xf32>
    %251 = vector.shape_cast %250 : vector<16xf32> to vector<16x1xf32>
    %252 = tpu.reciprocal %251 {approx = true} : vector<16x1xf32> -> vector<16x1xf32>
    %253 = vector.broadcast %252 : vector<16x1xf32> to vector<16x16xf32>
    %254 = arith.mulf %249, %253 : vector<16x16xf32>
    %cst_79 = arith.constant dense<0.000000e+00> : vector<16x8xf32>
    %255 = tpu.matmul %254, %206, %cst_79 {dimension_numbers = #tpu.dot_dimension_numbers<[1], [0], [0], [1], [0, 0, 1, 1], [], []>} : vector<16x16xf32>, vector<16x8xf32>, vector<16x8xf32> -> vector<16x8xf32>
    %256 = vector.extract_strided_slice %187 {offsets = [0, 16], sizes = [16, 8], strides = [1, 1]} : vector<16x64xf32> to vector<16x8xf32>
    %257 = vector.extract_strided_slice %256 {offsets = [0, 4], sizes = [16, 4], strides = [1, 1]} : vector<16x8xf32> to vector<16x4xf32>
    %cst_80 = arith.constant 0.000000e+00 : f32
    %258 = vector.broadcast %cst_80 : f32 to vector<16x4xf32>
    %259 = arith.subf %258, %257 : vector<16x4xf32>
    %260 = vector.extract_strided_slice %256 {offsets = [0, 0], sizes = [16, 4], strides = [1, 1]} : vector<16x8xf32> to vector<16x4xf32>
    %261 = tpu.concatenate %259, %260 in 1 : vector<16x4xf32>, vector<16x4xf32> -> vector<16x8xf32>
    %262 = arith.mulf %256, %8 : vector<16x8xf32>
    %263 = arith.mulf %261, %9 : vector<16x8xf32>
    %264 = arith.addf %262, %263 : vector<16x8xf32>
    %cst_81 = arith.constant dense<0.000000e+00> : vector<16x16xf32>
    %265 = tpu.matmul %264, %205, %cst_81 {dimension_numbers = #tpu.dot_dimension_numbers<[1], [1], [0], [0], [0, 0, 1, 0], [], []>} : vector<16x8xf32>, vector<16x8xf32>, vector<16x16xf32> -> vector<16x16xf32>
    %cst_82 = arith.constant 0.353553385 : f32
    %266 = vector.broadcast %cst_82 : f32 to vector<16x16xf32>
    %267 = arith.mulf %265, %266 : vector<16x16xf32>
    %268 = arith.addf %267, %10 : vector<16x16xf32>
    %cst_83 = arith.constant dense<0xFF800000> : vector<16xf32>
    %269 = vector.multi_reduction <maximumf>, %268, %cst_83 [1] : vector<16x16xf32> to vector<16xf32>
    %270 = vector.shape_cast %269 : vector<16xf32> to vector<16x1xf32>
    %271 = vector.broadcast %270 : vector<16x1xf32> to vector<16x16xf32>
    %272 = arith.subf %268, %271 : vector<16x16xf32>
    %273 = math.exp %272 : vector<16x16xf32>
    %cst_84 = arith.constant dense<0.000000e+00> : vector<16xf32>
    %274 = vector.multi_reduction <add>, %273, %cst_84 [1] : vector<16x16xf32> to vector<16xf32>
    %275 = vector.shape_cast %274 : vector<16xf32> to vector<16x1xf32>
    %276 = tpu.reciprocal %275 {approx = true} : vector<16x1xf32> -> vector<16x1xf32>
    %277 = vector.broadcast %276 : vector<16x1xf32> to vector<16x16xf32>
    %278 = arith.mulf %273, %277 : vector<16x16xf32>
    %cst_85 = arith.constant dense<0.000000e+00> : vector<16x8xf32>
    %279 = tpu.matmul %278, %207, %cst_85 {dimension_numbers = #tpu.dot_dimension_numbers<[1], [0], [0], [1], [0, 0, 1, 1], [], []>} : vector<16x16xf32>, vector<16x8xf32>, vector<16x8xf32> -> vector<16x8xf32>
    %280 = vector.extract_strided_slice %187 {offsets = [0, 24], sizes = [16, 8], strides = [1, 1]} : vector<16x64xf32> to vector<16x8xf32>
    %281 = vector.extract_strided_slice %280 {offsets = [0, 4], sizes = [16, 4], strides = [1, 1]} : vector<16x8xf32> to vector<16x4xf32>
    %cst_86 = arith.constant 0.000000e+00 : f32
    %282 = vector.broadcast %cst_86 : f32 to vector<16x4xf32>
    %283 = arith.subf %282, %281 : vector<16x4xf32>
    %284 = vector.extract_strided_slice %280 {offsets = [0, 0], sizes = [16, 4], strides = [1, 1]} : vector<16x8xf32> to vector<16x4xf32>
    %285 = tpu.concatenate %283, %284 in 1 : vector<16x4xf32>, vector<16x4xf32> -> vector<16x8xf32>
    %286 = arith.mulf %280, %8 : vector<16x8xf32>
    %287 = arith.mulf %285, %9 : vector<16x8xf32>
    %288 = arith.addf %286, %287 : vector<16x8xf32>
    %cst_87 = arith.constant dense<0.000000e+00> : vector<16x16xf32>
    %289 = tpu.matmul %288, %205, %cst_87 {dimension_numbers = #tpu.dot_dimension_numbers<[1], [1], [0], [0], [0, 0, 1, 0], [], []>} : vector<16x8xf32>, vector<16x8xf32>, vector<16x16xf32> -> vector<16x16xf32>
    %cst_88 = arith.constant 0.353553385 : f32
    %290 = vector.broadcast %cst_88 : f32 to vector<16x16xf32>
    %291 = arith.mulf %289, %290 : vector<16x16xf32>
    %292 = arith.addf %291, %10 : vector<16x16xf32>
    %cst_89 = arith.constant dense<0xFF800000> : vector<16xf32>
    %293 = vector.multi_reduction <maximumf>, %292, %cst_89 [1] : vector<16x16xf32> to vector<16xf32>
    %294 = vector.shape_cast %293 : vector<16xf32> to vector<16x1xf32>
    %295 = vector.broadcast %294 : vector<16x1xf32> to vector<16x16xf32>
    %296 = arith.subf %292, %295 : vector<16x16xf32>
    %297 = math.exp %296 : vector<16x16xf32>
    %cst_90 = arith.constant dense<0.000000e+00> : vector<16xf32>
    %298 = vector.multi_reduction <add>, %297, %cst_90 [1] : vector<16x16xf32> to vector<16xf32>
    %299 = vector.shape_cast %298 : vector<16xf32> to vector<16x1xf32>
    %300 = tpu.reciprocal %299 {approx = true} : vector<16x1xf32> -> vector<16x1xf32>
    %301 = vector.broadcast %300 : vector<16x1xf32> to vector<16x16xf32>
    %302 = arith.mulf %297, %301 : vector<16x16xf32>
    %cst_91 = arith.constant dense<0.000000e+00> : vector<16x8xf32>
    %303 = tpu.matmul %302, %207, %cst_91 {dimension_numbers = #tpu.dot_dimension_numbers<[1], [0], [0], [1], [0, 0, 1, 1], [], []>} : vector<16x16xf32>, vector<16x8xf32>, vector<16x8xf32> -> vector<16x8xf32>
    %304 = tpu.concatenate %231, %255, %279, %303 in 1 : vector<16x8xf32>, vector<16x8xf32>, vector<16x8xf32>, vector<16x8xf32> -> vector<16x32xf32>
    %c0_92 = arith.constant 0 : index
    %c0_93 = arith.constant 0 : index
    %305 = vector.load %arg15[%c0_92, %c0_93] : memref<32x32xf32, #tpu.memory_space<vmem>>, vector<32x32xf32>
    %cst_94 = arith.constant dense<0.000000e+00> : vector<16x32xf32>
    %306 = tpu.matmul %304, %305, %cst_94 {dimension_numbers = #tpu.dot_dimension_numbers<[1], [0], [0], [1], [0, 0, 1, 1], [], []>} : vector<16x32xf32>, vector<32x32xf32>, vector<16x32xf32> -> vector<16x32xf32>
    %307 = arith.addf %172, %306 : vector<16x32xf32>
    %c0_95 = arith.constant 0 : index
    %c0_96 = arith.constant 0 : index
    %308 = vector.load %arg16[%c0_95, %c0_96] : memref<1x32xf32, #tpu.memory_space<vmem>>, vector<1x32xf32>
    %309 = arith.mulf %307, %307 : vector<16x32xf32>
    %cst_97 = arith.constant dense<0.000000e+00> : vector<16xf32>
    %310 = vector.multi_reduction <add>, %309, %cst_97 [1] : vector<16x32xf32> to vector<16xf32>
    %311 = vector.shape_cast %310 : vector<16xf32> to vector<16x1xf32>
    %cst_98 = arith.constant 3.200000e+01 : f32
    %312 = vector.broadcast %cst_98 : f32 to vector<16x1xf32>
    %313 = arith.divf %311, %312 : vector<16x1xf32>
    %cst_99 = arith.constant 9.99999997E-7 : f32
    %314 = vector.broadcast %cst_99 : f32 to vector<16x1xf32>
    %315 = arith.addf %313, %314 : vector<16x1xf32>
    %316 = math.rsqrt %315 : vector<16x1xf32>
    %317 = vector.broadcast %316 : vector<16x1xf32> to vector<16x32xf32>
    %318 = arith.mulf %307, %317 : vector<16x32xf32>
    %319 = vector.broadcast %308 : vector<1x32xf32> to vector<16x32xf32>
    %320 = arith.mulf %318, %319 : vector<16x32xf32>
    %c0_100 = arith.constant 0 : index
    %c0_101 = arith.constant 0 : index
    %321 = vector.load %arg17[%c0_100, %c0_101] : memref<32x128xf32, #tpu.memory_space<vmem>>, vector<32x128xf32>
    %cst_102 = arith.constant dense<0.000000e+00> : vector<16x128xf32>
    %322 = tpu.matmul %320, %321, %cst_102 {dimension_numbers = #tpu.dot_dimension_numbers<[1], [0], [0], [1], [0, 0, 1, 1], [], []>} : vector<16x32xf32>, vector<32x128xf32>, vector<16x128xf32> -> vector<16x128xf32>
    %323 = vector.extract_strided_slice %322 {offsets = [0, 0], sizes = [16, 64], strides = [1, 1]} : vector<16x128xf32> to vector<16x64xf32>
    %324 = vector.extract_strided_slice %322 {offsets = [0, 64], sizes = [16, 64], strides = [1, 1]} : vector<16x128xf32> to vector<16x64xf32>
    %325 = arith.negf %323 : vector<16x64xf32>
    %326 = math.exp %325 : vector<16x64xf32>
    %cst_103 = arith.constant 1.000000e+00 : f32
    %327 = vector.broadcast %cst_103 : f32 to vector<16x64xf32>
    %328 = arith.addf %327, %326 : vector<16x64xf32>
    %329 = arith.divf %327, %328 : vector<16x64xf32>
    %330 = arith.mulf %323, %329 : vector<16x64xf32>
    %331 = arith.mulf %330, %324 : vector<16x64xf32>
    %c0_104 = arith.constant 0 : index
    %c0_105 = arith.constant 0 : index
    %332 = vector.load %arg18[%c0_104, %c0_105] : memref<64x32xf32, #tpu.memory_space<vmem>>, vector<64x32xf32>
    %cst_106 = arith.constant dense<0.000000e+00> : vector<16x32xf32>
    %333 = tpu.matmul %331, %332, %cst_106 {dimension_numbers = #tpu.dot_dimension_numbers<[1], [0], [0], [1], [0, 0, 1, 1], [], []>} : vector<16x64xf32>, vector<64x32xf32>, vector<16x32xf32> -> vector<16x32xf32>
    %334 = arith.addf %307, %333 : vector<16x32xf32>
    %c0_107 = arith.constant 0 : index
    %c0_108 = arith.constant 0 : index
    %335 = vector.load %arg5[%c0_107, %c0_108] : memref<1x32xf32, #tpu.memory_space<vmem>>, vector<1x32xf32>
    %336 = arith.mulf %334, %334 : vector<16x32xf32>
    %cst_109 = arith.constant dense<0.000000e+00> : vector<16xf32>
    %337 = vector.multi_reduction <add>, %336, %cst_109 [1] : vector<16x32xf32> to vector<16xf32>
    %338 = vector.shape_cast %337 : vector<16xf32> to vector<16x1xf32>
    %cst_110 = arith.constant 3.200000e+01 : f32
    %339 = vector.broadcast %cst_110 : f32 to vector<16x1xf32>
    %340 = arith.divf %338, %339 : vector<16x1xf32>
    %cst_111 = arith.constant 9.99999997E-7 : f32
    %341 = vector.broadcast %cst_111 : f32 to vector<16x1xf32>
    %342 = arith.addf %340, %341 : vector<16x1xf32>
    %343 = math.rsqrt %342 : vector<16x1xf32>
    %344 = vector.broadcast %343 : vector<16x1xf32> to vector<16x32xf32>
    %345 = arith.mulf %334, %344 : vector<16x32xf32>
    %346 = vector.broadcast %335 : vector<1x32xf32> to vector<16x32xf32>
    %347 = arith.mulf %345, %346 : vector<16x32xf32>
    %c0_112 = arith.constant 0 : index
    %c0_113 = arith.constant 0 : index
    %348 = vector.load %arg6[%c0_112, %c0_113] : memref<32x256xf32, #tpu.memory_space<vmem>>, vector<32x256xf32>
    %cst_114 = arith.constant dense<0.000000e+00> : vector<16x256xf32>
    %349 = tpu.matmul %347, %348, %cst_114 {dimension_numbers = #tpu.dot_dimension_numbers<[1], [0], [0], [1], [0, 0, 1, 1], [], []>} : vector<16x32xf32>, vector<32x256xf32>, vector<16x256xf32> -> vector<16x256xf32>
    %c0_115 = arith.constant 0 : index
    %c0_116 = arith.constant 0 : index
    %350 = vector.load %arg19[%c0_115, %c0_116] : memref<16x256xf32, #tpu.memory_space<vmem>>, vector<16x256xf32>
    tpu.vector_store %arg19[%c0_115, %c0_116], %349 {strides = array<i32>} : memref<16x256xf32, #tpu.memory_space<vmem>>, vector<16x256xf32>,
    return
  }
}

</mosaic_0001>

<llo_original>
// kernel: decoder_forward.1
$region0: #{decoder_forward.1}
  #allocation0 [shape = 'u32[]', space=smem, size = 0x4, offset = 0x4, fixed_abs, tag = 'smem constant byte address 0x4 - core index']
  #allocation1 [shape = 'u32[144,128]{1,0:T(1,128)}', space=vmem, size = 0x12000, scoped, tag = 'internal scratch']
  %s0 = inlined_call_operand.vmem [shape: s32[16,1], index: 0, kind: input, shape index: {}]
  %s1 = inlined_call_operand.vmem [shape: f32[16,8], index: 1, kind: input, shape index: {}]
  %s2 = inlined_call_operand.vmem [shape: f32[16,8], index: 2, kind: input, shape index: {}]
  %s3 = inlined_call_operand.vmem [shape: f32[16,16], index: 3, kind: input, shape index: {}]
  %s4 = inlined_call_operand.vmem [shape: f32[256,32], index: 4, kind: input, shape index: {}]
  %s5 = inlined_call_operand.vmem [shape: f32[1,32], index: 5, kind: input, shape index: {}]
  %s6 = inlined_call_operand.vmem [shape: f32[32,256], index: 6, kind: input, shape index: {}]
  %s7 = inlined_call_operand.vmem [shape: f32[1,32], index: 7, kind: input, shape index: {}]
  %s8 = inlined_call_operand.vmem [shape: f32[32,64], index: 8, kind: input, shape index: {}]
  %s9 = inlined_call_operand.vmem [shape: f32[32,32], index: 9, kind: input, shape index: {}]
  %s10 = inlined_call_operand.vmem [shape: f32[1,32], index: 10, kind: input, shape index: {}]
  %s11 = inlined_call_operand.vmem [shape: f32[32,128], index: 11, kind: input, shape index: {}]
  %s12 = inlined_call_operand.vmem [shape: f32[64,32], index: 12, kind: input, shape index: {}]
  %s13 = inlined_call_operand.vmem [shape: f32[1,32], index: 13, kind: input, shape index: {}]
  %s14 = inlined_call_operand.vmem [shape: f32[32,64], index: 14, kind: input, shape index: {}]
  %s15 = inlined_call_operand.vmem [shape: f32[32,32], index: 15, kind: input, shape index: {}]
  %s16 = inlined_call_operand.vmem [shape: f32[1,32], index: 16, kind: input, shape index: {}]
  %s17 = inlined_call_operand.vmem [shape: f32[32,128], index: 17, kind: input, shape index: {}]
  %s18 = inlined_call_operand.vmem [shape: f32[64,32], index: 18, kind: input, shape index: {}]
  %s19 = inlined_call_operand.vmem [shape: f32[16,256], index: 19, kind: output, shape index: {}]
  %s20 = sld [smem:[#allocation0]]
  $region86: #{decoder_forward.1} parent=0
    _
  %s22 = ssub.s32 1, %s20
  %s23 = scalar_select 0, %s22, %s20
  // Predicated region
  $region2: #{decoder_forward.1} parent=0 // pred_check
    _
  $region3: #{decoder_forward.1} parent=0 // pred_check_branch
    %25 = sbr.rel (0) target = $region5
  $region4: #{decoder_forward.1} parent=0 // pred_region
    _
  $region5: #{decoder_forward.1} parent=0 // pred_fallthru
    _
  // Predicated region
  $region6: #{decoder_forward.1} parent=0 // pred_check
    _
  $region7: #{decoder_forward.1} parent=0 // pred_check_branch
    %27 = sbr.rel (0) target = $region9
  $region8: #{decoder_forward.1} parent=0 // pred_region
    _
  $region9: #{decoder_forward.1} parent=0 // pred_fallthru
    _
  // Predicated region
  $region10: #{decoder_forward.1} parent=0 // pred_check
    _
  $region11: #{decoder_forward.1} parent=0 // pred_check_branch
    %29 = sbr.rel (0) target = $region13
  $region12: #{decoder_forward.1} parent=0 // pred_region
    _
  $region13: #{decoder_forward.1} parent=0 // pred_fallthru
    _
  // Predicated region
  $region14: #{decoder_forward.1} parent=0 // pred_check
    _
  $region15: #{decoder_forward.1} parent=0 // pred_check_branch
    %31 = sbr.rel (0) target = $region17
  $region16: #{decoder_forward.1} parent=0 // pred_region
    _
  $region17: #{decoder_forward.1} parent=0 // pred_fallthru
    _
  // Predicated region
  $region18: #{decoder_forward.1} parent=0 // pred_check
    _
  $region19: #{decoder_forward.1} parent=0 // pred_check_branch
    %33 = sbr.rel (0) target = $region21
  $region20: #{decoder_forward.1} parent=0 // pred_region
    _
  $region21: #{decoder_forward.1} parent=0 // pred_fallthru
    _
  // Predicated region
  $region22: #{decoder_forward.1} parent=0 // pred_check
    _
  $region23: #{decoder_forward.1} parent=0 // pred_check_branch
    %35 = sbr.rel (0) target = $region25
  $region24: #{decoder_forward.1} parent=0 // pred_region
    _
  $region25: #{decoder_forward.1} parent=0 // pred_fallthru
    _
  // Predicated region
  $region26: #{decoder_forward.1} parent=0 // pred_check
    _
  $region27: #{decoder_forward.1} parent=0 // pred_check_branch
    %37 = sbr.rel (0) target = $region29
  $region28: #{decoder_forward.1} parent=0 // pred_region
    _
  $region29: #{decoder_forward.1} parent=0 // pred_fallthru
    _
  // Predicated region
  $region30: #{decoder_forward.1} parent=0 // pred_check
    _
  $region31: #{decoder_forward.1} parent=0 // pred_check_branch
    %39 = sbr.rel (0) target = $region33
  $region32: #{decoder_forward.1} parent=0 // pred_region
    _
  $region33: #{decoder_forward.1} parent=0 // pred_fallthru
    _
  // Predicated region
  $region34: #{decoder_forward.1} parent=0 // pred_check
    _
  $region35: #{decoder_forward.1} parent=0 // pred_check_branch
    %41 = sbr.rel (0) target = $region37
  $region36: #{decoder_forward.1} parent=0 // pred_region
    _
  $region37: #{decoder_forward.1} parent=0 // pred_fallthru
    _
  // Predicated region
  $region38: #{decoder_forward.1} parent=0 // pred_check
    _
  $region39: #{decoder_forward.1} parent=0 // pred_check_branch
    %43 = sbr.rel (0) target = $region41
  $region40: #{decoder_forward.1} parent=0 // pred_region
    _
  $region41: #{decoder_forward.1} parent=0 // pred_fallthru
    _
  // Predicated region
  $region42: #{decoder_forward.1} parent=0 // pred_check
    _
  $region43: #{decoder_forward.1} parent=0 // pred_check_branch
    %45 = sbr.rel (0) target = $region45
  $region44: #{decoder_forward.1} parent=0 // pred_region
    _
  $region45: #{decoder_forward.1} parent=0 // pred_fallthru
    _
  // Predicated region
  $region46: #{decoder_forward.1} parent=0 // pred_check
    _
  $region47: #{decoder_forward.1} parent=0 // pred_check_branch
    %47 = sbr.rel (0) target = $region49
  $region48: #{decoder_forward.1} parent=0 // pred_region
    _
  $region49: #{decoder_forward.1} parent=0 // pred_fallthru
    _
  // Predicated region
  $region50: #{decoder_forward.1} parent=0 // pred_check
    _
  $region51: #{decoder_forward.1} parent=0 // pred_check_branch
    %49 = sbr.rel (0) target = $region53
  $region52: #{decoder_forward.1} parent=0 // pred_region
    _
  $region53: #{decoder_forward.1} parent=0 // pred_fallthru
    _
  // Predicated region
  $region54: #{decoder_forward.1} parent=0 // pred_check
    _
  $region55: #{decoder_forward.1} parent=0 // pred_check_branch
    %51 = sbr.rel (0) target = $region57
  $region56: #{decoder_forward.1} parent=0 // pred_region
    _
  $region57: #{decoder_forward.1} parent=0 // pred_fallthru
    _
  // Predicated region
  $region58: #{decoder_forward.1} parent=0 // pred_check
    _
  $region59: #{decoder_forward.1} parent=0 // pred_check_branch
    %53 = sbr.rel (0) target = $region61
  $region60: #{decoder_forward.1} parent=0 // pred_region
    _
  $region61: #{decoder_forward.1} parent=0 // pred_fallthru
    _
  // Predicated region
  $region62: #{decoder_forward.1} parent=0 // pred_check
    _
  $region63: #{decoder_forward.1} parent=0 // pred_check_branch
    %55 = sbr.rel (0) target = $region65
  $region64: #{decoder_forward.1} parent=0 // pred_region
    _
  $region65: #{decoder_forward.1} parent=0 // pred_fallthru
    _
  // Predicated region
  $region66: #{decoder_forward.1} parent=0 // pred_check
    _
  $region67: #{decoder_forward.1} parent=0 // pred_check_branch
    %57 = sbr.rel (0) target = $region69
  $region68: #{decoder_forward.1} parent=0 // pred_region
    _
  $region69: #{decoder_forward.1} parent=0 // pred_fallthru
    _
  // Predicated region
  $region70: #{decoder_forward.1} parent=0 // pred_check
    _
  $region71: #{decoder_forward.1} parent=0 // pred_check_branch
    %59 = sbr.rel (0) target = $region73
  $region72: #{decoder_forward.1} parent=0 // pred_region
    _
  $region73: #{decoder_forward.1} parent=0 // pred_fallthru
    _
  // Predicated region
  $region74: #{decoder_forward.1} parent=0 // pred_check
    _
  $region75: #{decoder_forward.1} parent=0 // pred_check_branch
    %61 = sbr.rel (0) target = $region77
  $region76: #{decoder_forward.1} parent=0 // pred_region
    _
  $region77: #{decoder_forward.1} parent=0 // pred_fallthru
    _
  %v62 = vld [vmem:[%s0] sm:$0xff]
  %v63 = vld [vmem:[%s0 + $0x8] sm:$0xff]
  %v64 = vlaneseq
  %v65 = vand.u32 %v64, 127
  %v66 = vadd.s32 %v65, 128
  %67 = vset.pattern.permute.xlu0 0
  %68 = vperm.xlu0 %67, %v62
  %v69 = vpop.permute.xlu0 %68
  %70 = vset.pattern.permute.xlu0 0
  %71 = vperm.xlu0 %70, %v63
  %v72 = vpop.permute.xlu0 %71
  %vm73 = vcmp.eq.s32.totalorder %v65, %v69
  %vm74 = vcmp.eq.s32.totalorder %v66, %v69
  %vm75 = vcmp.eq.s32.totalorder %v65, %v72
  %vm76 = vcmp.eq.s32.totalorder %v66, %v72
  %v77 = vsel %vm73, 1, 0
  %v78 = vsel %vm74, 1, 0
  %v79 = vsel %vm75, 1, 0
  %v80 = vsel %vm76, 1, 0
  %v81 = vcvt.s32.f32 %v77
  %v82 = vcvt.s32.f32 %v78
  %v83 = vcvt.s32.f32 %v79
  %v84 = vcvt.s32.f32 %v80
  %v85 = vld [vmem:[%s4] sm:$0xff]
  %v86 = vld [vmem:[%s4 + $0x8] sm:$0xff]
  %v87 = vld [vmem:[%s4 + $0x10] sm:$0xff]
  %v88 = vld [vmem:[%s4 + $0x18] sm:$0xff]
  %v89 = vld [vmem:[%s4 + $0x20] sm:$0xff]
  %v90 = vld [vmem:[%s4 + $0x28] sm:$0xff]
  %v91 = vld [vmem:[%s4 + $0x30] sm:$0xff]
  %v92 = vld [vmem:[%s4 + $0x38] sm:$0xff]
  %v93 = vld [vmem:[%s4 + $0x40] sm:$0xff]
  %v94 = vld [vmem:[%s4 + $0x48] sm:$0xff]
  %v95 = vld [vmem:[%s4 + $0x50] sm:$0xff]
  %v96 = vld [vmem:[%s4 + $0x58] sm:$0xff]
  %v97 = vld [vmem:[%s4 + $0x60] sm:$0xff]
  %v98 = vld [vmem:[%s4 + $0x68] sm:$0xff]
  %v99 = vld [vmem:[%s4 + $0x70] sm:$0xff]
  %v100 = vld [vmem:[%s4 + $0x78] sm:$0xff]
  %v101 = vld [vmem:[%s4 + $0x80] sm:$0xff]
  %v102 = vld [vmem:[%s4 + $0x88] sm:$0xff]
  %v103 = vld [vmem:[%s4 + $0x90] sm:$0xff]
  %v104 = vld [vmem:[%s4 + $0x98] sm:$0xff]
  %v105 = vld [vmem:[%s4 + $0xa0] sm:$0xff]
  %v106 = vld [vmem:[%s4 + $0xa8] sm:$0xff]
  %v107 = vld [vmem:[%s4 + $0xb0] sm:$0xff]
  %v108 = vld [vmem:[%s4 + $0xb8] sm:$0xff]
  %v109 = vld [vmem:[%s4 + $0xc0] sm:$0xff]
  %v110 = vld [vmem:[%s4 + $0xc8] sm:$0xff]
  %v111 = vld [vmem:[%s4 + $0xd0] sm:$0xff]
  %v112 = vld [vmem:[%s4 + $0xd8] sm:$0xff]
  %v113 = vld [vmem:[%s4 + $0xe0] sm:$0xff]
  %v114 = vld [vmem:[%s4 + $0xe8] sm:$0xff]
  %v115 = vld [vmem:[%s4 + $0xf0] sm:$0xff]
  %v116 = vld [vmem:[%s4 + $0xf8] sm:$0xff]
  %117 = vmatprep.subr.mxu0 0.0
  %118 = vmatpush1.msra.mxu0 %v85
  %119 = vmatprep.subr.mxu0 0.0
  %120 = vmatpush1.msra.mxu0 %v86
  %121 = vmatprep.subr.mxu0 0.0
  %122 = vmatpush1.msra.mxu0 %v87
  %123 = vmatprep.subr.mxu0 0.0
  %124 = vmatpush1.msra.mxu0 %v88
  %125 = vmatprep.subr.mxu0 0.0
  %126 = vmatpush1.msra.mxu0 %v89
  %127 = vmatprep.subr.mxu0 0.0
  %128 = vmatpush1.msra.mxu0 %v90
  %129 = vmatprep.subr.mxu0 0.0
  %130 = vmatpush1.msra.mxu0 %v91
  %131 = vmatprep.subr.mxu0 0.0
  %132 = vmatpush1.msra.mxu0 %v92
  %133 = vmatprep.subr.mxu0 0.0
  %134 = vmatpush1.msra.mxu0 %v93
  %135 = vmatprep.subr.mxu0 0.0
  %136 = vmatpush1.msra.mxu0 %v94
  %137 = vmatprep.subr.mxu0 0.0
  %138 = vmatpush1.msra.mxu0 %v95
  %139 = vmatprep.subr.mxu0 0.0
  %140 = vmatpush1.msra.mxu0 %v96
  %141 = vmatprep.subr.mxu0 0.0
  %142 = vmatpush1.msra.mxu0 %v97
  %143 = vmatprep.subr.mxu0 0.0
  %144 = vmatpush1.msra.mxu0 %v98
  %145 = vmatprep.subr.mxu0 0.0
  %146 = vmatpush1.msra.mxu0 %v99
  %147 = vmatprep.subr.mxu0 0.0
  %148 = vmatpush1.msra.mxu0 %v100
  %149 = vmatprep.subr.mxu0 0.0
  %150 = vmatpush1.msra.mxu0 %v101
  %151 = vmatprep.subr.mxu0 0.0
  %152 = vmatpush1.msra.mxu0 %v102
  %153 = vmatprep.subr.mxu0 0.0
  %154 = vmatpush1.msra.mxu0 %v103
  %155 = vmatprep.subr.mxu0 0.0
  %156 = vmatpush1.msra.mxu0 %v104
  %157 = vmatprep.subr.mxu0 0.0
  %158 = vmatpush1.msra.mxu0 %v105
  %159 = vmatprep.subr.mxu0 0.0
  %160 = vmatpush1.msra.mxu0 %v106
  %161 = vmatprep.subr.mxu0 0.0
  %162 = vmatpush1.msra.mxu0 %v107
  %163 = vmatprep.subr.mxu0 0.0
  %164 = vmatpush1.msra.mxu0 %v108
  %165 = vmatprep.subr.mxu0 0.0
  %166 = vmatpush1.msra.mxu0 %v109
  %167 = vmatprep.subr.mxu0 0.0
  %168 = vmatpush1.msra.mxu0 %v110
  %169 = vmatprep.subr.mxu0 0.0
  %170 = vmatpush1.msra.mxu0 %v111
  %171 = vmatprep.subr.mxu0 0.0
  %172 = vmatpush1.msra.mxu0 %v112
  %173 = vmatprep.subr.mxu0 0.0
  %174 = vmatpush1.msra.mxu0 %v113
  %175 = vmatprep.subr.mxu0 0.0
  %176 = vmatpush1.msra.mxu0 %v114
  %177 = vmatprep.subr.mxu0 0.0
  %178 = vmatpush1.msra.mxu0 %v115
  %179 = vmatprep.subr.mxu0 0.0
  %180 = vmatpush1.msra.mxu0 %v116
  %181 = vmatprep.mubr.f32.mxu0 %v82
  %182 = vmatmul.mubr.f32.gmra.mrb[0].mxu0 %v81
  %v183 = vpop.f32.mrb[0].mxu0
  %v184 = vadd.f32 0.0, %v183
  %v185 = vpop.f32.mrb[0].mxu0
  %186 = vmatprep.mubr.f32.mxu0 %v84
  %187 = vmatmul.mubr.f32.gmra.mrb[0].mxu0 %v83
  %v188 = vpop.f32.mrb[0].mxu0
  %v189 = vadd.f32 0.0, %v188
  %v190 = vpop.f32.mrb[0].mxu0
  %191 = vdwg.mxu0
  %v192 = vld [vmem:[%s1] sm:$0xff]
  %v193 = vld [vmem:[%s1 + $0x8] sm:$0xff]
  %v194 = vld [vmem:[%s2] sm:$0xff]
  %v195 = vld [vmem:[%s2 + $0x8] sm:$0xff]
  %v196 = vld [vmem:[%s3] sm:$0xff]
  %v197 = vld [vmem:[%s3 + $0x8] sm:$0xff]
  %v198 = vld [vmem:[%s7] sm:$0x1]
  %v199 = vmul.f32 %v184, %v184
  %v200 = vmul.f32 %v189, %v189
  %vm201 = vcmask 261120
  %v202 = vsel %vm201, %v199, 0.0
  %203 = vadd.xlane.f32.xlu0 %v202
  %v204 = vpop.xlane.xlu0 %203
  %v205 = vsel %vm201, %v200, 0.0
  %206 = vadd.xlane.f32.xlu0 %v205
  %v207 = vpop.xlane.xlu0 %206
  %v208 = vrcp.pop 32.0
  %v209 = vmul.f32 %v204, %v208
  %v210 = vmul.f32 %v207, %v208
  %v211 = vadd.f32 %v209, 1e-06
  %v212 = vadd.f32 %v210, 1e-06
  %v213 = vrsqrt.pop %v211
  %v214 = vrsqrt.pop %v212
  %v215 = vmul.f32 %v184, %v213
  %v216 = vmul.f32 %v189, %v214
  %v218 = vlaneseq
  %v219 = vshrl.u32 %v218, 7
  %v220 = vsub.s32 0, %v219
  %v221 = vrot.slane %v198, %v220
  %v223 = vmul.f32 %v215, %v221
  %v224 = vmul.f32 %v216, %v221
  %v225 = vld [vmem:[%s8] sm:$0xff]
  %v226 = vld [vmem:[%s8 + $0x8] sm:$0xff]
  %v227 = vld [vmem:[%s8 + $0x10] sm:$0xff]
  %v228 = vld [vmem:[%s8 + $0x18] sm:$0xff]
  %v230 = vsel %vm201, %v223, 0
  %v233 = vsel %vm201, %v224, 0
  %235 = vmatprep.subr.mxu0 0.0
  %236 = vmatpush1.msra.mxu0 %v225
  %237 = vmatprep.subr.mxu0 0.0
  %238 = vmatpush1.msra.mxu0 %v226
  %239 = vmatprep.subr.mxu0 0.0
  %240 = vmatpush1.msra.mxu0 %v227
  %241 = vmatprep.subr.mxu0 0.0
  %242 = vmatpush1.msra.mxu0 %v228
  %243 = vmatprep.subr.mxu0 0.0
  %244 = vmatpush1.msra.mxu0 0.0
  %245 = vmatprep.subr.mxu0 0.0
  %246 = vmatpush1.msra.mxu0 0.0
  %247 = vmatprep.subr.mxu0 0.0
  %248 = vmatpush1.msra.mxu0 0.0
  %249 = vmatprep.subr.mxu0 0.0
  %250 = vmatpush1.msra.mxu0 0.0
  %251 = vmatprep.subr.mxu0 0.0
  %252 = vmatpush1.msra.mxu0 0.0
  %253 = vmatprep.subr.mxu0 0.0
  %254 = vmatpush1.msra.mxu0 0.0
  %255 = vmatprep.subr.mxu0 0.0
  %256 = vmatpush1.msra.mxu0 0.0
  %257 = vmatprep.subr.mxu0 0.0
  %258 = vmatpush1.msra.mxu0 0.0
  %259 = vmatprep.subr.mxu0 0.0
  %260 = vmatpush1.msra.mxu0 0.0
  %261 = vmatprep.subr.mxu0 0.0
  %262 = vmatpush1.msra.mxu0 0.0
  %263 = vmatprep.subr.mxu0 0.0
  %264 = vmatpush1.msra.mxu0 0.0
  %265 = vmatprep.subr.mxu0 0.0
  %266 = vmatpush1.msra.mxu0 0.0
  %267 = vmatprep.subr.mxu0 0.0
  %268 = vmatpush1.msra.mxu0 0.0
  %269 = vmatprep.subr.mxu0 0.0
  %270 = vmatpush1.msra.mxu0 0.0
  %271 = vmatprep.subr.mxu0 0.0
  %272 = vmatpush1.msra.mxu0 0.0
  %273 = vmatprep.subr.mxu0 0.0
  %274 = vmatpush1.msra.mxu0 0.0
  %275 = vmatprep.subr.mxu0 0.0
  %276 = vmatpush1.msra.mxu0 0.0
  %277 = vmatprep.subr.mxu0 0.0
  %278 = vmatpush1.msra.mxu0 0.0
  %279 = vmatprep.subr.mxu0 0.0
  %280 = vmatpush1.msra.mxu0 0.0
  %281 = vmatprep.subr.mxu0 0.0
  %282 = vmatpush1.msra.mxu0 0.0
  %283 = vmatprep.subr.mxu0 0.0
  %284 = vmatpush1.msra.mxu0 0.0
  %285 = vmatprep.subr.mxu0 0.0
  %286 = vmatpush1.msra.mxu0 0.0
  %287 = vmatprep.subr.mxu0 0.0
  %288 = vmatpush1.msra.mxu0 0.0
  %289 = vmatprep.subr.mxu0 0.0
  %290 = vmatpush1.msra.mxu0 0.0
  %291 = vmatprep.subr.mxu0 0.0
  %292 = vmatpush1.msra.mxu0 0.0
  %293 = vmatprep.subr.mxu0 0.0
  %294 = vmatpush1.msra.mxu0 0.0
  %295 = vmatprep.subr.mxu0 0.0
  %296 = vmatpush1.msra.mxu0 0.0
  %297 = vmatprep.subr.mxu0 0.0
  %298 = vmatpush1.msra.mxu0 0.0
  %299 = vmatprep.mubr.f32.mxu0 0.0
  %300 = vmatmul.mubr.f32.gmra.mrb[0].mxu0 %v230
  %v301 = vpop.f32.mrb[0].mxu0
  %v302 = vadd.f32 0.0, %v301
  %v303 = vpop.f32.mrb[0].mxu0
  %304 = vmatprep.mubr.f32.mxu0 0.0
  %305 = vmatmul.mubr.f32.gmra.mrb[0].mxu0 %v233
  %v306 = vpop.f32.mrb[0].mxu0
  %v307 = vadd.f32 0.0, %v306
  %v308 = vpop.f32.mrb[0].mxu0
  %309 = vdwg.mxu0
  %v310 = vsub.f32 0.0, %v302
  %v311 = vsub.f32 0.0, %v307
  %314 = vrot.lane.b32.xlu0 %v310, 92
  %v315 = vpop.permute.xlu0 %314
  %316 = vrot.lane.b32.xlu0 %v311, 92
  %v317 = vpop.permute.xlu0 %316
  %322 = vrot.lane.b32.xlu0 %v302, 100
  %v323 = vpop.permute.xlu0 %322
  %324 = vrot.lane.b32.xlu0 %v307, 100
  %v325 = vpop.permute.xlu0 %324
  %vm328 = vcmask 31744
  %v329 = vsel %vm328, %v315, %v323
  %v330 = vsel %vm328, %v317, %v325
  %333 = vrot.lane.b32.xlu0 %v192, 32
  %v334 = vpop.permute.xlu0 %333
  %335 = vrot.lane.b32.xlu0 %v193, 32
  %v336 = vpop.permute.xlu0 %335
  %v339 = vmul.f32 %v302, %v334
  %v340 = vmul.f32 %v307, %v336
  %v341 = vmul.f32 %v329, %v194
  %v342 = vmul.f32 %v330, %v195
  %345 = vrot.lane.b32.xlu0 %v341, 32
  %v346 = vpop.permute.xlu0 %345
  %347 = vrot.lane.b32.xlu0 %v342, 32
  %v348 = vpop.permute.xlu0 %347
  %v351 = vadd.f32 %v339, %v346
  %v352 = vadd.f32 %v340, %v348
  %353 = vrot.lane.b32.xlu0 %v310, 84
  %v354 = vpop.permute.xlu0 %353
  %355 = vrot.lane.b32.xlu0 %v311, 84
  %v356 = vpop.permute.xlu0 %355
  %359 = vrot.lane.b32.xlu0 %v302, 92
  %v360 = vpop.permute.xlu0 %359
  %361 = vrot.lane.b32.xlu0 %v307, 92
  %v362 = vpop.permute.xlu0 %361
  %v365 = vsel %vm328, %v354, %v360
  %v366 = vsel %vm328, %v356, %v362
  %367 = vrot.lane.b32.xlu0 %v192, 40
  %v368 = vpop.permute.xlu0 %367
  %369 = vrot.lane.b32.xlu0 %v193, 40
  %v370 = vpop.permute.xlu0 %369
  %v373 = vmul.f32 %v302, %v368
  %v374 = vmul.f32 %v307, %v370
  %v375 = vmul.f32 %v365, %v194
  %v376 = vmul.f32 %v366, %v195
  %379 = vrot.lane.b32.xlu0 %v375, 40
  %v380 = vpop.permute.xlu0 %379
  %381 = vrot.lane.b32.xlu0 %v376, 40
  %v382 = vpop.permute.xlu0 %381
  %v385 = vadd.f32 %v373, %v380
  %v386 = vadd.f32 %v374, %v382
  %387 = vrot.lane.b32.xlu0 %v310, 124
  %v388 = vpop.permute.xlu0 %387
  %389 = vrot.lane.b32.xlu0 %v311, 124
  %v390 = vpop.permute.xlu0 %389
  %393 = vrot.lane.b32.xlu0 %v302, 4
  %v394 = vpop.permute.xlu0 %393
  %395 = vrot.lane.b32.xlu0 %v307, 4
  %v396 = vpop.permute.xlu0 %395
  %v399 = vsel %vm328, %v388, %v394
  %v400 = vsel %vm328, %v390, %v396
  %v401 = vmul.f32 %v302, %v192
  %v402 = vmul.f32 %v307, %v193
  %v403 = vmul.f32 %v399, %v194
  %v404 = vmul.f32 %v400, %v195
  %v405 = vadd.f32 %v401, %v403
  %v406 = vadd.f32 %v402, %v404
  %409 = vrot.lane.b32.xlu0 %v351, 96
  %v410 = vpop.permute.xlu0 %409
  %411 = vrot.lane.b32.xlu0 %v352, 96
  %v412 = vpop.permute.xlu0 %411
  %vm413 = vcmask 64512
  %v415 = vsel %vm413, %v405, 0
  %v418 = vsel %vm413, %v406, 0
  %v420 = vsel %vm413, %v410, 0
  %v422 = vsel %vm413, %v412, 0
  %424 = vmatprep.subr.mxu0 0.0
  %425 = vmatpush1.xpose.msra.mxu0 %v420
  %426 = vmatprep.subr.mxu0 0.0
  %427 = vmatpush1.xpose.msra.mxu0 %v422
  %428 = vmatprep.subr.mxu0 0.0
  %429 = vmatpush1.xpose.msra.mxu0 0.0
  %430 = vmatprep.subr.mxu0 0.0
  %431 = vmatpush1.xpose.msra.mxu0 0.0
  %432 = vmatprep.subr.mxu0 0.0
  %433 = vmatpush1.xpose.msra.mxu0 0.0
  %434 = vmatprep.subr.mxu0 0.0
  %435 = vmatpush1.xpose.msra.mxu0 0.0
  %436 = vmatprep.subr.mxu0 0.0
  %437 = vmatpush1.xpose.msra.mxu0 0.0
  %438 = vmatprep.subr.mxu0 0.0
  %439 = vmatpush1.xpose.msra.mxu0 0.0
  %440 = vmatprep.subr.mxu0 0.0
  %441 = vmatpush1.xpose.msra.mxu0 0.0
  %442 = vmatprep.subr.mxu0 0.0
  %443 = vmatpush1.xpose.msra.mxu0 0.0
  %444 = vmatprep.subr.mxu0 0.0
  %445 = vmatpush1.xpose.msra.mxu0 0.0
  %446 = vmatprep.subr.mxu0 0.0
  %447 = vmatpush1.xpose.msra.mxu0 0.0
  %448 = vmatprep.subr.mxu0 0.0
  %449 = vmatpush1.xpose.msra.mxu0 0.0
  %450 = vmatprep.subr.mxu0 0.0
  %451 = vmatpush1.xpose.msra.mxu0 0.0
  %452 = vmatprep.subr.mxu0 0.0
  %453 = vmatpush1.xpose.msra.mxu0 0.0
  %454 = vmatprep.subr.mxu0 0.0
  %455 = vmatpush1.xpose.msra.mxu0 0.0
  %456 = vmatprep.subr.mxu0 0.0
  %457 = vmatpush1.xpose.msra.mxu0 0.0
  %458 = vmatprep.subr.mxu0 0.0
  %459 = vmatpush1.xpose.msra.mxu0 0.0
  %460 = vmatprep.subr.mxu0 0.0
  %461 = vmatpush1.xpose.msra.mxu0 0.0
  %462 = vmatprep.subr.mxu0 0.0
  %463 = vmatpush1.xpose.msra.mxu0 0.0
  %464 = vmatprep.subr.mxu0 0.0
  %465 = vmatpush1.xpose.msra.mxu0 0.0
  %466 = vmatprep.subr.mxu0 0.0
  %467 = vmatpush1.xpose.msra.mxu0 0.0
  %468 = vmatprep.subr.mxu0 0.0
  %469 = vmatpush1.xpose.msra.mxu0 0.0
  %470 = vmatprep.subr.mxu0 0.0
  %471 = vmatpush1.xpose.msra.mxu0 0.0
  %472 = vmatprep.subr.mxu0 0.0
  %473 = vmatpush1.xpose.msra.mxu0 0.0
  %474 = vmatprep.subr.mxu0 0.0
  %475 = vmatpush1.xpose.msra.mxu0 0.0
  %476 = vmatprep.subr.mxu0 0.0
  %477 = vmatpush1.xpose.msra.mxu0 0.0
  %478 = vmatprep.subr.mxu0 0.0
  %479 = vmatpush1.xpose.msra.mxu0 0.0
  %480 = vmatprep.subr.mxu0 0.0
  %481 = vmatpush1.xpose.msra.mxu0 0.0
  %482 = vmatprep.subr.mxu0 0.0
  %483 = vmatpush1.xpose.msra.mxu0 0.0
  %484 = vmatprep.subr.mxu0 0.0
  %485 = vmatpush1.xpose.msra.mxu0 0.0
  %486 = vmatprep.subr.mxu0 0.0
  %487 = vmatpush1.xpose.msra.mxu0 0.0
  %488 = vmatprep.mubr.f32.mxu0 0.0
  %489 = vmatmul.mubr.f32.gmra.mrb[0].mxu0 %v415
  %v490 = vpop.f32.mrb[0].mxu0
  %v491 = vadd.f32 0.0, %v490
  %v492 = vpop.f32.mrb[0].mxu0
  %493 = vmatprep.mubr.f32.mxu0 0.0
  %494 = vmatmul.mubr.f32.gmra.mrb[0].mxu0 %v418
  %v495 = vpop.f32.mrb[0].mxu0
  %v496 = vadd.f32 0.0, %v495
  %v497 = vpop.f32.mrb[0].mxu0
  %498 = vdwg.mxu0
  %v499 = vmul.f32 %v491, 0.35355338
  %v500 = vmul.f32 %v496, 0.35355338
  %v501 = vadd.f32 %v499, %v196
  %v502 = vadd.f32 %v500, %v197
  %vm503 = vcmask 130048
  %v504 = vsel %vm503, %v501, -inf
  %505 = vmax.xlane.f32.xlu0 %v504
  %v506 = vpop.xlane.xlu0 %505
  %v507 = vsel %vm503, %v502, -inf
  %508 = vmax.xlane.f32.xlu0 %v507
  %v509 = vpop.xlane.xlu0 %508
  %v510 = vsub.f32 %v501, %v506
  %v511 = vsub.f32 %v502, %v509
  %v512 = vmul.f32 %v510, 1.442695
  %v513 = vpow.pop %v512
  %v514 = vmul.f32 %v511, 1.442695
  %v515 = vpow.pop %v514
  %v516 = vsel %vm503, %v513, 0.0
  %517 = vadd.xlane.f32.xlu0 %v516
  %v518 = vpop.xlane.xlu0 %517
  %v519 = vsel %vm503, %v515, 0.0
  %520 = vadd.xlane.f32.xlu0 %v519
  %v521 = vpop.xlane.xlu0 %520
  %v522 = vrcp.pop %v518
  %v523 = vrcp.pop %v521
  %v524 = vmul.f32 %v513, %v522
  %v525 = vmul.f32 %v515, %v523
  %526 = vrot.lane.b32.xlu0 %v302, 80
  %v527 = vpop.permute.xlu0 %526
  %528 = vrot.lane.b32.xlu0 %v307, 80
  %v529 = vpop.permute.xlu0 %528
  %v533 = vsel %vm503, %v524, 0
  %v536 = vsel %vm503, %v525, 0
  %538 = vmatprep.subr.mxu0 0.0
  %539 = vmatpush1.msra.mxu0 %v527
  %540 = vmatprep.subr.mxu0 0.0
  %541 = vmatpush1.msra.mxu0 %v529
  %542 = vmatprep.subr.mxu0 0.0
  %543 = vmatpush1.msra.mxu0 0.0
  %544 = vmatprep.subr.mxu0 0.0
  %545 = vmatpush1.msra.mxu0 0.0
  %546 = vmatprep.subr.mxu0 0.0
  %547 = vmatpush1.msra.mxu0 0.0
  %548 = vmatprep.subr.mxu0 0.0
  %549 = vmatpush1.msra.mxu0 0.0
  %550 = vmatprep.subr.mxu0 0.0
  %551 = vmatpush1.msra.mxu0 0.0
  %552 = vmatprep.subr.mxu0 0.0
  %553 = vmatpush1.msra.mxu0 0.0
  %554 = vmatprep.subr.mxu0 0.0
  %555 = vmatpush1.msra.mxu0 0.0
  %556 = vmatprep.subr.mxu0 0.0
  %557 = vmatpush1.msra.mxu0 0.0
  %558 = vmatprep.subr.mxu0 0.0
  %559 = vmatpush1.msra.mxu0 0.0
  %560 = vmatprep.subr.mxu0 0.0
  %561 = vmatpush1.msra.mxu0 0.0
  %562 = vmatprep.subr.mxu0 0.0
  %563 = vmatpush1.msra.mxu0 0.0
  %564 = vmatprep.subr.mxu0 0.0
  %565 = vmatpush1.msra.mxu0 0.0
  %566 = vmatprep.subr.mxu0 0.0
  %567 = vmatpush1.msra.mxu0 0.0
  %568 = vmatprep.subr.mxu0 0.0
  %569 = vmatpush1.msra.mxu0 0.0
  %570 = vmatprep.subr.mxu0 0.0
  %571 = vmatpush1.msra.mxu0 0.0
  %572 = vmatprep.subr.mxu0 0.0
  %573 = vmatpush1.msra.mxu0 0.0
  %574 = vmatprep.subr.mxu0 0.0
  %575 = vmatpush1.msra.mxu0 0.0
  %576 = vmatprep.subr.mxu0 0.0
  %577 = vmatpush1.msra.mxu0 0.0
  %578 = vmatprep.subr.mxu0 0.0
  %579 = vmatpush1.msra.mxu0 0.0
  %580 = vmatprep.subr.mxu0 0.0
  %581 = vmatpush1.msra.mxu0 0.0
  %582 = vmatprep.subr.mxu0 0.0
  %583 = vmatpush1.msra.mxu0 0.0
  %584 = vmatprep.subr.mxu0 0.0
  %585 = vmatpush1.msra.mxu0 0.0
  %586 = vmatprep.subr.mxu0 0.0
  %587 = vmatpush1.msra.mxu0 0.0
  %588 = vmatprep.subr.mxu0 0.0
  %589 = vmatpush1.msra.mxu0 0.0
  %590 = vmatprep.subr.mxu0 0.0
  %591 = vmatpush1.msra.mxu0 0.0
  %592 = vmatprep.subr.mxu0 0.0
  %593 = vmatpush1.msra.mxu0 0.0
  %594 = vmatprep.subr.mxu0 0.0
  %595 = vmatpush1.msra.mxu0 0.0
  %596 = vmatprep.subr.mxu0 0.0
  %597 = vmatpush1.msra.mxu0 0.0
  %598 = vmatprep.subr.mxu0 0.0
  %599 = vmatpush1.msra.mxu0 0.0
  %600 = vmatprep.subr.mxu0 0.0
  %601 = vmatpush1.msra.mxu0 0.0
  %602 = vmatprep.mubr.f32.mxu0 0.0
  %603 = vmatmul.mubr.f32.gmra.mrb[0].mxu0 %v533
  %v604 = vpop.f32.mrb[0].mxu0
  %v605 = vadd.f32 0.0, %v604
  %v606 = vpop.f32.mrb[0].mxu0
  %607 = vmatprep.mubr.f32.mxu0 0.0
  %608 = vmatmul.mubr.f32.gmra.mrb[0].mxu0 %v536
  %v609 = vpop.f32.mrb[0].mxu0
  %v610 = vadd.f32 0.0, %v609
  %v611 = vpop.f32.mrb[0].mxu0
  %612 = vdwg.mxu0
  %613 = vrot.lane.b32.xlu0 %v310, 116
  %v614 = vpop.permute.xlu0 %613
  %615 = vrot.lane.b32.xlu0 %v311, 116
  %v616 = vpop.permute.xlu0 %615
  %619 = vrot.lane.b32.xlu0 %v302, 124
  %v620 = vpop.permute.xlu0 %619
  %621 = vrot.lane.b32.xlu0 %v307, 124
  %v622 = vpop.permute.xlu0 %621
  %v625 = vsel %vm328, %v614, %v620
  %v626 = vsel %vm328, %v616, %v622
  %627 = vrot.lane.b32.xlu0 %v192, 8
  %v628 = vpop.permute.xlu0 %627
  %629 = vrot.lane.b32.xlu0 %v193, 8
  %v630 = vpop.permute.xlu0 %629
  %v633 = vmul.f32 %v302, %v628
  %v634 = vmul.f32 %v307, %v630
  %v635 = vmul.f32 %v625, %v194
  %v636 = vmul.f32 %v626, %v195
  %639 = vrot.lane.b32.xlu0 %v635, 8
  %v640 = vpop.permute.xlu0 %639
  %641 = vrot.lane.b32.xlu0 %v636, 8
  %v642 = vpop.permute.xlu0 %641
  %v645 = vadd.f32 %v633, %v640
  %v646 = vadd.f32 %v634, %v642
  %649 = vrot.lane.b32.xlu0 %v645, 120
  %v650 = vpop.permute.xlu0 %649
  %651 = vrot.lane.b32.xlu0 %v646, 120
  %v652 = vpop.permute.xlu0 %651
  %v653 = vsel %vm413, %v650, 0
  %v655 = vsel %vm413, %v652, 0
  %657 = vmatprep.subr.mxu0 0.0
  %658 = vmatpush1.xpose.msra.mxu0 %v420
  %659 = vmatprep.subr.mxu0 0.0
  %660 = vmatpush1.xpose.msra.mxu0 %v422
  %661 = vmatprep.subr.mxu0 0.0
  %662 = vmatpush1.xpose.msra.mxu0 0.0
  %663 = vmatprep.subr.mxu0 0.0
  %664 = vmatpush1.xpose.msra.mxu0 0.0
  %665 = vmatprep.subr.mxu0 0.0
  %666 = vmatpush1.xpose.msra.mxu0 0.0
  %667 = vmatprep.subr.mxu0 0.0
  %668 = vmatpush1.xpose.msra.mxu0 0.0
  %669 = vmatprep.subr.mxu0 0.0
  %670 = vmatpush1.xpose.msra.mxu0 0.0
  %671 = vmatprep.subr.mxu0 0.0
  %672 = vmatpush1.xpose.msra.mxu0 0.0
  %673 = vmatprep.subr.mxu0 0.0
  %674 = vmatpush1.xpose.msra.mxu0 0.0
  %675 = vmatprep.subr.mxu0 0.0
  %676 = vmatpush1.xpose.msra.mxu0 0.0
  %677 = vmatprep.subr.mxu0 0.0
  %678 = vmatpush1.xpose.msra.mxu0 0.0
  %679 = vmatprep.subr.mxu0 0.0
  %680 = vmatpush1.xpose.msra.mxu0 0.0
  %681 = vmatprep.subr.mxu0 0.0
  %682 = vmatpush1.xpose.msra.mxu0 0.0
  %683 = vmatprep.subr.mxu0 0.0
  %684 = vmatpush1.xpose.msra.mxu0 0.0
  %685 = vmatprep.subr.mxu0 0.0
  %686 = vmatpush1.xpose.msra.mxu0 0.0
  %687 = vmatprep.subr.mxu0 0.0
  %688 = vmatpush1.xpose.msra.mxu0 0.0
  %689 = vmatprep.subr.mxu0 0.0
  %690 = vmatpush1.xpose.msra.mxu0 0.0
  %691 = vmatprep.subr.mxu0 0.0
  %692 = vmatpush1.xpose.msra.mxu0 0.0
  %693 = vmatprep.subr.mxu0 0.0
  %694 = vmatpush1.xpose.msra.mxu0 0.0
  %695 = vmatprep.subr.mxu0 0.0
  %696 = vmatpush1.xpose.msra.mxu0 0.0
  %697 = vmatprep.subr.mxu0 0.0
  %698 = vmatpush1.xpose.msra.mxu0 0.0
  %699 = vmatprep.subr.mxu0 0.0
  %700 = vmatpush1.xpose.msra.mxu0 0.0
  %701 = vmatprep.subr.mxu0 0.0
  %702 = vmatpush1.xpose.msra.mxu0 0.0
  %703 = vmatprep.subr.mxu0 0.0
  %704 = vmatpush1.xpose.msra.mxu0 0.0
  %705 = vmatprep.subr.mxu0 0.0
  %706 = vmatpush1.xpose.msra.mxu0 0.0
  %707 = vmatprep.subr.mxu0 0.0
  %708 = vmatpush1.xpose.msra.mxu0 0.0
  %709 = vmatprep.subr.mxu0 0.0
  %710 = vmatpush1.xpose.msra.mxu0 0.0
  %711 = vmatprep.subr.mxu0 0.0
  %712 = vmatpush1.xpose.msra.mxu0 0.0
  %713 = vmatprep.subr.mxu0 0.0
  %714 = vmatpush1.xpose.msra.mxu0 0.0
  %715 = vmatprep.subr.mxu0 0.0
  %716 = vmatpush1.xpose.msra.mxu0 0.0
  %717 = vmatprep.subr.mxu0 0.0
  %718 = vmatpush1.xpose.msra.mxu0 0.0
  %719 = vmatprep.subr.mxu0 0.0
  %720 = vmatpush1.xpose.msra.mxu0 0.0
  %721 = vmatprep.mubr.f32.mxu0 0.0
  %722 = vmatmul.mubr.f32.gmra.mrb[0].mxu0 %v653
  %v723 = vpop.f32.mrb[0].mxu0
  %v724 = vadd.f32 0.0, %v723
  %v725 = vpop.f32.mrb[0].mxu0
  %726 = vmatprep.mubr.f32.mxu0 0.0
  %727 = vmatmul.mubr.f32.gmra.mrb[0].mxu0 %v655
  %v728 = vpop.f32.mrb[0].mxu0
  %v729 = vadd.f32 0.0, %v728
  %v730 = vpop.f32.mrb[0].mxu0
  %731 = vdwg.mxu0
  %v732 = vmul.f32 %v724, 0.35355338
  %v733 = vmul.f32 %v729, 0.35355338
  %v734 = vadd.f32 %v732, %v196
  %v735 = vadd.f32 %v733, %v197
  %v736 = vsel %vm503, %v734, -inf
  %737 = vmax.xlane.f32.xlu0 %v736
  %v738 = vpop.xlane.xlu0 %737
  %v739 = vsel %vm503, %v735, -inf
  %740 = vmax.xlane.f32.xlu0 %v739
  %v741 = vpop.xlane.xlu0 %740
  %v742 = vsub.f32 %v734, %v738
  %v743 = vsub.f32 %v735, %v741
  %v744 = vmul.f32 %v742, 1.442695
  %v745 = vpow.pop %v744
  %v746 = vmul.f32 %v743, 1.442695
  %v747 = vpow.pop %v746
  %v748 = vsel %vm503, %v745, 0.0
  %749 = vadd.xlane.f32.xlu0 %v748
  %v750 = vpop.xlane.xlu0 %749
  %v751 = vsel %vm503, %v747, 0.0
  %752 = vadd.xlane.f32.xlu0 %v751
  %v753 = vpop.xlane.xlu0 %752
  %v754 = vrcp.pop %v750
  %v755 = vrcp.pop %v753
  %v756 = vmul.f32 %v745, %v754
  %v757 = vmul.f32 %v747, %v755
  %v759 = vsel %vm503, %v756, 0
  %v762 = vsel %vm503, %v757, 0
  %764 = vmatprep.subr.mxu0 0.0
  %765 = vmatpush1.msra.mxu0 %v527
  %766 = vmatprep.subr.mxu0 0.0
  %767 = vmatpush1.msra.mxu0 %v529
  %768 = vmatprep.subr.mxu0 0.0
  %769 = vmatpush1.msra.mxu0 0.0
  %770 = vmatprep.subr.mxu0 0.0
  %771 = vmatpush1.msra.mxu0 0.0
  %772 = vmatprep.subr.mxu0 0.0
  %773 = vmatpush1.msra.mxu0 0.0
  %774 = vmatprep.subr.mxu0 0.0
  %775 = vmatpush1.msra.mxu0 0.0
  %776 = vmatprep.subr.mxu0 0.0
  %777 = vmatpush1.msra.mxu0 0.0
  %778 = vmatprep.subr.mxu0 0.0
  %779 = vmatpush1.msra.mxu0 0.0
  %780 = vmatprep.subr.mxu0 0.0
  %781 = vmatpush1.msra.mxu0 0.0
  %782 = vmatprep.subr.mxu0 0.0
  %783 = vmatpush1.msra.mxu0 0.0
  %784 = vmatprep.subr.mxu0 0.0
  %785 = vmatpush1.msra.mxu0 0.0
  %786 = vmatprep.subr.mxu0 0.0
  %787 = vmatpush1.msra.mxu0 0.0
  %788 = vmatprep.subr.mxu0 0.0
  %789 = vmatpush1.msra.mxu0 0.0
  %790 = vmatprep.subr.mxu0 0.0
  %791 = vmatpush1.msra.mxu0 0.0
  %792 = vmatprep.subr.mxu0 0.0
  %793 = vmatpush1.msra.mxu0 0.0
  %794 = vmatprep.subr.mxu0 0.0
  %795 = vmatpush1.msra.mxu0 0.0
  %796 = vmatprep.subr.mxu0 0.0
  %797 = vmatpush1.msra.mxu0 0.0
  %798 = vmatprep.subr.mxu0 0.0
  %799 = vmatpush1.msra.mxu0 0.0
  %800 = vmatprep.subr.mxu0 0.0
  %801 = vmatpush1.msra.mxu0 0.0
  %802 = vmatprep.subr.mxu0 0.0
  %803 = vmatpush1.msra.mxu0 0.0
  %804 = vmatprep.subr.mxu0 0.0
  %805 = vmatpush1.msra.mxu0 0.0
  %806 = vmatprep.subr.mxu0 0.0
  %807 = vmatpush1.msra.mxu0 0.0
  %808 = vmatprep.subr.mxu0 0.0
  %809 = vmatpush1.msra.mxu0 0.0
  %810 = vmatprep.subr.mxu0 0.0
  %811 = vmatpush1.msra.mxu0 0.0
  %812 = vmatprep.subr.mxu0 0.0
  %813 = vmatpush1.msra.mxu0 0.0
  %814 = vmatprep.subr.mxu0 0.0
  %815 = vmatpush1.msra.mxu0 0.0
  %816 = vmatprep.subr.mxu0 0.0
  %817 = vmatpush1.msra.mxu0 0.0
  %818 = vmatprep.subr.mxu0 0.0
  %819 = vmatpush1.msra.mxu0 0.0
  %820 = vmatprep.subr.mxu0 0.0
  %821 = vmatpush1.msra.mxu0 0.0
  %822 = vmatprep.subr.mxu0 0.0
  %823 = vmatpush1.msra.mxu0 0.0
  %824 = vmatprep.subr.mxu0 0.0
  %825 = vmatpush1.msra.mxu0 0.0
  %826 = vmatprep.subr.mxu0 0.0
  %827 = vmatpush1.msra.mxu0 0.0
  %828 = vmatprep.mubr.f32.mxu0 0.0
  %829 = vmatmul.mubr.f32.gmra.mrb[0].mxu0 %v759
  %v830 = vpop.f32.mrb[0].mxu0
  %v831 = vadd.f32 0.0, %v830
  %v832 = vpop.f32.mrb[0].mxu0
  %833 = vmatprep.mubr.f32.mxu0 0.0
  %834 = vmatmul.mubr.f32.gmra.mrb[0].mxu0 %v762
  %v835 = vpop.f32.mrb[0].mxu0
  %v836 = vadd.f32 0.0, %v835
  %v837 = vpop.f32.mrb[0].mxu0
  %838 = vdwg.mxu0
  %839 = vrot.lane.b32.xlu0 %v310, 108
  %v840 = vpop.permute.xlu0 %839
  %841 = vrot.lane.b32.xlu0 %v311, 108
  %v842 = vpop.permute.xlu0 %841
  %845 = vrot.lane.b32.xlu0 %v302, 116
  %v846 = vpop.permute.xlu0 %845
  %847 = vrot.lane.b32.xlu0 %v307, 116
  %v848 = vpop.permute.xlu0 %847
  %v851 = vsel %vm328, %v840, %v846
  %v852 = vsel %vm328, %v842, %v848
  %853 = vrot.lane.b32.xlu0 %v192, 16
  %v854 = vpop.permute.xlu0 %853
  %855 = vrot.lane.b32.xlu0 %v193, 16
  %v856 = vpop.permute.xlu0 %855
  %v859 = vmul.f32 %v302, %v854
  %v860 = vmul.f32 %v307, %v856
  %v861 = vmul.f32 %v851, %v194
  %v862 = vmul.f32 %v852, %v195
  %865 = vrot.lane.b32.xlu0 %v861, 16
  %v866 = vpop.permute.xlu0 %865
  %867 = vrot.lane.b32.xlu0 %v862, 16
  %v868 = vpop.permute.xlu0 %867
  %v871 = vadd.f32 %v859, %v866
  %v872 = vadd.f32 %v860, %v868
  %875 = vrot.lane.b32.xlu0 %v871, 112
  %v876 = vpop.permute.xlu0 %875
  %877 = vrot.lane.b32.xlu0 %v872, 112
  %v878 = vpop.permute.xlu0 %877
  %881 = vrot.lane.b32.xlu0 %v385, 88
  %v882 = vpop.permute.xlu0 %881
  %883 = vrot.lane.b32.xlu0 %v386, 88
  %v884 = vpop.permute.xlu0 %883
  %v885 = vsel %vm413, %v876, 0
  %v887 = vsel %vm413, %v878, 0
  %v889 = vsel %vm413, %v882, 0
  %v891 = vsel %vm413, %v884, 0
  %893 = vmatprep.subr.mxu0 0.0
  %894 = vmatpush1.xpose.msra.mxu0 %v889
  %895 = vmatprep.subr.mxu0 0.0
  %896 = vmatpush1.xpose.msra.mxu0 %v891
  %897 = vmatprep.subr.mxu0 0.0
  %898 = vmatpush1.xpose.msra.mxu0 0.0
  %899 = vmatprep.subr.mxu0 0.0
  %900 = vmatpush1.xpose.msra.mxu0 0.0
  %901 = vmatprep.subr.mxu0 0.0
  %902 = vmatpush1.xpose.msra.mxu0 0.0
  %903 = vmatprep.subr.mxu0 0.0
  %904 = vmatpush1.xpose.msra.mxu0 0.0
  %905 = vmatprep.subr.mxu0 0.0
  %906 = vmatpush1.xpose.msra.mxu0 0.0
  %907 = vmatprep.subr.mxu0 0.0
  %908 = vmatpush1.xpose.msra.mxu0 0.0
  %909 = vmatprep.subr.mxu0 0.0
  %910 = vmatpush1.xpose.msra.mxu0 0.0
  %911 = vmatprep.subr.mxu0 0.0
  %912 = vmatpush1.xpose.msra.mxu0 0.0
  %913 = vmatprep.subr.mxu0 0.0
  %914 = vmatpush1.xpose.msra.mxu0 0.0
  %915 = vmatprep.subr.mxu0 0.0
  %916 = vmatpush1.xpose.msra.mxu0 0.0
  %917 = vmatprep.subr.mxu0 0.0
  %918 = vmatpush1.xpose.msra.mxu0 0.0
  %919 = vmatprep.subr.mxu0 0.0
  %920 = vmatpush1.xpose.msra.mxu0 0.0
  %921 = vmatprep.subr.mxu0 0.0
  %922 = vmatpush1.xpose.msra.mxu0 0.0
  %923 = vmatprep.subr.mxu0 0.0
  %924 = vmatpush1.xpose.msra.mxu0 0.0
  %925 = vmatprep.subr.mxu0 0.0
  %926 = vmatpush1.xpose.msra.mxu0 0.0
  %927 = vmatprep.subr.mxu0 0.0
  %928 = vmatpush1.xpose.msra.mxu0 0.0
  %929 = vmatprep.subr.mxu0 0.0
  %930 = vmatpush1.xpose.msra.mxu0 0.0
  %931 = vmatprep.subr.mxu0 0.0
  %932 = vmatpush1.xpose.msra.mxu0 0.0
  %933 = vmatprep.subr.mxu0 0.0
  %934 = vmatpush1.xpose.msra.mxu0 0.0
  %935 = vmatprep.subr.mxu0 0.0
  %936 = vmatpush1.xpose.msra.mxu0 0.0
  %937 = vmatprep.subr.mxu0 0.0
  %938 = vmatpush1.xpose.msra.mxu0 0.0
  %939 = vmatprep.subr.mxu0 0.0
  %940 = vmatpush1.xpose.msra.mxu0 0.0
  %941 = vmatprep.subr.mxu0 0.0
  %942 = vmatpush1.xpose.msra.mxu0 0.0
  %943 = vmatprep.subr.mxu0 0.0
  %944 = vmatpush1.xpose.msra.mxu0 0.0
  %945 = vmatprep.subr.mxu0 0.0
  %946 = vmatpush1.xpose.msra.mxu0 0.0
  %947 = vmatprep.subr.mxu0 0.0
  %948 = vmatpush1.xpose.msra.mxu0 0.0
  %949 = vmatprep.subr.mxu0 0.0
  %950 = vmatpush1.xpose.msra.mxu0 0.0
  %951 = vmatprep.subr.mxu0 0.0
  %952 = vmatpush1.xpose.msra.mxu0 0.0
  %953 = vmatprep.subr.mxu0 0.0
  %954 = vmatpush1.xpose.msra.mxu0 0.0
  %955 = vmatprep.subr.mxu0 0.0
  %956 = vmatpush1.xpose.msra.mxu0 0.0
  %957 = vmatprep.mubr.f32.mxu0 0.0
  %958 = vmatmul.mubr.f32.gmra.mrb[0].mxu0 %v885
  %v959 = vpop.f32.mrb[0].mxu0
  %v960 = vadd.f32 0.0, %v959
  %v961 = vpop.f32.mrb[0].mxu0
  %962 = vmatprep.mubr.f32.mxu0 0.0
  %963 = vmatmul.mubr.f32.gmra.mrb[0].mxu0 %v887
  %v964 = vpop.f32.mrb[0].mxu0
  %v965 = vadd.f32 0.0, %v964
  %v966 = vpop.f32.mrb[0].mxu0
  %967 = vdwg.mxu0
  %v968 = vmul.f32 %v960, 0.35355338
  %v969 = vmul.f32 %v965, 0.35355338
  %v970 = vadd.f32 %v968, %v196
  %v971 = vadd.f32 %v969, %v197
  %v972 = vsel %vm503, %v970, -inf
  %973 = vmax.xlane.f32.xlu0 %v972
  %v974 = vpop.xlane.xlu0 %973
  %v975 = vsel %vm503, %v971, -inf
  %976 = vmax.xlane.f32.xlu0 %v975
  %v977 = vpop.xlane.xlu0 %976
  %v978 = vsub.f32 %v970, %v974
  %v979 = vsub.f32 %v971, %v977
  %v980 = vmul.f32 %v978, 1.442695
  %v981 = vpow.pop %v980
  %v982 = vmul.f32 %v979, 1.442695
  %v983 = vpow.pop %v982
  %v984 = vsel %vm503, %v981, 0.0
  %985 = vadd.xlane.f32.xlu0 %v984
  %v986 = vpop.xlane.xlu0 %985
  %v987 = vsel %vm503, %v983, 0.0
  %988 = vadd.xlane.f32.xlu0 %v987
  %v989 = vpop.xlane.xlu0 %988
  %v990 = vrcp.pop %v986
  %v991 = vrcp.pop %v989
  %v992 = vmul.f32 %v981, %v990
  %v993 = vmul.f32 %v983, %v991
  %994 = vrot.lane.b32.xlu0 %v302, 72
  %v995 = vpop.permute.xlu0 %994
  %996 = vrot.lane.b32.xlu0 %v307, 72
  %v997 = vpop.permute.xlu0 %996
  %v1001 = vsel %vm503, %v992, 0
  %v1004 = vsel %vm503, %v993, 0
  %1006 = vmatprep.subr.mxu0 0.0
  %1007 = vmatpush1.msra.mxu0 %v995
  %1008 = vmatprep.subr.mxu0 0.0
  %1009 = vmatpush1.msra.mxu0 %v997
  %1010 = vmatprep.subr.mxu0 0.0
  %1011 = vmatpush1.msra.mxu0 0.0
  %1012 = vmatprep.subr.mxu0 0.0
  %1013 = vmatpush1.msra.mxu0 0.0
  %1014 = vmatprep.subr.mxu0 0.0
  %1015 = vmatpush1.msra.mxu0 0.0
  %1016 = vmatprep.subr.mxu0 0.0
  %1017 = vmatpush1.msra.mxu0 0.0
  %1018 = vmatprep.subr.mxu0 0.0
  %1019 = vmatpush1.msra.mxu0 0.0
  %1020 = vmatprep.subr.mxu0 0.0
  %1021 = vmatpush1.msra.mxu0 0.0
  %1022 = vmatprep.subr.mxu0 0.0
  %1023 = vmatpush1.msra.mxu0 0.0
  %1024 = vmatprep.subr.mxu0 0.0
  %1025 = vmatpush1.msra.mxu0 0.0
  %1026 = vmatprep.subr.mxu0 0.0
  %1027 = vmatpush1.msra.mxu0 0.0
  %1028 = vmatprep.subr.mxu0 0.0
  %1029 = vmatpush1.msra.mxu0 0.0
  %1030 = vmatprep.subr.mxu0 0.0
  %1031 = vmatpush1.msra.mxu0 0.0
  %1032 = vmatprep.subr.mxu0 0.0
  %1033 = vmatpush1.msra.mxu0 0.0
  %1034 = vmatprep.subr.mxu0 0.0
  %1035 = vmatpush1.msra.mxu0 0.0
  %1036 = vmatprep.subr.mxu0 0.0
  %1037 = vmatpush1.msra.mxu0 0.0
  %1038 = vmatprep.subr.mxu0 0.0
  %1039 = vmatpush1.msra.mxu0 0.0
  %1040 = vmatprep.subr.mxu0 0.0
  %1041 = vmatpush1.msra.mxu0 0.0
  %1042 = vmatprep.subr.mxu0 0.0
  %1043 = vmatpush1.msra.mxu0 0.0
  %1044 = vmatprep.subr.mxu0 0.0
  %1045 = vmatpush1.msra.mxu0 0.0
  %1046 = vmatprep.subr.mxu0 0.0
  %1047 = vmatpush1.msra.mxu0 0.0
  %1048 = vmatprep.subr.mxu0 0.0
  %1049 = vmatpush1.msra.mxu0 0.0
  %1050 = vmatprep.subr.mxu0 0.0
  %1051 = vmatpush1.msra.mxu0 0.0
  %1052 = vmatprep.subr.mxu0 0.0
  %1053 = vmatpush1.msra.mxu0 0.0
  %1054 = vmatprep.subr.mxu0 0.0
  %1055 = vmatpush1.msra.mxu0 0.0
  %1056 = vmatprep.subr.mxu0 0.0
  %1057 = vmatpush1.msra.mxu0 0.0
  %1058 = vmatprep.subr.mxu0 0.0
  %1059 = vmatpush1.msra.mxu0 0.0
  %1060 = vmatprep.subr.mxu0 0.0
  %1061 = vmatpush1.msra.mxu0 0.0
  %1062 = vmatprep.subr.mxu0 0.0
  %1063 = vmatpush1.msra.mxu0 0.0
  %1064 = vmatprep.subr.mxu0 0.0
  %1065 = vmatpush1.msra.mxu0 0.0
  %1066 = vmatprep.subr.mxu0 0.0
  %1067 = vmatpush1.msra.mxu0 0.0
  %1068 = vmatprep.subr.mxu0 0.0
  %1069 = vmatpush1.msra.mxu0 0.0
  %1070 = vmatprep.mubr.f32.mxu0 0.0
  %1071 = vmatmul.mubr.f32.gmra.mrb[0].mxu0 %v1001
  %v1072 = vpop.f32.mrb[0].mxu0
  %v1073 = vadd.f32 0.0, %v1072
  %v1074 = vpop.f32.mrb[0].mxu0
  %1075 = vmatprep.mubr.f32.mxu0 0.0
  %1076 = vmatmul.mubr.f32.gmra.mrb[0].mxu0 %v1004
  %v1077 = vpop.f32.mrb[0].mxu0
  %v1078 = vadd.f32 0.0, %v1077
  %v1079 = vpop.f32.mrb[0].mxu0
  %1080 = vdwg.mxu0
  %1081 = vrot.lane.b32.xlu0 %v310, 100
  %v1082 = vpop.permute.xlu0 %1081
  %1083 = vrot.lane.b32.xlu0 %v311, 100
  %v1084 = vpop.permute.xlu0 %1083
  %1087 = vrot.lane.b32.xlu0 %v302, 108
  %v1088 = vpop.permute.xlu0 %1087
  %1089 = vrot.lane.b32.xlu0 %v307, 108
  %v1090 = vpop.permute.xlu0 %1089
  %v1093 = vsel %vm328, %v1082, %v1088
  %v1094 = vsel %vm328, %v1084, %v1090
  %1095 = vrot.lane.b32.xlu0 %v192, 24
  %v1096 = vpop.permute.xlu0 %1095
  %1097 = vrot.lane.b32.xlu0 %v193, 24
  %v1098 = vpop.permute.xlu0 %1097
  %v1101 = vmul.f32 %v302, %v1096
  %v1102 = vmul.f32 %v307, %v1098
  %v1103 = vmul.f32 %v1093, %v194
  %v1104 = vmul.f32 %v1094, %v195
  %1107 = vrot.lane.b32.xlu0 %v1103, 24
  %v1108 = vpop.permute.xlu0 %1107
  %1109 = vrot.lane.b32.xlu0 %v1104, 24
  %v1110 = vpop.permute.xlu0 %1109
  %v1113 = vadd.f32 %v1101, %v1108
  %v1114 = vadd.f32 %v1102, %v1110
  %1117 = vrot.lane.b32.xlu0 %v1113, 104
  %v1118 = vpop.permute.xlu0 %1117
  %1119 = vrot.lane.b32.xlu0 %v1114, 104
  %v1120 = vpop.permute.xlu0 %1119
  %v1121 = vsel %vm413, %v1118, 0
  %v1123 = vsel %vm413, %v1120, 0
  %1125 = vmatprep.subr.mxu0 0.0
  %1126 = vmatpush1.xpose.msra.mxu0 %v889
  %1127 = vmatprep.subr.mxu0 0.0
  %1128 = vmatpush1.xpose.msra.mxu0 %v891
  %1129 = vmatprep.subr.mxu0 0.0
  %1130 = vmatpush1.xpose.msra.mxu0 0.0
  %1131 = vmatprep.subr.mxu0 0.0
  %1132 = vmatpush1.xpose.msra.mxu0 0.0
  %1133 = vmatprep.subr.mxu0 0.0
  %1134 = vmatpush1.xpose.msra.mxu0 0.0
  %1135 = vmatprep.subr.mxu0 0.0
  %1136 = vmatpush1.xpose.msra.mxu0 0.0
  %1137 = vmatprep.subr.mxu0 0.0
  %1138 = vmatpush1.xpose.msra.mxu0 0.0
  %1139 = vmatprep.subr.mxu0 0.0
  %1140 = vmatpush1.xpose.msra.mxu0 0.0
  %1141 = vmatprep.subr.mxu0 0.0
  %1142 = vmatpush1.xpose.msra.mxu0 0.0
  %1143 = vmatprep.subr.mxu0 0.0
  %1144 = vmatpush1.xpose.msra.mxu0 0.0
  %1145 = vmatprep.subr.mxu0 0.0
  %1146 = vmatpush1.xpose.msra.mxu0 0.0
  %1147 = vmatprep.subr.mxu0 0.0
  %1148 = vmatpush1.xpose.msra.mxu0 0.0
  %1149 = vmatprep.subr.mxu0 0.0
  %1150 = vmatpush1.xpose.msra.mxu0 0.0
  %1151 = vmatprep.subr.mxu0 0.0
  %1152 = vmatpush1.xpose.msra.mxu0 0.0
  %1153 = vmatprep.subr.mxu0 0.0
  %1154 = vmatpush1.xpose.msra.mxu0 0.0
  %1155 = vmatprep.subr.mxu0 0.0
  %1156 = vmatpush1.xpose.msra.mxu0 0.0
  %1157 = vmatprep.subr.mxu0 0.0
  %1158 = vmatpush1.xpose.msra.mxu0 0.0
  %1159 = vmatprep.subr.mxu0 0.0
  %1160 = vmatpush1.xpose.msra.mxu0 0.0
  %1161 = vmatprep.subr.mxu0 0.0
  %1162 = vmatpush1.xpose.msra.mxu0 0.0
  %1163 = vmatprep.subr.mxu0 0.0
  %1164 = vmatpush1.xpose.msra.mxu0 0.0
  %1165 = vmatprep.subr.mxu0 0.0
  %1166 = vmatpush1.xpose.msra.mxu0 0.0
  %1167 = vmatprep.subr.mxu0 0.0
  %1168 = vmatpush1.xpose.msra.mxu0 0.0
  %1169 = vmatprep.subr.mxu0 0.0
  %1170 = vmatpush1.xpose.msra.mxu0 0.0
  %1171 = vmatprep.subr.mxu0 0.0
  %1172 = vmatpush1.xpose.msra.mxu0 0.0
  %1173 = vmatprep.subr.mxu0 0.0
  %1174 = vmatpush1.xpose.msra.mxu0 0.0
  %1175 = vmatprep.subr.mxu0 0.0
  %1176 = vmatpush1.xpose.msra.mxu0 0.0
  %1177 = vmatprep.subr.mxu0 0.0
  %1178 = vmatpush1.xpose.msra.mxu0 0.0
  %1179 = vmatprep.subr.mxu0 0.0
  %1180 = vmatpush1.xpose.msra.mxu0 0.0
  %1181 = vmatprep.subr.mxu0 0.0
  %1182 = vmatpush1.xpose.msra.mxu0 0.0
  %1183 = vmatprep.subr.mxu0 0.0
  %1184 = vmatpush1.xpose.msra.mxu0 0.0
  %1185 = vmatprep.subr.mxu0 0.0
  %1186 = vmatpush1.xpose.msra.mxu0 0.0
  %1187 = vmatprep.subr.mxu0 0.0
  %1188 = vmatpush1.xpose.msra.mxu0 0.0
  %1189 = vmatprep.mubr.f32.mxu0 0.0
  %1190 = vmatmul.mubr.f32.gmra.mrb[0].mxu0 %v1121
  %v1191 = vpop.f32.mrb[0].mxu0
  %v1192 = vadd.f32 0.0, %v1191
  %v1193 = vpop.f32.mrb[0].mxu0
  %1194 = vmatprep.mubr.f32.mxu0 0.0
  %1195 = vmatmul.mubr.f32.gmra.mrb[0].mxu0 %v1123
  %v1196 = vpop.f32.mrb[0].mxu0
  %v1197 = vadd.f32 0.0, %v1196
  %v1198 = vpop.f32.mrb[0].mxu0
  %1199 = vdwg.mxu0
  %v1200 = vmul.f32 %v1192, 0.35355338
  %v1201 = vmul.f32 %v1197, 0.35355338
  %v1202 = vadd.f32 %v1200, %v196
  %v1203 = vadd.f32 %v1201, %v197
  %v1204 = vsel %vm503, %v1202, -inf
  %1205 = vmax.xlane.f32.xlu0 %v1204
  %v1206 = vpop.xlane.xlu0 %1205
  %v1207 = vsel %vm503, %v1203, -inf
  %1208 = vmax.xlane.f32.xlu0 %v1207
  %v1209 = vpop.xlane.xlu0 %1208
  %v1210 = vsub.f32 %v1202, %v1206
  %v1211 = vsub.f32 %v1203, %v1209
  %v1212 = vmul.f32 %v1210, 1.442695
  %v1213 = vpow.pop %v1212
  %v1214 = vmul.f32 %v1211, 1.442695
  %v1215 = vpow.pop %v1214
  %v1216 = vsel %vm503, %v1213, 0.0
  %1217 = vadd.xlane.f32.xlu0 %v1216
  %v1218 = vpop.xlane.xlu0 %1217
  %v1219 = vsel %vm503, %v1215, 0.0
  %1220 = vadd.xlane.f32.xlu0 %v1219
  %v1221 = vpop.xlane.xlu0 %1220
  %v1222 = vrcp.pop %v1218
  %v1223 = vrcp.pop %v1221
  %v1224 = vmul.f32 %v1213, %v1222
  %v1225 = vmul.f32 %v1215, %v1223
  %v1227 = vsel %vm503, %v1224, 0
  %v1230 = vsel %vm503, %v1225, 0
  %1232 = vmatprep.subr.mxu0 0.0
  %1233 = vmatpush1.msra.mxu0 %v995
  %1234 = vmatprep.subr.mxu0 0.0
  %1235 = vmatpush1.msra.mxu0 %v997
  %1236 = vmatprep.subr.mxu0 0.0
  %1237 = vmatpush1.msra.mxu0 0.0
  %1238 = vmatprep.subr.mxu0 0.0
  %1239 = vmatpush1.msra.mxu0 0.0
  %1240 = vmatprep.subr.mxu0 0.0
  %1241 = vmatpush1.msra.mxu0 0.0
  %1242 = vmatprep.subr.mxu0 0.0
  %1243 = vmatpush1.msra.mxu0 0.0
  %1244 = vmatprep.subr.mxu0 0.0
  %1245 = vmatpush1.msra.mxu0 0.0
  %1246 = vmatprep.subr.mxu0 0.0
  %1247 = vmatpush1.msra.mxu0 0.0
  %1248 = vmatprep.subr.mxu0 0.0
  %1249 = vmatpush1.msra.mxu0 0.0
  %1250 = vmatprep.subr.mxu0 0.0
  %1251 = vmatpush1.msra.mxu0 0.0
  %1252 = vmatprep.subr.mxu0 0.0
  %1253 = vmatpush1.msra.mxu0 0.0
  %1254 = vmatprep.subr.mxu0 0.0
  %1255 = vmatpush1.msra.mxu0 0.0
  %1256 = vmatprep.subr.mxu0 0.0
  %1257 = vmatpush1.msra.mxu0 0.0
  %1258 = vmatprep.subr.mxu0 0.0
  %1259 = vmatpush1.msra.mxu0 0.0
  %1260 = vmatprep.subr.mxu0 0.0
  %1261 = vmatpush1.msra.mxu0 0.0
  %1262 = vmatprep.subr.mxu0 0.0
  %1263 = vmatpush1.msra.mxu0 0.0
  %1264 = vmatprep.subr.mxu0 0.0
  %1265 = vmatpush1.msra.mxu0 0.0
  %1266 = vmatprep.subr.mxu0 0.0
  %1267 = vmatpush1.msra.mxu0 0.0
  %1268 = vmatprep.subr.mxu0 0.0
  %1269 = vmatpush1.msra.mxu0 0.0
  %1270 = vmatprep.subr.mxu0 0.0
  %1271 = vmatpush1.msra.mxu0 0.0
  %1272 = vmatprep.subr.mxu0 0.0
  %1273 = vmatpush1.msra.mxu0 0.0
  %1274 = vmatprep.subr.mxu0 0.0
  %1275 = vmatpush1.msra.mxu0 0.0
  %1276 = vmatprep.subr.mxu0 0.0
  %1277 = vmatpush1.msra.mxu0 0.0
  %1278 = vmatprep.subr.mxu0 0.0
  %1279 = vmatpush1.msra.mxu0 0.0
  %1280 = vmatprep.subr.mxu0 0.0
  %1281 = vmatpush1.msra.mxu0 0.0
  %1282 = vmatprep.subr.mxu0 0.0
  %1283 = vmatpush1.msra.mxu0 0.0
  %1284 = vmatprep.subr.mxu0 0.0
  %1285 = vmatpush1.msra.mxu0 0.0
  %1286 = vmatprep.subr.mxu0 0.0
  %1287 = vmatpush1.msra.mxu0 0.0
  %1288 = vmatprep.subr.mxu0 0.0
  %1289 = vmatpush1.msra.mxu0 0.0
  %1290 = vmatprep.subr.mxu0 0.0
  %1291 = vmatpush1.msra.mxu0 0.0
  %1292 = vmatprep.subr.mxu0 0.0
  %1293 = vmatpush1.msra.mxu0 0.0
  %1294 = vmatprep.subr.mxu0 0.0
  %1295 = vmatpush1.msra.mxu0 0.0
  %1296 = vmatprep.mubr.f32.mxu0 0.0
  %1297 = vmatmul.mubr.f32.gmra.mrb[0].mxu0 %v1227
  %v1298 = vpop.f32.mrb[0].mxu0
  %v1299 = vadd.f32 0.0, %v1298
  %v1300 = vpop.f32.mrb[0].mxu0
  %1301 = vmatprep.mubr.f32.mxu0 0.0
  %1302 = vmatmul.mubr.f32.gmra.mrb[0].mxu0 %v1230
  %v1303 = vpop.f32.mrb[0].mxu0
  %v1304 = vadd.f32 0.0, %v1303
  %v1305 = vpop.f32.mrb[0].mxu0
  %1306 = vdwg.mxu0
  %1309 = vrot.lane.b32.xlu0 %v831, 8
  %v1310 = vpop.permute.xlu0 %1309
  %1311 = vrot.lane.b32.xlu0 %v836, 8
  %v1312 = vpop.permute.xlu0 %1311
  %1317 = vrot.lane.b32.xlu0 %v1073, 16
  %v1318 = vpop.permute.xlu0 %1317
  %1319 = vrot.lane.b32.xlu0 %v1078, 16
  %v1320 = vpop.permute.xlu0 %1319
  %1325 = vrot.lane.b32.xlu0 %v1299, 24
  %v1326 = vpop.permute.xlu0 %1325
  %1327 = vrot.lane.b32.xlu0 %v1304, 24
  %v1328 = vpop.permute.xlu0 %1327
  %v1331 = vsel %vm413, %v605, %v1310
  %v1332 = vsel %vm413, %v610, %v1312
  %v1333 = vsel %vm503, %v1331, %v1318
  %v1334 = vsel %vm503, %v1332, %v1320
  %vm1335 = vcmask 195584
  %v1336 = vsel %vm1335, %v1333, %v1326
  %v1337 = vsel %vm1335, %v1334, %v1328
  %v1338 = vld [vmem:[%s9] sm:$0xff]
  %v1339 = vld [vmem:[%s9 + $0x8] sm:$0xff]
  %v1340 = vld [vmem:[%s9 + $0x10] sm:$0xff]
  %v1341 = vld [vmem:[%s9 + $0x18] sm:$0xff]
  %v1343 = vsel %vm201, %v1336, 0
  %v1346 = vsel %vm201, %v1337, 0
  %1348 = vmatprep.subr.mxu0 0.0
  %1349 = vmatpush1.msra.mxu0 %v1338
  %1350 = vmatprep.subr.mxu0 0.0
  %1351 = vmatpush1.msra.mxu0 %v1339
  %1352 = vmatprep.subr.mxu0 0.0
  %1353 = vmatpush1.msra.mxu0 %v1340
  %1354 = vmatprep.subr.mxu0 0.0
  %1355 = vmatpush1.msra.mxu0 %v1341
  %1356 = vmatprep.subr.mxu0 0.0
  %1357 = vmatpush1.msra.mxu0 0.0
  %1358 = vmatprep.subr.mxu0 0.0
  %1359 = vmatpush1.msra.mxu0 0.0
  %1360 = vmatprep.subr.mxu0 0.0
  %1361 = vmatpush1.msra.mxu0 0.0
  %1362 = vmatprep.subr.mxu0 0.0
  %1363 = vmatpush1.msra.mxu0 0.0
  %1364 = vmatprep.subr.mxu0 0.0
  %1365 = vmatpush1.msra.mxu0 0.0
  %1366 = vmatprep.subr.mxu0 0.0
  %1367 = vmatpush1.msra.mxu0 0.0
  %1368 = vmatprep.subr.mxu0 0.0
  %1369 = vmatpush1.msra.mxu0 0.0
  %1370 = vmatprep.subr.mxu0 0.0
  %1371 = vmatpush1.msra.mxu0 0.0
  %1372 = vmatprep.subr.mxu0 0.0
  %1373 = vmatpush1.msra.mxu0 0.0
  %1374 = vmatprep.subr.mxu0 0.0
  %1375 = vmatpush1.msra.mxu0 0.0
  %1376 = vmatprep.subr.mxu0 0.0
  %1377 = vmatpush1.msra.mxu0 0.0
  %1378 = vmatprep.subr.mxu0 0.0
  %1379 = vmatpush1.msra.mxu0 0.0
  %1380 = vmatprep.subr.mxu0 0.0
  %1381 = vmatpush1.msra.mxu0 0.0
  %1382 = vmatprep.subr.mxu0 0.0
  %1383 = vmatpush1.msra.mxu0 0.0
  %1384 = vmatprep.subr.mxu0 0.0
  %1385 = vmatpush1.msra.mxu0 0.0
  %1386 = vmatprep.subr.mxu0 0.0
  %1387 = vmatpush1.msra.mxu0 0.0
  %1388 = vmatprep.subr.mxu0 0.0
  %1389 = vmatpush1.msra.mxu0 0.0
  %1390 = vmatprep.subr.mxu0 0.0
  %1391 = vmatpush1.msra.mxu0 0.0
  %1392 = vmatprep.subr.mxu0 0.0
  %1393 = vmatpush1.msra.mxu0 0.0
  %1394 = vmatprep.subr.mxu0 0.0
  %1395 = vmatpush1.msra.mxu0 0.0
  %1396 = vmatprep.subr.mxu0 0.0
  %1397 = vmatpush1.msra.mxu0 0.0
  %1398 = vmatprep.subr.mxu0 0.0
  %1399 = vmatpush1.msra.mxu0 0.0
  %1400 = vmatprep.subr.mxu0 0.0
  %1401 = vmatpush1.msra.mxu0 0.0
  %1402 = vmatprep.subr.mxu0 0.0
  %1403 = vmatpush1.msra.mxu0 0.0
  %1404 = vmatprep.subr.mxu0 0.0
  %1405 = vmatpush1.msra.mxu0 0.0
  %1406 = vmatprep.subr.mxu0 0.0
  %1407 = vmatpush1.msra.mxu0 0.0
  %1408 = vmatprep.subr.mxu0 0.0
  %1409 = vmatpush1.msra.mxu0 0.0
  %1410 = vmatprep.subr.mxu0 0.0
  %1411 = vmatpush1.msra.mxu0 0.0
  %1412 = vmatprep.mubr.f32.mxu0 0.0
  %1413 = vmatmul.mubr.f32.gmra.mrb[0].mxu0 %v1343
  %v1414 = vpop.f32.mrb[0].mxu0
  %v1415 = vadd.f32 0.0, %v1414
  %v1416 = vpop.f32.mrb[0].mxu0
  %1417 = vmatprep.mubr.f32.mxu0 0.0
  %1418 = vmatmul.mubr.f32.gmra.mrb[0].mxu0 %v1346
  %v1419 = vpop.f32.mrb[0].mxu0
  %v1420 = vadd.f32 0.0, %v1419
  %v1421 = vpop.f32.mrb[0].mxu0
  %1422 = vdwg.mxu0
  %v1423 = vadd.f32 %v184, %v1415
  %v1424 = vadd.f32 %v189, %v1420
  %v1425 = vld [vmem:[%s10] sm:$0x1]
  %v1426 = vmul.f32 %v1423, %v1423
  %v1427 = vmul.f32 %v1424, %v1424
  %v1428 = vsel %vm201, %v1426, 0.0
  %1429 = vadd.xlane.f32.xlu0 %v1428
  %v1430 = vpop.xlane.xlu0 %1429
  %v1431 = vsel %vm201, %v1427, 0.0
  %1432 = vadd.xlane.f32.xlu0 %v1431
  %v1433 = vpop.xlane.xlu0 %1432
  %v1434 = vmul.f32 %v1430, %v208
  %v1435 = vmul.f32 %v1433, %v208
  %v1436 = vadd.f32 %v1434, 1e-06
  %v1437 = vadd.f32 %v1435, 1e-06
  %v1438 = vrsqrt.pop %v1436
  %v1439 = vrsqrt.pop %v1437
  %v1440 = vmul.f32 %v1423, %v1438
  %v1441 = vmul.f32 %v1424, %v1439
  %v1443 = vlaneseq
  %v1444 = vshrl.u32 %v1443, 7
  %v1445 = vsub.s32 0, %v1444
  %v1446 = vrot.slane %v1425, %v1445
  %v1448 = vmul.f32 %v1440, %v1446
  %v1449 = vmul.f32 %v1441, %v1446
  %v1450 = vld [vmem:[%s11] sm:$0xff]
  %v1451 = vld [vmem:[%s11 + $0x8] sm:$0xff]
  %v1452 = vld [vmem:[%s11 + $0x10] sm:$0xff]
  %v1453 = vld [vmem:[%s11 + $0x18] sm:$0xff]
  %v1455 = vsel %vm201, %v1448, 0
  %v1458 = vsel %vm201, %v1449, 0
  %1460 = vmatprep.subr.mxu0 0.0
  %1461 = vmatpush1.msra.mxu0 %v1450
  %1462 = vmatprep.subr.mxu0 0.0
  %1463 = vmatpush1.msra.mxu0 %v1451
  %1464 = vmatprep.subr.mxu0 0.0
  %1465 = vmatpush1.msra.mxu0 %v1452
  %1466 = vmatprep.subr.mxu0 0.0
  %1467 = vmatpush1.msra.mxu0 %v1453
  %1468 = vmatprep.subr.mxu0 0.0
  %1469 = vmatpush1.msra.mxu0 0.0
  %1470 = vmatprep.subr.mxu0 0.0
  %1471 = vmatpush1.msra.mxu0 0.0
  %1472 = vmatprep.subr.mxu0 0.0
  %1473 = vmatpush1.msra.mxu0 0.0
  %1474 = vmatprep.subr.mxu0 0.0
  %1475 = vmatpush1.msra.mxu0 0.0
  %1476 = vmatprep.subr.mxu0 0.0
  %1477 = vmatpush1.msra.mxu0 0.0
  %1478 = vmatprep.subr.mxu0 0.0
  %1479 = vmatpush1.msra.mxu0 0.0
  %1480 = vmatprep.subr.mxu0 0.0
  %1481 = vmatpush1.msra.mxu0 0.0
  %1482 = vmatprep.subr.mxu0 0.0
  %1483 = vmatpush1.msra.mxu0 0.0
  %1484 = vmatprep.subr.mxu0 0.0
  %1485 = vmatpush1.msra.mxu0 0.0
  %1486 = vmatprep.subr.mxu0 0.0
  %1487 = vmatpush1.msra.mxu0 0.0
  %1488 = vmatprep.subr.mxu0 0.0
  %1489 = vmatpush1.msra.mxu0 0.0
  %1490 = vmatprep.subr.mxu0 0.0
  %1491 = vmatpush1.msra.mxu0 0.0
  %1492 = vmatprep.subr.mxu0 0.0
  %1493 = vmatpush1.msra.mxu0 0.0
  %1494 = vmatprep.subr.mxu0 0.0
  %1495 = vmatpush1.msra.mxu0 0.0
  %1496 = vmatprep.subr.mxu0 0.0
  %1497 = vmatpush1.msra.mxu0 0.0
  %1498 = vmatprep.subr.mxu0 0.0
  %1499 = vmatpush1.msra.mxu0 0.0
  %1500 = vmatprep.subr.mxu0 0.0
  %1501 = vmatpush1.msra.mxu0 0.0
  %1502 = vmatprep.subr.mxu0 0.0
  %1503 = vmatpush1.msra.mxu0 0.0
  %1504 = vmatprep.subr.mxu0 0.0
  %1505 = vmatpush1.msra.mxu0 0.0
  %1506 = vmatprep.subr.mxu0 0.0
  %1507 = vmatpush1.msra.mxu0 0.0
  %1508 = vmatprep.subr.mxu0 0.0
  %1509 = vmatpush1.msra.mxu0 0.0
  %1510 = vmatprep.subr.mxu0 0.0
  %1511 = vmatpush1.msra.mxu0 0.0
  %1512 = vmatprep.subr.mxu0 0.0
  %1513 = vmatpush1.msra.mxu0 0.0
  %1514 = vmatprep.subr.mxu0 0.0
  %1515 = vmatpush1.msra.mxu0 0.0
  %1516 = vmatprep.subr.mxu0 0.0
  %1517 = vmatpush1.msra.mxu0 0.0
  %1518 = vmatprep.subr.mxu0 0.0
  %1519 = vmatpush1.msra.mxu0 0.0
  %1520 = vmatprep.subr.mxu0 0.0
  %1521 = vmatpush1.msra.mxu0 0.0
  %1522 = vmatprep.subr.mxu0 0.0
  %1523 = vmatpush1.msra.mxu0 0.0
  %1524 = vmatprep.mubr.f32.mxu0 0.0
  %1525 = vmatmul.mubr.f32.gmra.mrb[0].mxu0 %v1455
  %v1526 = vpop.f32.mrb[0].mxu0
  %v1527 = vadd.f32 0.0, %v1526
  %v1528 = vpop.f32.mrb[0].mxu0
  %1529 = vmatprep.mubr.f32.mxu0 0.0
  %1530 = vmatmul.mubr.f32.gmra.mrb[0].mxu0 %v1458
  %v1531 = vpop.f32.mrb[0].mxu0
  %v1532 = vadd.f32 0.0, %v1531
  %v1533 = vpop.f32.mrb[0].mxu0
  %1534 = vdwg.mxu0
  %v1535 = vxor.u32 %v1527, 2147483648
  %v1536 = vxor.u32 %v1532, 2147483648
  %v1537 = vmul.f32 %v1535, 1.442695
  %v1538 = vpow.pop %v1537
  %v1539 = vmul.f32 %v1536, 1.442695
  %v1540 = vpow.pop %v1539
  %v1541 = vadd.f32 %v1538, 1.0
  %v1542 = vadd.f32 %v1540, 1.0
  %v1543 = vrcp.pop %v1541
  %v1544 = vmul.f32 1.0, %v1543
  %v1545 = vrcp.pop %v1542
  %v1546 = vmul.f32 1.0, %v1545
  %v1547 = vmul.f32 %v1527, %v1544
  %v1548 = vmul.f32 %v1532, %v1546
  %1551 = vrot.lane.b32.xlu0 %v1527, 64
  %v1552 = vpop.permute.xlu0 %1551
  %1553 = vrot.lane.b32.xlu0 %v1532, 64
  %v1554 = vpop.permute.xlu0 %1553
  %v1557 = vmul.f32 %v1547, %v1552
  %v1558 = vmul.f32 %v1548, %v1554
  %v1559 = vld [vmem:[%s12] sm:$0xff]
  %v1560 = vld [vmem:[%s12 + $0x8] sm:$0xff]
  %v1561 = vld [vmem:[%s12 + $0x10] sm:$0xff]
  %v1562 = vld [vmem:[%s12 + $0x18] sm:$0xff]
  %v1563 = vld [vmem:[%s12 + $0x20] sm:$0xff]
  %v1564 = vld [vmem:[%s12 + $0x28] sm:$0xff]
  %v1565 = vld [vmem:[%s12 + $0x30] sm:$0xff]
  %v1566 = vld [vmem:[%s12 + $0x38] sm:$0xff]
  %vm1567 = vcmask 523264
  %v1569 = vsel %vm1567, %v1557, 0
  %v1572 = vsel %vm1567, %v1558, 0
  %1574 = vmatprep.subr.mxu0 0.0
  %1575 = vmatpush1.msra.mxu0 %v1559
  %1576 = vmatprep.subr.mxu0 0.0
  %1577 = vmatpush1.msra.mxu0 %v1560
  %1578 = vmatprep.subr.mxu0 0.0
  %1579 = vmatpush1.msra.mxu0 %v1561
  %1580 = vmatprep.subr.mxu0 0.0
  %1581 = vmatpush1.msra.mxu0 %v1562
  %1582 = vmatprep.subr.mxu0 0.0
  %1583 = vmatpush1.msra.mxu0 %v1563
  %1584 = vmatprep.subr.mxu0 0.0
  %1585 = vmatpush1.msra.mxu0 %v1564
  %1586 = vmatprep.subr.mxu0 0.0
  %1587 = vmatpush1.msra.mxu0 %v1565
  %1588 = vmatprep.subr.mxu0 0.0
  %1589 = vmatpush1.msra.mxu0 %v1566
  %1590 = vmatprep.subr.mxu0 0.0
  %1591 = vmatpush1.msra.mxu0 0.0
  %1592 = vmatprep.subr.mxu0 0.0
  %1593 = vmatpush1.msra.mxu0 0.0
  %1594 = vmatprep.subr.mxu0 0.0
  %1595 = vmatpush1.msra.mxu0 0.0
  %1596 = vmatprep.subr.mxu0 0.0
  %1597 = vmatpush1.msra.mxu0 0.0
  %1598 = vmatprep.subr.mxu0 0.0
  %1599 = vmatpush1.msra.mxu0 0.0
  %1600 = vmatprep.subr.mxu0 0.0
  %1601 = vmatpush1.msra.mxu0 0.0
  %1602 = vmatprep.subr.mxu0 0.0
  %1603 = vmatpush1.msra.mxu0 0.0
  %1604 = vmatprep.subr.mxu0 0.0
  %1605 = vmatpush1.msra.mxu0 0.0
  %1606 = vmatprep.subr.mxu0 0.0
  %1607 = vmatpush1.msra.mxu0 0.0
  %1608 = vmatprep.subr.mxu0 0.0
  %1609 = vmatpush1.msra.mxu0 0.0
  %1610 = vmatprep.subr.mxu0 0.0
  %1611 = vmatpush1.msra.mxu0 0.0
  %1612 = vmatprep.subr.mxu0 0.0
  %1613 = vmatpush1.msra.mxu0 0.0
  %1614 = vmatprep.subr.mxu0 0.0
  %1615 = vmatpush1.msra.mxu0 0.0
  %1616 = vmatprep.subr.mxu0 0.0
  %1617 = vmatpush1.msra.mxu0 0.0
  %1618 = vmatprep.subr.mxu0 0.0
  %1619 = vmatpush1.msra.mxu0 0.0
  %1620 = vmatprep.subr.mxu0 0.0
  %1621 = vmatpush1.msra.mxu0 0.0
  %1622 = vmatprep.subr.mxu0 0.0
  %1623 = vmatpush1.msra.mxu0 0.0
  %1624 = vmatprep.subr.mxu0 0.0
  %1625 = vmatpush1.msra.mxu0 0.0
  %1626 = vmatprep.subr.mxu0 0.0
  %1627 = vmatpush1.msra.mxu0 0.0
  %1628 = vmatprep.subr.mxu0 0.0
  %1629 = vmatpush1.msra.mxu0 0.0
  %1630 = vmatprep.subr.mxu0 0.0
  %1631 = vmatpush1.msra.mxu0 0.0
  %1632 = vmatprep.subr.mxu0 0.0
  %1633 = vmatpush1.msra.mxu0 0.0
  %1634 = vmatprep.subr.mxu0 0.0
  %1635 = vmatpush1.msra.mxu0 0.0
  %1636 = vmatprep.subr.mxu0 0.0
  %1637 = vmatpush1.msra.mxu0 0.0
  %1638 = vmatprep.mubr.f32.mxu0 0.0
  %1639 = vmatmul.mubr.f32.gmra.mrb[0].mxu0 %v1569
  %v1640 = vpop.f32.mrb[0].mxu0
  %v1641 = vadd.f32 0.0, %v1640
  %v1642 = vpop.f32.mrb[0].mxu0
  %1643 = vmatprep.mubr.f32.mxu0 0.0
  %1644 = vmatmul.mubr.f32.gmra.mrb[0].mxu0 %v1572
  %v1645 = vpop.f32.mrb[0].mxu0
  %v1646 = vadd.f32 0.0, %v1645
  %v1647 = vpop.f32.mrb[0].mxu0
  %1648 = vdwg.mxu0
  %v1649 = vadd.f32 %v1423, %v1641
  %v1650 = vadd.f32 %v1424, %v1646
  %v1651 = vld [vmem:[%s13] sm:$0x1]
  %v1652 = vmul.f32 %v1649, %v1649
  %v1653 = vmul.f32 %v1650, %v1650
  %v1654 = vsel %vm201, %v1652, 0.0
  %1655 = vadd.xlane.f32.xlu0 %v1654
  %v1656 = vpop.xlane.xlu0 %1655
  %v1657 = vsel %vm201, %v1653, 0.0
  %1658 = vadd.xlane.f32.xlu0 %v1657
  %v1659 = vpop.xlane.xlu0 %1658
  %v1660 = vmul.f32 %v1656, %v208
  %v1661 = vmul.f32 %v1659, %v208
  %v1662 = vadd.f32 %v1660, 1e-06
  %v1663 = vadd.f32 %v1661, 1e-06
  %v1664 = vrsqrt.pop %v1662
  %v1665 = vrsqrt.pop %v1663
  %v1666 = vmul.f32 %v1649, %v1664
  %v1667 = vmul.f32 %v1650, %v1665
  %v1669 = vlaneseq
  %v1670 = vshrl.u32 %v1669, 7
  %v1671 = vsub.s32 0, %v1670
  %v1672 = vrot.slane %v1651, %v1671
  %v1674 = vmul.f32 %v1666, %v1672
  %v1675 = vmul.f32 %v1667, %v1672
  %v1676 = vld [vmem:[%s14] sm:$0xff]
  %v1677 = vld [vmem:[%s14 + $0x8] sm:$0xff]
  %v1678 = vld [vmem:[%s14 + $0x10] sm:$0xff]
  %v1679 = vld [vmem:[%s14 + $0x18] sm:$0xff]
  %v1681 = vsel %vm201, %v1674, 0
  %v1684 = vsel %vm201, %v1675, 0
  %1686 = vmatprep.subr.mxu0 0.0
  %1687 = vmatpush1.msra.mxu0 %v1676
  %1688 = vmatprep.subr.mxu0 0.0
  %1689 = vmatpush1.msra.mxu0 %v1677
  %1690 = vmatprep.subr.mxu0 0.0
  %1691 = vmatpush1.msra.mxu0 %v1678
  %1692 = vmatprep.subr.mxu0 0.0
  %1693 = vmatpush1.msra.mxu0 %v1679
  %1694 = vmatprep.subr.mxu0 0.0
  %1695 = vmatpush1.msra.mxu0 0.0
  %1696 = vmatprep.subr.mxu0 0.0
  %1697 = vmatpush1.msra.mxu0 0.0
  %1698 = vmatprep.subr.mxu0 0.0
  %1699 = vmatpush1.msra.mxu0 0.0
  %1700 = vmatprep.subr.mxu0 0.0
  %1701 = vmatpush1.msra.mxu0 0.0
  %1702 = vmatprep.subr.mxu0 0.0
  %1703 = vmatpush1.msra.mxu0 0.0
  %1704 = vmatprep.subr.mxu0 0.0
  %1705 = vmatpush1.msra.mxu0 0.0
  %1706 = vmatprep.subr.mxu0 0.0
  %1707 = vmatpush1.msra.mxu0 0.0
  %1708 = vmatprep.subr.mxu0 0.0
  %1709 = vmatpush1.msra.mxu0 0.0
  %1710 = vmatprep.subr.mxu0 0.0
  %1711 = vmatpush1.msra.mxu0 0.0
  %1712 = vmatprep.subr.mxu0 0.0
  %1713 = vmatpush1.msra.mxu0 0.0
  %1714 = vmatprep.subr.mxu0 0.0
  %1715 = vmatpush1.msra.mxu0 0.0
  %1716 = vmatprep.subr.mxu0 0.0
  %1717 = vmatpush1.msra.mxu0 0.0
  %1718 = vmatprep.subr.mxu0 0.0
  %1719 = vmatpush1.msra.mxu0 0.0
  %1720 = vmatprep.subr.mxu0 0.0
  %1721 = vmatpush1.msra.mxu0 0.0
  %1722 = vmatprep.subr.mxu0 0.0
  %1723 = vmatpush1.msra.mxu0 0.0
  %1724 = vmatprep.subr.mxu0 0.0
  %1725 = vmatpush1.msra.mxu0 0.0
  %1726 = vmatprep.subr.mxu0 0.0
  %1727 = vmatpush1.msra.mxu0 0.0
  %1728 = vmatprep.subr.mxu0 0.0
  %1729 = vmatpush1.msra.mxu0 0.0
  %1730 = vmatprep.subr.mxu0 0.0
  %1731 = vmatpush1.msra.mxu0 0.0
  %1732 = vmatprep.subr.mxu0 0.0
  %1733 = vmatpush1.msra.mxu0 0.0
  %1734 = vmatprep.subr.mxu0 0.0
  %1735 = vmatpush1.msra.mxu0 0.0
  %1736 = vmatprep.subr.mxu0 0.0
  %1737 = vmatpush1.msra.mxu0 0.0
  %1738 = vmatprep.subr.mxu0 0.0
  %1739 = vmatpush1.msra.mxu0 0.0
  %1740 = vmatprep.subr.mxu0 0.0
  %1741 = vmatpush1.msra.mxu0 0.0
  %1742 = vmatprep.subr.mxu0 0.0
  %1743 = vmatpush1.msra.mxu0 0.0
  %1744 = vmatprep.subr.mxu0 0.0
  %1745 = vmatpush1.msra.mxu0 0.0
  %1746 = vmatprep.subr.mxu0 0.0
  %1747 = vmatpush1.msra.mxu0 0.0
  %1748 = vmatprep.subr.mxu0 0.0
  %1749 = vmatpush1.msra.mxu0 0.0
  %1750 = vmatprep.mubr.f32.mxu0 0.0
  %1751 = vmatmul.mubr.f32.gmra.mrb[0].mxu0 %v1681
  %v1752 = vpop.f32.mrb[0].mxu0
  %v1753 = vadd.f32 0.0, %v1752
  %v1754 = vpop.f32.mrb[0].mxu0
  %1755 = vmatprep.mubr.f32.mxu0 0.0
  %1756 = vmatmul.mubr.f32.gmra.mrb[0].mxu0 %v1684
  %v1757 = vpop.f32.mrb[0].mxu0
  %v1758 = vadd.f32 0.0, %v1757
  %v1759 = vpop.f32.mrb[0].mxu0
  %1760 = vdwg.mxu0
  %v1761 = vsub.f32 0.0, %v1753
  %v1762 = vsub.f32 0.0, %v1758
  %1765 = vrot.lane.b32.xlu0 %v1761, 92
  %v1766 = vpop.permute.xlu0 %1765
  %1767 = vrot.lane.b32.xlu0 %v1762, 92
  %v1768 = vpop.permute.xlu0 %1767
  %1773 = vrot.lane.b32.xlu0 %v1753, 100
  %v1774 = vpop.permute.xlu0 %1773
  %1775 = vrot.lane.b32.xlu0 %v1758, 100
  %v1776 = vpop.permute.xlu0 %1775
  %v1779 = vsel %vm328, %v1766, %v1774
  %v1780 = vsel %vm328, %v1768, %v1776
  %v1781 = vmul.f32 %v1753, %v334
  %v1782 = vmul.f32 %v1758, %v336
  %v1783 = vmul.f32 %v1779, %v194
  %v1784 = vmul.f32 %v1780, %v195
  %1787 = vrot.lane.b32.xlu0 %v1783, 32
  %v1788 = vpop.permute.xlu0 %1787
  %1789 = vrot.lane.b32.xlu0 %v1784, 32
  %v1790 = vpop.permute.xlu0 %1789
  %v1793 = vadd.f32 %v1781, %v1788
  %v1794 = vadd.f32 %v1782, %v1790
  %1795 = vrot.lane.b32.xlu0 %v1761, 84
  %v1796 = vpop.permute.xlu0 %1795
  %1797 = vrot.lane.b32.xlu0 %v1762, 84
  %v1798 = vpop.permute.xlu0 %1797
  %1801 = vrot.lane.b32.xlu0 %v1753, 92
  %v1802 = vpop.permute.xlu0 %1801
  %1803 = vrot.lane.b32.xlu0 %v1758, 92
  %v1804 = vpop.permute.xlu0 %1803
  %v1807 = vsel %vm328, %v1796, %v1802
  %v1808 = vsel %vm328, %v1798, %v1804
  %v1809 = vmul.f32 %v1753, %v368
  %v1810 = vmul.f32 %v1758, %v370
  %v1811 = vmul.f32 %v1807, %v194
  %v1812 = vmul.f32 %v1808, %v195
  %1815 = vrot.lane.b32.xlu0 %v1811, 40
  %v1816 = vpop.permute.xlu0 %1815
  %1817 = vrot.lane.b32.xlu0 %v1812, 40
  %v1818 = vpop.permute.xlu0 %1817
  %v1821 = vadd.f32 %v1809, %v1816
  %v1822 = vadd.f32 %v1810, %v1818
  %1823 = vrot.lane.b32.xlu0 %v1761, 124
  %v1824 = vpop.permute.xlu0 %1823
  %1825 = vrot.lane.b32.xlu0 %v1762, 124
  %v1826 = vpop.permute.xlu0 %1825
  %1829 = vrot.lane.b32.xlu0 %v1753, 4
  %v1830 = vpop.permute.xlu0 %1829
  %1831 = vrot.lane.b32.xlu0 %v1758, 4
  %v1832 = vpop.permute.xlu0 %1831
  %v1835 = vsel %vm328, %v1824, %v1830
  %v1836 = vsel %vm328, %v1826, %v1832
  %v1837 = vmul.f32 %v1753, %v192
  %v1838 = vmul.f32 %v1758, %v193
  %v1839 = vmul.f32 %v1835, %v194
  %v1840 = vmul.f32 %v1836, %v195
  %v1841 = vadd.f32 %v1837, %v1839
  %v1842 = vadd.f32 %v1838, %v1840
  %1845 = vrot.lane.b32.xlu0 %v1793, 96
  %v1846 = vpop.permute.xlu0 %1845
  %1847 = vrot.lane.b32.xlu0 %v1794, 96
  %v1848 = vpop.permute.xlu0 %1847
  %v1850 = vsel %vm413, %v1841, 0
  %v1853 = vsel %vm413, %v1842, 0
  %v1855 = vsel %vm413, %v1846, 0
  %v1857 = vsel %vm413, %v1848, 0
  %1859 = vmatprep.subr.mxu0 0.0
  %1860 = vmatpush1.xpose.msra.mxu0 %v1855
  %1861 = vmatprep.subr.mxu0 0.0
  %1862 = vmatpush1.xpose.msra.mxu0 %v1857
  %1863 = vmatprep.subr.mxu0 0.0
  %1864 = vmatpush1.xpose.msra.mxu0 0.0
  %1865 = vmatprep.subr.mxu0 0.0
  %1866 = vmatpush1.xpose.msra.mxu0 0.0
  %1867 = vmatprep.subr.mxu0 0.0
  %1868 = vmatpush1.xpose.msra.mxu0 0.0
  %1869 = vmatprep.subr.mxu0 0.0
  %1870 = vmatpush1.xpose.msra.mxu0 0.0
  %1871 = vmatprep.subr.mxu0 0.0
  %1872 = vmatpush1.xpose.msra.mxu0 0.0
  %1873 = vmatprep.subr.mxu0 0.0
  %1874 = vmatpush1.xpose.msra.mxu0 0.0
  %1875 = vmatprep.subr.mxu0 0.0
  %1876 = vmatpush1.xpose.msra.mxu0 0.0
  %1877 = vmatprep.subr.mxu0 0.0
  %1878 = vmatpush1.xpose.msra.mxu0 0.0
  %1879 = vmatprep.subr.mxu0 0.0
  %1880 = vmatpush1.xpose.msra.mxu0 0.0
  %1881 = vmatprep.subr.mxu0 0.0
  %1882 = vmatpush1.xpose.msra.mxu0 0.0
  %1883 = vmatprep.subr.mxu0 0.0
  %1884 = vmatpush1.xpose.msra.mxu0 0.0
  %1885 = vmatprep.subr.mxu0 0.0
  %1886 = vmatpush1.xpose.msra.mxu0 0.0
  %1887 = vmatprep.subr.mxu0 0.0
  %1888 = vmatpush1.xpose.msra.mxu0 0.0
  %1889 = vmatprep.subr.mxu0 0.0
  %1890 = vmatpush1.xpose.msra.mxu0 0.0
  %1891 = vmatprep.subr.mxu0 0.0
  %1892 = vmatpush1.xpose.msra.mxu0 0.0
  %1893 = vmatprep.subr.mxu0 0.0
  %1894 = vmatpush1.xpose.msra.mxu0 0.0
  %1895 = vmatprep.subr.mxu0 0.0
  %1896 = vmatpush1.xpose.msra.mxu0 0.0
  %1897 = vmatprep.subr.mxu0 0.0
  %1898 = vmatpush1.xpose.msra.mxu0 0.0
  %1899 = vmatprep.subr.mxu0 0.0
  %1900 = vmatpush1.xpose.msra.mxu0 0.0
  %1901 = vmatprep.subr.mxu0 0.0
  %1902 = vmatpush1.xpose.msra.mxu0 0.0
  %1903 = vmatprep.subr.mxu0 0.0
  %1904 = vmatpush1.xpose.msra.mxu0 0.0
  %1905 = vmatprep.subr.mxu0 0.0
  %1906 = vmatpush1.xpose.msra.mxu0 0.0
  %1907 = vmatprep.subr.mxu0 0.0
  %1908 = vmatpush1.xpose.msra.mxu0 0.0
  %1909 = vmatprep.subr.mxu0 0.0
  %1910 = vmatpush1.xpose.msra.mxu0 0.0
  %1911 = vmatprep.subr.mxu0 0.0
  %1912 = vmatpush1.xpose.msra.mxu0 0.0
  %1913 = vmatprep.subr.mxu0 0.0
  %1914 = vmatpush1.xpose.msra.mxu0 0.0
  %1915 = vmatprep.subr.mxu0 0.0
  %1916 = vmatpush1.xpose.msra.mxu0 0.0
  %1917 = vmatprep.subr.mxu0 0.0
  %1918 = vmatpush1.xpose.msra.mxu0 0.0
  %1919 = vmatprep.subr.mxu0 0.0
  %1920 = vmatpush1.xpose.msra.mxu0 0.0
  %1921 = vmatprep.subr.mxu0 0.0
  %1922 = vmatpush1.xpose.msra.mxu0 0.0
  %1923 = vmatprep.mubr.f32.mxu0 0.0
  %1924 = vmatmul.mubr.f32.gmra.mrb[0].mxu0 %v1850
  %v1925 = vpop.f32.mrb[0].mxu0
  %v1926 = vadd.f32 0.0, %v1925
  %v1927 = vpop.f32.mrb[0].mxu0
  %1928 = vmatprep.mubr.f32.mxu0 0.0
  %1929 = vmatmul.mubr.f32.gmra.mrb[0].mxu0 %v1853
  %v1930 = vpop.f32.mrb[0].mxu0
  %v1931 = vadd.f32 0.0, %v1930
  %v1932 = vpop.f32.mrb[0].mxu0
  %1933 = vdwg.mxu0
  %v1934 = vmul.f32 %v1926, 0.35355338
  %v1935 = vmul.f32 %v1931, 0.35355338
  %v1936 = vadd.f32 %v1934, %v196
  %v1937 = vadd.f32 %v1935, %v197
  %v1938 = vsel %vm503, %v1936, -inf
  %1939 = vmax.xlane.f32.xlu0 %v1938
  %v1940 = vpop.xlane.xlu0 %1939
  %v1941 = vsel %vm503, %v1937, -inf
  %1942 = vmax.xlane.f32.xlu0 %v1941
  %v1943 = vpop.xlane.xlu0 %1942
  %v1944 = vsub.f32 %v1936, %v1940
  %v1945 = vsub.f32 %v1937, %v1943
  %v1946 = vmul.f32 %v1944, 1.442695
  %v1947 = vpow.pop %v1946
  %v1948 = vmul.f32 %v1945, 1.442695
  %v1949 = vpow.pop %v1948
  %v1950 = vsel %vm503, %v1947, 0.0
  %1951 = vadd.xlane.f32.xlu0 %v1950
  %v1952 = vpop.xlane.xlu0 %1951
  %v1953 = vsel %vm503, %v1949, 0.0
  %1954 = vadd.xlane.f32.xlu0 %v1953
  %v1955 = vpop.xlane.xlu0 %1954
  %v1956 = vrcp.pop %v1952
  %v1957 = vrcp.pop %v1955
  %v1958 = vmul.f32 %v1947, %v1956
  %v1959 = vmul.f32 %v1949, %v1957
  %1960 = vrot.lane.b32.xlu0 %v1753, 80
  %v1961 = vpop.permute.xlu0 %1960
  %1962 = vrot.lane.b32.xlu0 %v1758, 80
  %v1963 = vpop.permute.xlu0 %1962
  %v1967 = vsel %vm503, %v1958, 0
  %v1970 = vsel %vm503, %v1959, 0
  %1972 = vmatprep.subr.mxu0 0.0
  %1973 = vmatpush1.msra.mxu0 %v1961
  %1974 = vmatprep.subr.mxu0 0.0
  %1975 = vmatpush1.msra.mxu0 %v1963
  %1976 = vmatprep.subr.mxu0 0.0
  %1977 = vmatpush1.msra.mxu0 0.0
  %1978 = vmatprep.subr.mxu0 0.0
  %1979 = vmatpush1.msra.mxu0 0.0
  %1980 = vmatprep.subr.mxu0 0.0
  %1981 = vmatpush1.msra.mxu0 0.0
  %1982 = vmatprep.subr.mxu0 0.0
  %1983 = vmatpush1.msra.mxu0 0.0
  %1984 = vmatprep.subr.mxu0 0.0
  %1985 = vmatpush1.msra.mxu0 0.0
  %1986 = vmatprep.subr.mxu0 0.0
  %1987 = vmatpush1.msra.mxu0 0.0
  %1988 = vmatprep.subr.mxu0 0.0
  %1989 = vmatpush1.msra.mxu0 0.0
  %1990 = vmatprep.subr.mxu0 0.0
  %1991 = vmatpush1.msra.mxu0 0.0
  %1992 = vmatprep.subr.mxu0 0.0
  %1993 = vmatpush1.msra.mxu0 0.0
  %1994 = vmatprep.subr.mxu0 0.0
  %1995 = vmatpush1.msra.mxu0 0.0
  %1996 = vmatprep.subr.mxu0 0.0
  %1997 = vmatpush1.msra.mxu0 0.0
  %1998 = vmatprep.subr.mxu0 0.0
  %1999 = vmatpush1.msra.mxu0 0.0
  %2000 = vmatprep.subr.mxu0 0.0
  %2001 = vmatpush1.msra.mxu0 0.0
  %2002 = vmatprep.subr.mxu0 0.0
  %2003 = vmatpush1.msra.mxu0 0.0
  %2004 = vmatprep.subr.mxu0 0.0
  %2005 = vmatpush1.msra.mxu0 0.0
  %2006 = vmatprep.subr.mxu0 0.0
  %2007 = vmatpush1.msra.mxu0 0.0
  %2008 = vmatprep.subr.mxu0 0.0
  %2009 = vmatpush1.msra.mxu0 0.0
  %2010 = vmatprep.subr.mxu0 0.0
  %2011 = vmatpush1.msra.mxu0 0.0
  %2012 = vmatprep.subr.mxu0 0.0
  %2013 = vmatpush1.msra.mxu0 0.0
  %2014 = vmatprep.subr.mxu0 0.0
  %2015 = vmatpush1.msra.mxu0 0.0
  %2016 = vmatprep.subr.mxu0 0.0
  %2017 = vmatpush1.msra.mxu0 0.0
  %2018 = vmatprep.subr.mxu0 0.0
  %2019 = vmatpush1.msra.mxu0 0.0
  %2020 = vmatprep.subr.mxu0 0.0
  %2021 = vmatpush1.msra.mxu0 0.0
  %2022 = vmatprep.subr.mxu0 0.0
  %2023 = vmatpush1.msra.mxu0 0.0
  %2024 = vmatprep.subr.mxu0 0.0
  %2025 = vmatpush1.msra.mxu0 0.0
  %2026 = vmatprep.subr.mxu0 0.0
  %2027 = vmatpush1.msra.mxu0 0.0
  %2028 = vmatprep.subr.mxu0 0.0
  %2029 = vmatpush1.msra.mxu0 0.0
  %2030 = vmatprep.subr.mxu0 0.0
  %2031 = vmatpush1.msra.mxu0 0.0
  %2032 = vmatprep.subr.mxu0 0.0
  %2033 = vmatpush1.msra.mxu0 0.0
  %2034 = vmatprep.subr.mxu0 0.0
  %2035 = vmatpush1.msra.mxu0 0.0
  %2036 = vmatprep.mubr.f32.mxu0 0.0
  %2037 = vmatmul.mubr.f32.gmra.mrb[0].mxu0 %v1967
  %v2038 = vpop.f32.mrb[0].mxu0
  %v2039 = vadd.f32 0.0, %v2038
  %v2040 = vpop.f32.mrb[0].mxu0
  %2041 = vmatprep.mubr.f32.mxu0 0.0
  %2042 = vmatmul.mubr.f32.gmra.mrb[0].mxu0 %v1970
  %v2043 = vpop.f32.mrb[0].mxu0
  %v2044 = vadd.f32 0.0, %v2043
  %v2045 = vpop.f32.mrb[0].mxu0
  %2046 = vdwg.mxu0
  %2047 = vrot.lane.b32.xlu0 %v1761, 116
  %v2048 = vpop.permute.xlu0 %2047
  %2049 = vrot.lane.b32.xlu0 %v1762, 116
  %v2050 = vpop.permute.xlu0 %2049
  %2053 = vrot.lane.b32.xlu0 %v1753, 124
  %v2054 = vpop.permute.xlu0 %2053
  %2055 = vrot.lane.b32.xlu0 %v1758, 124
  %v2056 = vpop.permute.xlu0 %2055
  %v2059 = vsel %vm328, %v2048, %v2054
  %v2060 = vsel %vm328, %v2050, %v2056
  %v2061 = vmul.f32 %v1753, %v628
  %v2062 = vmul.f32 %v1758, %v630
  %v2063 = vmul.f32 %v2059, %v194
  %v2064 = vmul.f32 %v2060, %v195
  %2067 = vrot.lane.b32.xlu0 %v2063, 8
  %v2068 = vpop.permute.xlu0 %2067
  %2069 = vrot.lane.b32.xlu0 %v2064, 8
  %v2070 = vpop.permute.xlu0 %2069
  %v2073 = vadd.f32 %v2061, %v2068
  %v2074 = vadd.f32 %v2062, %v2070
  %2077 = vrot.lane.b32.xlu0 %v2073, 120
  %v2078 = vpop.permute.xlu0 %2077
  %2079 = vrot.lane.b32.xlu0 %v2074, 120
  %v2080 = vpop.permute.xlu0 %2079
  %v2081 = vsel %vm413, %v2078, 0
  %v2083 = vsel %vm413, %v2080, 0
  %2085 = vmatprep.subr.mxu0 0.0
  %2086 = vmatpush1.xpose.msra.mxu0 %v1855
  %2087 = vmatprep.subr.mxu0 0.0
  %2088 = vmatpush1.xpose.msra.mxu0 %v1857
  %2089 = vmatprep.subr.mxu0 0.0
  %2090 = vmatpush1.xpose.msra.mxu0 0.0
  %2091 = vmatprep.subr.mxu0 0.0
  %2092 = vmatpush1.xpose.msra.mxu0 0.0
  %2093 = vmatprep.subr.mxu0 0.0
  %2094 = vmatpush1.xpose.msra.mxu0 0.0
  %2095 = vmatprep.subr.mxu0 0.0
  %2096 = vmatpush1.xpose.msra.mxu0 0.0
  %2097 = vmatprep.subr.mxu0 0.0
  %2098 = vmatpush1.xpose.msra.mxu0 0.0
  %2099 = vmatprep.subr.mxu0 0.0
  %2100 = vmatpush1.xpose.msra.mxu0 0.0
  %2101 = vmatprep.subr.mxu0 0.0
  %2102 = vmatpush1.xpose.msra.mxu0 0.0
  %2103 = vmatprep.subr.mxu0 0.0
  %2104 = vmatpush1.xpose.msra.mxu0 0.0
  %2105 = vmatprep.subr.mxu0 0.0
  %2106 = vmatpush1.xpose.msra.mxu0 0.0
  %2107 = vmatprep.subr.mxu0 0.0
  %2108 = vmatpush1.xpose.msra.mxu0 0.0
  %2109 = vmatprep.subr.mxu0 0.0
  %2110 = vmatpush1.xpose.msra.mxu0 0.0
  %2111 = vmatprep.subr.mxu0 0.0
  %2112 = vmatpush1.xpose.msra.mxu0 0.0
  %2113 = vmatprep.subr.mxu0 0.0
  %2114 = vmatpush1.xpose.msra.mxu0 0.0
  %2115 = vmatprep.subr.mxu0 0.0
  %2116 = vmatpush1.xpose.msra.mxu0 0.0
  %2117 = vmatprep.subr.mxu0 0.0
  %2118 = vmatpush1.xpose.msra.mxu0 0.0
  %2119 = vmatprep.subr.mxu0 0.0
  %2120 = vmatpush1.xpose.msra.mxu0 0.0
  %2121 = vmatprep.subr.mxu0 0.0
  %2122 = vmatpush1.xpose.msra.mxu0 0.0
  %2123 = vmatprep.subr.mxu0 0.0
  %2124 = vmatpush1.xpose.msra.mxu0 0.0
  %2125 = vmatprep.subr.mxu0 0.0
  %2126 = vmatpush1.xpose.msra.mxu0 0.0
  %2127 = vmatprep.subr.mxu0 0.0
  %2128 = vmatpush1.xpose.msra.mxu0 0.0
  %2129 = vmatprep.subr.mxu0 0.0
  %2130 = vmatpush1.xpose.msra.mxu0 0.0
  %2131 = vmatprep.subr.mxu0 0.0
  %2132 = vmatpush1.xpose.msra.mxu0 0.0
  %2133 = vmatprep.subr.mxu0 0.0
  %2134 = vmatpush1.xpose.msra.mxu0 0.0
  %2135 = vmatprep.subr.mxu0 0.0
  %2136 = vmatpush1.xpose.msra.mxu0 0.0
  %2137 = vmatprep.subr.mxu0 0.0
  %2138 = vmatpush1.xpose.msra.mxu0 0.0
  %2139 = vmatprep.subr.mxu0 0.0
  %2140 = vmatpush1.xpose.msra.mxu0 0.0
  %2141 = vmatprep.subr.mxu0 0.0
  %2142 = vmatpush1.xpose.msra.mxu0 0.0
  %2143 = vmatprep.subr.mxu0 0.0
  %2144 = vmatpush1.xpose.msra.mxu0 0.0
  %2145 = vmatprep.subr.mxu0 0.0
  %2146 = vmatpush1.xpose.msra.mxu0 0.0
  %2147 = vmatprep.subr.mxu0 0.0
  %2148 = vmatpush1.xpose.msra.mxu0 0.0
  %2149 = vmatprep.mubr.f32.mxu0 0.0
  %2150 = vmatmul.mubr.f32.gmra.mrb[0].mxu0 %v2081
  %v2151 = vpop.f32.mrb[0].mxu0
  %v2152 = vadd.f32 0.0, %v2151
  %v2153 = vpop.f32.mrb[0].mxu0
  %2154 = vmatprep.mubr.f32.mxu0 0.0
  %2155 = vmatmul.mubr.f32.gmra.mrb[0].mxu0 %v2083
  %v2156 = vpop.f32.mrb[0].mxu0
  %v2157 = vadd.f32 0.0, %v2156
  %v2158 = vpop.f32.mrb[0].mxu0
  %2159 = vdwg.mxu0
  %v2160 = vmul.f32 %v2152, 0.35355338
  %v2161 = vmul.f32 %v2157, 0.35355338
  %v2162 = vadd.f32 %v2160, %v196
  %v2163 = vadd.f32 %v2161, %v197
  %v2164 = vsel %vm503, %v2162, -inf
  %2165 = vmax.xlane.f32.xlu0 %v2164
  %v2166 = vpop.xlane.xlu0 %2165
  %v2167 = vsel %vm503, %v2163, -inf
  %2168 = vmax.xlane.f32.xlu0 %v2167
  %v2169 = vpop.xlane.xlu0 %2168
  %v2170 = vsub.f32 %v2162, %v2166
  %v2171 = vsub.f32 %v2163, %v2169
  %v2172 = vmul.f32 %v2170, 1.442695
  %v2173 = vpow.pop %v2172
  %v2174 = vmul.f32 %v2171, 1.442695
  %v2175 = vpow.pop %v2174
  %v2176 = vsel %vm503, %v2173, 0.0
  %2177 = vadd.xlane.f32.xlu0 %v2176
  %v2178 = vpop.xlane.xlu0 %2177
  %v2179 = vsel %vm503, %v2175, 0.0
  %2180 = vadd.xlane.f32.xlu0 %v2179
  %v2181 = vpop.xlane.xlu0 %2180
  %v2182 = vrcp.pop %v2178
  %v2183 = vrcp.pop %v2181
  %v2184 = vmul.f32 %v2173, %v2182
  %v2185 = vmul.f32 %v2175, %v2183
  %v2187 = vsel %vm503, %v2184, 0
  %v2190 = vsel %vm503, %v2185, 0
  %2192 = vmatprep.subr.mxu0 0.0
  %2193 = vmatpush1.msra.mxu0 %v1961
  %2194 = vmatprep.subr.mxu0 0.0
  %2195 = vmatpush1.msra.mxu0 %v1963
  %2196 = vmatprep.subr.mxu0 0.0
  %2197 = vmatpush1.msra.mxu0 0.0
  %2198 = vmatprep.subr.mxu0 0.0
  %2199 = vmatpush1.msra.mxu0 0.0
  %2200 = vmatprep.subr.mxu0 0.0
  %2201 = vmatpush1.msra.mxu0 0.0
  %2202 = vmatprep.subr.mxu0 0.0
  %2203 = vmatpush1.msra.mxu0 0.0
  %2204 = vmatprep.subr.mxu0 0.0
  %2205 = vmatpush1.msra.mxu0 0.0
  %2206 = vmatprep.subr.mxu0 0.0
  %2207 = vmatpush1.msra.mxu0 0.0
  %2208 = vmatprep.subr.mxu0 0.0
  %2209 = vmatpush1.msra.mxu0 0.0
  %2210 = vmatprep.subr.mxu0 0.0
  %2211 = vmatpush1.msra.mxu0 0.0
  %2212 = vmatprep.subr.mxu0 0.0
  %2213 = vmatpush1.msra.mxu0 0.0
  %2214 = vmatprep.subr.mxu0 0.0
  %2215 = vmatpush1.msra.mxu0 0.0
  %2216 = vmatprep.subr.mxu0 0.0
  %2217 = vmatpush1.msra.mxu0 0.0
  %2218 = vmatprep.subr.mxu0 0.0
  %2219 = vmatpush1.msra.mxu0 0.0
  %2220 = vmatprep.subr.mxu0 0.0
  %2221 = vmatpush1.msra.mxu0 0.0
  %2222 = vmatprep.subr.mxu0 0.0
  %2223 = vmatpush1.msra.mxu0 0.0
  %2224 = vmatprep.subr.mxu0 0.0
  %2225 = vmatpush1.msra.mxu0 0.0
  %2226 = vmatprep.subr.mxu0 0.0
  %2227 = vmatpush1.msra.mxu0 0.0
  %2228 = vmatprep.subr.mxu0 0.0
  %2229 = vmatpush1.msra.mxu0 0.0
  %2230 = vmatprep.subr.mxu0 0.0
  %2231 = vmatpush1.msra.mxu0 0.0
  %2232 = vmatprep.subr.mxu0 0.0
  %2233 = vmatpush1.msra.mxu0 0.0
  %2234 = vmatprep.subr.mxu0 0.0
  %2235 = vmatpush1.msra.mxu0 0.0
  %2236 = vmatprep.subr.mxu0 0.0
  %2237 = vmatpush1.msra.mxu0 0.0
  %2238 = vmatprep.subr.mxu0 0.0
  %2239 = vmatpush1.msra.mxu0 0.0
  %2240 = vmatprep.subr.mxu0 0.0
  %2241 = vmatpush1.msra.mxu0 0.0
  %2242 = vmatprep.subr.mxu0 0.0
  %2243 = vmatpush1.msra.mxu0 0.0
  %2244 = vmatprep.subr.mxu0 0.0
  %2245 = vmatpush1.msra.mxu0 0.0
  %2246 = vmatprep.subr.mxu0 0.0
  %2247 = vmatpush1.msra.mxu0 0.0
  %2248 = vmatprep.subr.mxu0 0.0
  %2249 = vmatpush1.msra.mxu0 0.0
  %2250 = vmatprep.subr.mxu0 0.0
  %2251 = vmatpush1.msra.mxu0 0.0
  %2252 = vmatprep.subr.mxu0 0.0
  %2253 = vmatpush1.msra.mxu0 0.0
  %2254 = vmatprep.subr.mxu0 0.0
  %2255 = vmatpush1.msra.mxu0 0.0
  %2256 = vmatprep.mubr.f32.mxu0 0.0
  %2257 = vmatmul.mubr.f32.gmra.mrb[0].mxu0 %v2187
  %v2258 = vpop.f32.mrb[0].mxu0
  %v2259 = vadd.f32 0.0, %v2258
  %v2260 = vpop.f32.mrb[0].mxu0
  %2261 = vmatprep.mubr.f32.mxu0 0.0
  %2262 = vmatmul.mubr.f32.gmra.mrb[0].mxu0 %v2190
  %v2263 = vpop.f32.mrb[0].mxu0
  %v2264 = vadd.f32 0.0, %v2263
  %v2265 = vpop.f32.mrb[0].mxu0
  %2266 = vdwg.mxu0
  %2267 = vrot.lane.b32.xlu0 %v1761, 108
  %v2268 = vpop.permute.xlu0 %2267
  %2269 = vrot.lane.b32.xlu0 %v1762, 108
  %v2270 = vpop.permute.xlu0 %2269
  %2273 = vrot.lane.b32.xlu0 %v1753, 116
  %v2274 = vpop.permute.xlu0 %2273
  %2275 = vrot.lane.b32.xlu0 %v1758, 116
  %v2276 = vpop.permute.xlu0 %2275
  %v2279 = vsel %vm328, %v2268, %v2274
  %v2280 = vsel %vm328, %v2270, %v2276
  %v2281 = vmul.f32 %v1753, %v854
  %v2282 = vmul.f32 %v1758, %v856
  %v2283 = vmul.f32 %v2279, %v194
  %v2284 = vmul.f32 %v2280, %v195
  %2287 = vrot.lane.b32.xlu0 %v2283, 16
  %v2288 = vpop.permute.xlu0 %2287
  %2289 = vrot.lane.b32.xlu0 %v2284, 16
  %v2290 = vpop.permute.xlu0 %2289
  %v2293 = vadd.f32 %v2281, %v2288
  %v2294 = vadd.f32 %v2282, %v2290
  %2297 = vrot.lane.b32.xlu0 %v2293, 112
  %v2298 = vpop.permute.xlu0 %2297
  %2299 = vrot.lane.b32.xlu0 %v2294, 112
  %v2300 = vpop.permute.xlu0 %2299
  %2303 = vrot.lane.b32.xlu0 %v1821, 88
  %v2304 = vpop.permute.xlu0 %2303
  %2305 = vrot.lane.b32.xlu0 %v1822, 88
  %v2306 = vpop.permute.xlu0 %2305
  %v2307 = vsel %vm413, %v2298, 0
  %v2309 = vsel %vm413, %v2300, 0
  %v2311 = vsel %vm413, %v2304, 0
  %v2313 = vsel %vm413, %v2306, 0
  %2315 = vmatprep.subr.mxu0 0.0
  %2316 = vmatpush1.xpose.msra.mxu0 %v2311
  %2317 = vmatprep.subr.mxu0 0.0
  %2318 = vmatpush1.xpose.msra.mxu0 %v2313
  %2319 = vmatprep.subr.mxu0 0.0
  %2320 = vmatpush1.xpose.msra.mxu0 0.0
  %2321 = vmatprep.subr.mxu0 0.0
  %2322 = vmatpush1.xpose.msra.mxu0 0.0
  %2323 = vmatprep.subr.mxu0 0.0
  %2324 = vmatpush1.xpose.msra.mxu0 0.0
  %2325 = vmatprep.subr.mxu0 0.0
  %2326 = vmatpush1.xpose.msra.mxu0 0.0
  %2327 = vmatprep.subr.mxu0 0.0
  %2328 = vmatpush1.xpose.msra.mxu0 0.0
  %2329 = vmatprep.subr.mxu0 0.0
  %2330 = vmatpush1.xpose.msra.mxu0 0.0
  %2331 = vmatprep.subr.mxu0 0.0
  %2332 = vmatpush1.xpose.msra.mxu0 0.0
  %2333 = vmatprep.subr.mxu0 0.0
  %2334 = vmatpush1.xpose.msra.mxu0 0.0
  %2335 = vmatprep.subr.mxu0 0.0
  %2336 = vmatpush1.xpose.msra.mxu0 0.0
  %2337 = vmatprep.subr.mxu0 0.0
  %2338 = vmatpush1.xpose.msra.mxu0 0.0
  %2339 = vmatprep.subr.mxu0 0.0
  %2340 = vmatpush1.xpose.msra.mxu0 0.0
  %2341 = vmatprep.subr.mxu0 0.0
  %2342 = vmatpush1.xpose.msra.mxu0 0.0
  %2343 = vmatprep.subr.mxu0 0.0
  %2344 = vmatpush1.xpose.msra.mxu0 0.0
  %2345 = vmatprep.subr.mxu0 0.0
  %2346 = vmatpush1.xpose.msra.mxu0 0.0
  %2347 = vmatprep.subr.mxu0 0.0
  %2348 = vmatpush1.xpose.msra.mxu0 0.0
  %2349 = vmatprep.subr.mxu0 0.0
  %2350 = vmatpush1.xpose.msra.mxu0 0.0
  %2351 = vmatprep.subr.mxu0 0.0
  %2352 = vmatpush1.xpose.msra.mxu0 0.0
  %2353 = vmatprep.subr.mxu0 0.0
  %2354 = vmatpush1.xpose.msra.mxu0 0.0
  %2355 = vmatprep.subr.mxu0 0.0
  %2356 = vmatpush1.xpose.msra.mxu0 0.0
  %2357 = vmatprep.subr.mxu0 0.0
  %2358 = vmatpush1.xpose.msra.mxu0 0.0
  %2359 = vmatprep.subr.mxu0 0.0
  %2360 = vmatpush1.xpose.msra.mxu0 0.0
  %2361 = vmatprep.subr.mxu0 0.0
  %2362 = vmatpush1.xpose.msra.mxu0 0.0
  %2363 = vmatprep.subr.mxu0 0.0
  %2364 = vmatpush1.xpose.msra.mxu0 0.0
  %2365 = vmatprep.subr.mxu0 0.0
  %2366 = vmatpush1.xpose.msra.mxu0 0.0
  %2367 = vmatprep.subr.mxu0 0.0
  %2368 = vmatpush1.xpose.msra.mxu0 0.0
  %2369 = vmatprep.subr.mxu0 0.0
  %2370 = vmatpush1.xpose.msra.mxu0 0.0
  %2371 = vmatprep.subr.mxu0 0.0
  %2372 = vmatpush1.xpose.msra.mxu0 0.0
  %2373 = vmatprep.subr.mxu0 0.0
  %2374 = vmatpush1.xpose.msra.mxu0 0.0
  %2375 = vmatprep.subr.mxu0 0.0
  %2376 = vmatpush1.xpose.msra.mxu0 0.0
  %2377 = vmatprep.subr.mxu0 0.0
  %2378 = vmatpush1.xpose.msra.mxu0 0.0
  %2379 = vmatprep.mubr.f32.mxu0 0.0
  %2380 = vmatmul.mubr.f32.gmra.mrb[0].mxu0 %v2307
  %v2381 = vpop.f32.mrb[0].mxu0
  %v2382 = vadd.f32 0.0, %v2381
  %v2383 = vpop.f32.mrb[0].mxu0
  %2384 = vmatprep.mubr.f32.mxu0 0.0
  %2385 = vmatmul.mubr.f32.gmra.mrb[0].mxu0 %v2309
  %v2386 = vpop.f32.mrb[0].mxu0
  %v2387 = vadd.f32 0.0, %v2386
  %v2388 = vpop.f32.mrb[0].mxu0
  %2389 = vdwg.mxu0
  %v2390 = vmul.f32 %v2382, 0.35355338
  %v2391 = vmul.f32 %v2387, 0.35355338
  %v2392 = vadd.f32 %v2390, %v196
  %v2393 = vadd.f32 %v2391, %v197
  %v2394 = vsel %vm503, %v2392, -inf
  %2395 = vmax.xlane.f32.xlu0 %v2394
  %v2396 = vpop.xlane.xlu0 %2395
  %v2397 = vsel %vm503, %v2393, -inf
  %2398 = vmax.xlane.f32.xlu0 %v2397
  %v2399 = vpop.xlane.xlu0 %2398
  %v2400 = vsub.f32 %v2392, %v2396
  %v2401 = vsub.f32 %v2393, %v2399
  %v2402 = vmul.f32 %v2400, 1.442695
  %v2403 = vpow.pop %v2402
  %v2404 = vmul.f32 %v2401, 1.442695
  %v2405 = vpow.pop %v2404
  %v2406 = vsel %vm503, %v2403, 0.0
  %2407 = vadd.xlane.f32.xlu0 %v2406
  %v2408 = vpop.xlane.xlu0 %2407
  %v2409 = vsel %vm503, %v2405, 0.0
  %2410 = vadd.xlane.f32.xlu0 %v2409
  %v2411 = vpop.xlane.xlu0 %2410
  %v2412 = vrcp.pop %v2408
  %v2413 = vrcp.pop %v2411
  %v2414 = vmul.f32 %v2403, %v2412
  %v2415 = vmul.f32 %v2405, %v2413
  %2416 = vrot.lane.b32.xlu0 %v1753, 72
  %v2417 = vpop.permute.xlu0 %2416
  %2418 = vrot.lane.b32.xlu0 %v1758, 72
  %v2419 = vpop.permute.xlu0 %2418
  %v2423 = vsel %vm503, %v2414, 0
  %v2426 = vsel %vm503, %v2415, 0
  %2428 = vmatprep.subr.mxu0 0.0
  %2429 = vmatpush1.msra.mxu0 %v2417
  %2430 = vmatprep.subr.mxu0 0.0
  %2431 = vmatpush1.msra.mxu0 %v2419
  %2432 = vmatprep.subr.mxu0 0.0
  %2433 = vmatpush1.msra.mxu0 0.0
  %2434 = vmatprep.subr.mxu0 0.0
  %2435 = vmatpush1.msra.mxu0 0.0
  %2436 = vmatprep.subr.mxu0 0.0
  %2437 = vmatpush1.msra.mxu0 0.0
  %2438 = vmatprep.subr.mxu0 0.0
  %2439 = vmatpush1.msra.mxu0 0.0
  %2440 = vmatprep.subr.mxu0 0.0
  %2441 = vmatpush1.msra.mxu0 0.0
  %2442 = vmatprep.subr.mxu0 0.0
  %2443 = vmatpush1.msra.mxu0 0.0
  %2444 = vmatprep.subr.mxu0 0.0
  %2445 = vmatpush1.msra.mxu0 0.0
  %2446 = vmatprep.subr.mxu0 0.0
  %2447 = vmatpush1.msra.mxu0 0.0
  %2448 = vmatprep.subr.mxu0 0.0
  %2449 = vmatpush1.msra.mxu0 0.0
  %2450 = vmatprep.subr.mxu0 0.0
  %2451 = vmatpush1.msra.mxu0 0.0
  %2452 = vmatprep.subr.mxu0 0.0
  %2453 = vmatpush1.msra.mxu0 0.0
  %2454 = vmatprep.subr.mxu0 0.0
  %2455 = vmatpush1.msra.mxu0 0.0
  %2456 = vmatprep.subr.mxu0 0.0
  %2457 = vmatpush1.msra.mxu0 0.0
  %2458 = vmatprep.subr.mxu0 0.0
  %2459 = vmatpush1.msra.mxu0 0.0
  %2460 = vmatprep.subr.mxu0 0.0
  %2461 = vmatpush1.msra.mxu0 0.0
  %2462 = vmatprep.subr.mxu0 0.0
  %2463 = vmatpush1.msra.mxu0 0.0
  %2464 = vmatprep.subr.mxu0 0.0
  %2465 = vmatpush1.msra.mxu0 0.0
  %2466 = vmatprep.subr.mxu0 0.0
  %2467 = vmatpush1.msra.mxu0 0.0
  %2468 = vmatprep.subr.mxu0 0.0
  %2469 = vmatpush1.msra.mxu0 0.0
  %2470 = vmatprep.subr.mxu0 0.0
  %2471 = vmatpush1.msra.mxu0 0.0
  %2472 = vmatprep.subr.mxu0 0.0
  %2473 = vmatpush1.msra.mxu0 0.0
  %2474 = vmatprep.subr.mxu0 0.0
  %2475 = vmatpush1.msra.mxu0 0.0
  %2476 = vmatprep.subr.mxu0 0.0
  %2477 = vmatpush1.msra.mxu0 0.0
  %2478 = vmatprep.subr.mxu0 0.0
  %2479 = vmatpush1.msra.mxu0 0.0
  %2480 = vmatprep.subr.mxu0 0.0
  %2481 = vmatpush1.msra.mxu0 0.0
  %2482 = vmatprep.subr.mxu0 0.0
  %2483 = vmatpush1.msra.mxu0 0.0
  %2484 = vmatprep.subr.mxu0 0.0
  %2485 = vmatpush1.msra.mxu0 0.0
  %2486 = vmatprep.subr.mxu0 0.0
  %2487 = vmatpush1.msra.mxu0 0.0
  %2488 = vmatprep.subr.mxu0 0.0
  %2489 = vmatpush1.msra.mxu0 0.0
  %2490 = vmatprep.subr.mxu0 0.0
  %2491 = vmatpush1.msra.mxu0 0.0
  %2492 = vmatprep.mubr.f32.mxu0 0.0
  %2493 = vmatmul.mubr.f32.gmra.mrb[0].mxu0 %v2423
  %v2494 = vpop.f32.mrb[0].mxu0
  %v2495 = vadd.f32 0.0, %v2494
  %v2496 = vpop.f32.mrb[0].mxu0
  %2497 = vmatprep.mubr.f32.mxu0 0.0
  %2498 = vmatmul.mubr.f32.gmra.mrb[0].mxu0 %v2426
  %v2499 = vpop.f32.mrb[0].mxu0
  %v2500 = vadd.f32 0.0, %v2499
  %v2501 = vpop.f32.mrb[0].mxu0
  %2502 = vdwg.mxu0
  %2503 = vrot.lane.b32.xlu0 %v1761, 100
  %v2504 = vpop.permute.xlu0 %2503
  %2505 = vrot.lane.b32.xlu0 %v1762, 100
  %v2506 = vpop.permute.xlu0 %2505
  %2509 = vrot.lane.b32.xlu0 %v1753, 108
  %v2510 = vpop.permute.xlu0 %2509
  %2511 = vrot.lane.b32.xlu0 %v1758, 108
  %v2512 = vpop.permute.xlu0 %2511
  %v2515 = vsel %vm328, %v2504, %v2510
  %v2516 = vsel %vm328, %v2506, %v2512
  %v2517 = vmul.f32 %v1753, %v1096
  %v2518 = vmul.f32 %v1758, %v1098
  %v2519 = vmul.f32 %v2515, %v194
  %v2520 = vmul.f32 %v2516, %v195
  %2523 = vrot.lane.b32.xlu0 %v2519, 24
  %v2524 = vpop.permute.xlu0 %2523
  %2525 = vrot.lane.b32.xlu0 %v2520, 24
  %v2526 = vpop.permute.xlu0 %2525
  %v2529 = vadd.f32 %v2517, %v2524
  %v2530 = vadd.f32 %v2518, %v2526
  %2533 = vrot.lane.b32.xlu0 %v2529, 104
  %v2534 = vpop.permute.xlu0 %2533
  %2535 = vrot.lane.b32.xlu0 %v2530, 104
  %v2536 = vpop.permute.xlu0 %2535
  %v2537 = vsel %vm413, %v2534, 0
  %v2539 = vsel %vm413, %v2536, 0
  %2541 = vmatprep.subr.mxu0 0.0
  %2542 = vmatpush1.xpose.msra.mxu0 %v2311
  %2543 = vmatprep.subr.mxu0 0.0
  %2544 = vmatpush1.xpose.msra.mxu0 %v2313
  %2545 = vmatprep.subr.mxu0 0.0
  %2546 = vmatpush1.xpose.msra.mxu0 0.0
  %2547 = vmatprep.subr.mxu0 0.0
  %2548 = vmatpush1.xpose.msra.mxu0 0.0
  %2549 = vmatprep.subr.mxu0 0.0
  %2550 = vmatpush1.xpose.msra.mxu0 0.0
  %2551 = vmatprep.subr.mxu0 0.0
  %2552 = vmatpush1.xpose.msra.mxu0 0.0
  %2553 = vmatprep.subr.mxu0 0.0
  %2554 = vmatpush1.xpose.msra.mxu0 0.0
  %2555 = vmatprep.subr.mxu0 0.0
  %2556 = vmatpush1.xpose.msra.mxu0 0.0
  %2557 = vmatprep.subr.mxu0 0.0
  %2558 = vmatpush1.xpose.msra.mxu0 0.0
  %2559 = vmatprep.subr.mxu0 0.0
  %2560 = vmatpush1.xpose.msra.mxu0 0.0
  %2561 = vmatprep.subr.mxu0 0.0
  %2562 = vmatpush1.xpose.msra.mxu0 0.0
  %2563 = vmatprep.subr.mxu0 0.0
  %2564 = vmatpush1.xpose.msra.mxu0 0.0
  %2565 = vmatprep.subr.mxu0 0.0
  %2566 = vmatpush1.xpose.msra.mxu0 0.0
  %2567 = vmatprep.subr.mxu0 0.0
  %2568 = vmatpush1.xpose.msra.mxu0 0.0
  %2569 = vmatprep.subr.mxu0 0.0
  %2570 = vmatpush1.xpose.msra.mxu0 0.0
  %2571 = vmatprep.subr.mxu0 0.0
  %2572 = vmatpush1.xpose.msra.mxu0 0.0
  %2573 = vmatprep.subr.mxu0 0.0
  %2574 = vmatpush1.xpose.msra.mxu0 0.0
  %2575 = vmatprep.subr.mxu0 0.0
  %2576 = vmatpush1.xpose.msra.mxu0 0.0
  %2577 = vmatprep.subr.mxu0 0.0
  %2578 = vmatpush1.xpose.msra.mxu0 0.0
  %2579 = vmatprep.subr.mxu0 0.0
  %2580 = vmatpush1.xpose.msra.mxu0 0.0
  %2581 = vmatprep.subr.mxu0 0.0
  %2582 = vmatpush1.xpose.msra.mxu0 0.0
  %2583 = vmatprep.subr.mxu0 0.0
  %2584 = vmatpush1.xpose.msra.mxu0 0.0
  %2585 = vmatprep.subr.mxu0 0.0
  %2586 = vmatpush1.xpose.msra.mxu0 0.0
  %2587 = vmatprep.subr.mxu0 0.0
  %2588 = vmatpush1.xpose.msra.mxu0 0.0
  %2589 = vmatprep.subr.mxu0 0.0
  %2590 = vmatpush1.xpose.msra.mxu0 0.0
  %2591 = vmatprep.subr.mxu0 0.0
  %2592 = vmatpush1.xpose.msra.mxu0 0.0
  %2593 = vmatprep.subr.mxu0 0.0
  %2594 = vmatpush1.xpose.msra.mxu0 0.0
  %2595 = vmatprep.subr.mxu0 0.0
  %2596 = vmatpush1.xpose.msra.mxu0 0.0
  %2597 = vmatprep.subr.mxu0 0.0
  %2598 = vmatpush1.xpose.msra.mxu0 0.0
  %2599 = vmatprep.subr.mxu0 0.0
  %2600 = vmatpush1.xpose.msra.mxu0 0.0
  %2601 = vmatprep.subr.mxu0 0.0
  %2602 = vmatpush1.xpose.msra.mxu0 0.0
  %2603 = vmatprep.subr.mxu0 0.0
  %2604 = vmatpush1.xpose.msra.mxu0 0.0
  %2605 = vmatprep.mubr.f32.mxu0 0.0
  %2606 = vmatmul.mubr.f32.gmra.mrb[0].mxu0 %v2537
  %v2607 = vpop.f32.mrb[0].mxu0
  %v2608 = vadd.f32 0.0, %v2607
  %v2609 = vpop.f32.mrb[0].mxu0
  %2610 = vmatprep.mubr.f32.mxu0 0.0
  %2611 = vmatmul.mubr.f32.gmra.mrb[0].mxu0 %v2539
  %v2612 = vpop.f32.mrb[0].mxu0
  %v2613 = vadd.f32 0.0, %v2612
  %v2614 = vpop.f32.mrb[0].mxu0
  %2615 = vdwg.mxu0
  %v2616 = vmul.f32 %v2608, 0.35355338
  %v2617 = vmul.f32 %v2613, 0.35355338
  %v2618 = vadd.f32 %v2616, %v196
  %v2619 = vadd.f32 %v2617, %v197
  %v2620 = vsel %vm503, %v2618, -inf
  %2621 = vmax.xlane.f32.xlu0 %v2620
  %v2622 = vpop.xlane.xlu0 %2621
  %v2623 = vsel %vm503, %v2619, -inf
  %2624 = vmax.xlane.f32.xlu0 %v2623
  %v2625 = vpop.xlane.xlu0 %2624
  %v2626 = vsub.f32 %v2618, %v2622
  %v2627 = vsub.f32 %v2619, %v2625
  %v2628 = vmul.f32 %v2626, 1.442695
  %v2629 = vpow.pop %v2628
  %v2630 = vmul.f32 %v2627, 1.442695
  %v2631 = vpow.pop %v2630
  %v2632 = vsel %vm503, %v2629, 0.0
  %2633 = vadd.xlane.f32.xlu0 %v2632
  %v2634 = vpop.xlane.xlu0 %2633
  %v2635 = vsel %vm503, %v2631, 0.0
  %2636 = vadd.xlane.f32.xlu0 %v2635
  %v2637 = vpop.xlane.xlu0 %2636
  %v2638 = vrcp.pop %v2634
  %v2639 = vrcp.pop %v2637
  %v2640 = vmul.f32 %v2629, %v2638
  %v2641 = vmul.f32 %v2631, %v2639
  %v2643 = vsel %vm503, %v2640, 0
  %v2646 = vsel %vm503, %v2641, 0
  %2648 = vmatprep.subr.mxu0 0.0
  %2649 = vmatpush1.msra.mxu0 %v2417
  %2650 = vmatprep.subr.mxu0 0.0
  %2651 = vmatpush1.msra.mxu0 %v2419
  %2652 = vmatprep.subr.mxu0 0.0
  %2653 = vmatpush1.msra.mxu0 0.0
  %2654 = vmatprep.subr.mxu0 0.0
  %2655 = vmatpush1.msra.mxu0 0.0
  %2656 = vmatprep.subr.mxu0 0.0
  %2657 = vmatpush1.msra.mxu0 0.0
  %2658 = vmatprep.subr.mxu0 0.0
  %2659 = vmatpush1.msra.mxu0 0.0
  %2660 = vmatprep.subr.mxu0 0.0
  %2661 = vmatpush1.msra.mxu0 0.0
  %2662 = vmatprep.subr.mxu0 0.0
  %2663 = vmatpush1.msra.mxu0 0.0
  %2664 = vmatprep.subr.mxu0 0.0
  %2665 = vmatpush1.msra.mxu0 0.0
  %2666 = vmatprep.subr.mxu0 0.0
  %2667 = vmatpush1.msra.mxu0 0.0
  %2668 = vmatprep.subr.mxu0 0.0
  %2669 = vmatpush1.msra.mxu0 0.0
  %2670 = vmatprep.subr.mxu0 0.0
  %2671 = vmatpush1.msra.mxu0 0.0
  %2672 = vmatprep.subr.mxu0 0.0
  %2673 = vmatpush1.msra.mxu0 0.0
  %2674 = vmatprep.subr.mxu0 0.0
  %2675 = vmatpush1.msra.mxu0 0.0
  %2676 = vmatprep.subr.mxu0 0.0
  %2677 = vmatpush1.msra.mxu0 0.0
  %2678 = vmatprep.subr.mxu0 0.0
  %2679 = vmatpush1.msra.mxu0 0.0
  %2680 = vmatprep.subr.mxu0 0.0
  %2681 = vmatpush1.msra.mxu0 0.0
  %2682 = vmatprep.subr.mxu0 0.0
  %2683 = vmatpush1.msra.mxu0 0.0
  %2684 = vmatprep.subr.mxu0 0.0
  %2685 = vmatpush1.msra.mxu0 0.0
  %2686 = vmatprep.subr.mxu0 0.0
  %2687 = vmatpush1.msra.mxu0 0.0
  %2688 = vmatprep.subr.mxu0 0.0
  %2689 = vmatpush1.msra.mxu0 0.0
  %2690 = vmatprep.subr.mxu0 0.0
  %2691 = vmatpush1.msra.mxu0 0.0
  %2692 = vmatprep.subr.mxu0 0.0
  %2693 = vmatpush1.msra.mxu0 0.0
  %2694 = vmatprep.subr.mxu0 0.0
  %2695 = vmatpush1.msra.mxu0 0.0
  %2696 = vmatprep.subr.mxu0 0.0
  %2697 = vmatpush1.msra.mxu0 0.0
  %2698 = vmatprep.subr.mxu0 0.0
  %2699 = vmatpush1.msra.mxu0 0.0
  %2700 = vmatprep.subr.mxu0 0.0
  %2701 = vmatpush1.msra.mxu0 0.0
  %2702 = vmatprep.subr.mxu0 0.0
  %2703 = vmatpush1.msra.mxu0 0.0
  %2704 = vmatprep.subr.mxu0 0.0
  %2705 = vmatpush1.msra.mxu0 0.0
  %2706 = vmatprep.subr.mxu0 0.0
  %2707 = vmatpush1.msra.mxu0 0.0
  %2708 = vmatprep.subr.mxu0 0.0
  %2709 = vmatpush1.msra.mxu0 0.0
  %2710 = vmatprep.subr.mxu0 0.0
  %2711 = vmatpush1.msra.mxu0 0.0
  %2712 = vmatprep.mubr.f32.mxu0 0.0
  %2713 = vmatmul.mubr.f32.gmra.mrb[0].mxu0 %v2643
  %v2714 = vpop.f32.mrb[0].mxu0
  %v2715 = vadd.f32 0.0, %v2714
  %v2716 = vpop.f32.mrb[0].mxu0
  %2717 = vmatprep.mubr.f32.mxu0 0.0
  %2718 = vmatmul.mubr.f32.gmra.mrb[0].mxu0 %v2646
  %v2719 = vpop.f32.mrb[0].mxu0
  %v2720 = vadd.f32 0.0, %v2719
  %v2721 = vpop.f32.mrb[0].mxu0
  %2722 = vdwg.mxu0
  %2725 = vrot.lane.b32.xlu0 %v2259, 8
  %v2726 = vpop.permute.xlu0 %2725
  %2727 = vrot.lane.b32.xlu0 %v2264, 8
  %v2728 = vpop.permute.xlu0 %2727
  %2733 = vrot.lane.b32.xlu0 %v2495, 16
  %v2734 = vpop.permute.xlu0 %2733
  %2735 = vrot.lane.b32.xlu0 %v2500, 16
  %v2736 = vpop.permute.xlu0 %2735
  %2741 = vrot.lane.b32.xlu0 %v2715, 24
  %v2742 = vpop.permute.xlu0 %2741
  %2743 = vrot.lane.b32.xlu0 %v2720, 24
  %v2744 = vpop.permute.xlu0 %2743
  %v2747 = vsel %vm413, %v2039, %v2726
  %v2748 = vsel %vm413, %v2044, %v2728
  %v2749 = vsel %vm503, %v2747, %v2734
  %v2750 = vsel %vm503, %v2748, %v2736
  %v2751 = vsel %vm1335, %v2749, %v2742
  %v2752 = vsel %vm1335, %v2750, %v2744
  %v2753 = vld [vmem:[%s15] sm:$0xff]
  %v2754 = vld [vmem:[%s15 + $0x8] sm:$0xff]
  %v2755 = vld [vmem:[%s15 + $0x10] sm:$0xff]
  %v2756 = vld [vmem:[%s15 + $0x18] sm:$0xff]
  %v2758 = vsel %vm201, %v2751, 0
  %v2761 = vsel %vm201, %v2752, 0
  %2763 = vmatprep.subr.mxu0 0.0
  %2764 = vmatpush1.msra.mxu0 %v2753
  %2765 = vmatprep.subr.mxu0 0.0
  %2766 = vmatpush1.msra.mxu0 %v2754
  %2767 = vmatprep.subr.mxu0 0.0
  %2768 = vmatpush1.msra.mxu0 %v2755
  %2769 = vmatprep.subr.mxu0 0.0
  %2770 = vmatpush1.msra.mxu0 %v2756
  %2771 = vmatprep.subr.mxu0 0.0
  %2772 = vmatpush1.msra.mxu0 0.0
  %2773 = vmatprep.subr.mxu0 0.0
  %2774 = vmatpush1.msra.mxu0 0.0
  %2775 = vmatprep.subr.mxu0 0.0
  %2776 = vmatpush1.msra.mxu0 0.0
  %2777 = vmatprep.subr.mxu0 0.0
  %2778 = vmatpush1.msra.mxu0 0.0
  %2779 = vmatprep.subr.mxu0 0.0
  %2780 = vmatpush1.msra.mxu0 0.0
  %2781 = vmatprep.subr.mxu0 0.0
  %2782 = vmatpush1.msra.mxu0 0.0
  %2783 = vmatprep.subr.mxu0 0.0
  %2784 = vmatpush1.msra.mxu0 0.0
  %2785 = vmatprep.subr.mxu0 0.0
  %2786 = vmatpush1.msra.mxu0 0.0
  %2787 = vmatprep.subr.mxu0 0.0
  %2788 = vmatpush1.msra.mxu0 0.0
  %2789 = vmatprep.subr.mxu0 0.0
  %2790 = vmatpush1.msra.mxu0 0.0
  %2791 = vmatprep.subr.mxu0 0.0
  %2792 = vmatpush1.msra.mxu0 0.0
  %2793 = vmatprep.subr.mxu0 0.0
  %2794 = vmatpush1.msra.mxu0 0.0
  %2795 = vmatprep.subr.mxu0 0.0
  %2796 = vmatpush1.msra.mxu0 0.0
  %2797 = vmatprep.subr.mxu0 0.0
  %2798 = vmatpush1.msra.mxu0 0.0
  %2799 = vmatprep.subr.mxu0 0.0
  %2800 = vmatpush1.msra.mxu0 0.0
  %2801 = vmatprep.subr.mxu0 0.0
  %2802 = vmatpush1.msra.mxu0 0.0
  %2803 = vmatprep.subr.mxu0 0.0
  %2804 = vmatpush1.msra.mxu0 0.0
  %2805 = vmatprep.subr.mxu0 0.0
  %2806 = vmatpush1.msra.mxu0 0.0
  %2807 = vmatprep.subr.mxu0 0.0
  %2808 = vmatpush1.msra.mxu0 0.0
  %2809 = vmatprep.subr.mxu0 0.0
  %2810 = vmatpush1.msra.mxu0 0.0
  %2811 = vmatprep.subr.mxu0 0.0
  %2812 = vmatpush1.msra.mxu0 0.0
  %2813 = vmatprep.subr.mxu0 0.0
  %2814 = vmatpush1.msra.mxu0 0.0
  %2815 = vmatprep.subr.mxu0 0.0
  %2816 = vmatpush1.msra.mxu0 0.0
  %2817 = vmatprep.subr.mxu0 0.0
  %2818 = vmatpush1.msra.mxu0 0.0
  %2819 = vmatprep.subr.mxu0 0.0
  %2820 = vmatpush1.msra.mxu0 0.0
  %2821 = vmatprep.subr.mxu0 0.0
  %2822 = vmatpush1.msra.mxu0 0.0
  %2823 = vmatprep.subr.mxu0 0.0
  %2824 = vmatpush1.msra.mxu0 0.0
  %2825 = vmatprep.subr.mxu0 0.0
  %2826 = vmatpush1.msra.mxu0 0.0
  %2827 = vmatprep.mubr.f32.mxu0 0.0
  %2828 = vmatmul.mubr.f32.gmra.mrb[0].mxu0 %v2758
  %v2829 = vpop.f32.mrb[0].mxu0
  %v2830 = vadd.f32 0.0, %v2829
  %v2831 = vpop.f32.mrb[0].mxu0
  %2832 = vmatprep.mubr.f32.mxu0 0.0
  %2833 = vmatmul.mubr.f32.gmra.mrb[0].mxu0 %v2761
  %v2834 = vpop.f32.mrb[0].mxu0
  %v2835 = vadd.f32 0.0, %v2834
  %v2836 = vpop.f32.mrb[0].mxu0
  %2837 = vdwg.mxu0
  %v2838 = vadd.f32 %v1649, %v2830
  %v2839 = vadd.f32 %v1650, %v2835
  %v2840 = vld [vmem:[%s16] sm:$0x1]
  %v2841 = vmul.f32 %v2838, %v2838
  %v2842 = vmul.f32 %v2839, %v2839
  %v2843 = vsel %vm201, %v2841, 0.0
  %2844 = vadd.xlane.f32.xlu0 %v2843
  %v2845 = vpop.xlane.xlu0 %2844
  %v2846 = vsel %vm201, %v2842, 0.0
  %2847 = vadd.xlane.f32.xlu0 %v2846
  %v2848 = vpop.xlane.xlu0 %2847
  %v2849 = vmul.f32 %v2845, %v208
  %v2850 = vmul.f32 %v2848, %v208
  %v2851 = vadd.f32 %v2849, 1e-06
  %v2852 = vadd.f32 %v2850, 1e-06
  %v2853 = vrsqrt.pop %v2851
  %v2854 = vrsqrt.pop %v2852
  %v2855 = vmul.f32 %v2838, %v2853
  %v2856 = vmul.f32 %v2839, %v2854
  %v2858 = vlaneseq
  %v2859 = vshrl.u32 %v2858, 7
  %v2860 = vsub.s32 0, %v2859
  %v2861 = vrot.slane %v2840, %v2860
  %v2863 = vmul.f32 %v2855, %v2861
  %v2864 = vmul.f32 %v2856, %v2861
  %v2865 = vld [vmem:[%s17] sm:$0xff]
  %v2866 = vld [vmem:[%s17 + $0x8] sm:$0xff]
  %v2867 = vld [vmem:[%s17 + $0x10] sm:$0xff]
  %v2868 = vld [vmem:[%s17 + $0x18] sm:$0xff]
  %v2870 = vsel %vm201, %v2863, 0
  %v2873 = vsel %vm201, %v2864, 0
  %2875 = vmatprep.subr.mxu0 0.0
  %2876 = vmatpush1.msra.mxu0 %v2865
  %2877 = vmatprep.subr.mxu0 0.0
  %2878 = vmatpush1.msra.mxu0 %v2866
  %2879 = vmatprep.subr.mxu0 0.0
  %2880 = vmatpush1.msra.mxu0 %v2867
  %2881 = vmatprep.subr.mxu0 0.0
  %2882 = vmatpush1.msra.mxu0 %v2868
  %2883 = vmatprep.subr.mxu0 0.0
  %2884 = vmatpush1.msra.mxu0 0.0
  %2885 = vmatprep.subr.mxu0 0.0
  %2886 = vmatpush1.msra.mxu0 0.0
  %2887 = vmatprep.subr.mxu0 0.0
  %2888 = vmatpush1.msra.mxu0 0.0
  %2889 = vmatprep.subr.mxu0 0.0
  %2890 = vmatpush1.msra.mxu0 0.0
  %2891 = vmatprep.subr.mxu0 0.0
  %2892 = vmatpush1.msra.mxu0 0.0
  %2893 = vmatprep.subr.mxu0 0.0
  %2894 = vmatpush1.msra.mxu0 0.0
  %2895 = vmatprep.subr.mxu0 0.0
  %2896 = vmatpush1.msra.mxu0 0.0
  %2897 = vmatprep.subr.mxu0 0.0
  %2898 = vmatpush1.msra.mxu0 0.0
  %2899 = vmatprep.subr.mxu0 0.0
  %2900 = vmatpush1.msra.mxu0 0.0
  %2901 = vmatprep.subr.mxu0 0.0
  %2902 = vmatpush1.msra.mxu0 0.0
  %2903 = vmatprep.subr.mxu0 0.0
  %2904 = vmatpush1.msra.mxu0 0.0
  %2905 = vmatprep.subr.mxu0 0.0
  %2906 = vmatpush1.msra.mxu0 0.0
  %2907 = vmatprep.subr.mxu0 0.0
  %2908 = vmatpush1.msra.mxu0 0.0
  %2909 = vmatprep.subr.mxu0 0.0
  %2910 = vmatpush1.msra.mxu0 0.0
  %2911 = vmatprep.subr.mxu0 0.0
  %2912 = vmatpush1.msra.mxu0 0.0
  %2913 = vmatprep.subr.mxu0 0.0
  %2914 = vmatpush1.msra.mxu0 0.0
  %2915 = vmatprep.subr.mxu0 0.0
  %2916 = vmatpush1.msra.mxu0 0.0
  %2917 = vmatprep.subr.mxu0 0.0
  %2918 = vmatpush1.msra.mxu0 0.0
  %2919 = vmatprep.subr.mxu0 0.0
  %2920 = vmatpush1.msra.mxu0 0.0
  %2921 = vmatprep.subr.mxu0 0.0
  %2922 = vmatpush1.msra.mxu0 0.0
  %2923 = vmatprep.subr.mxu0 0.0
  %2924 = vmatpush1.msra.mxu0 0.0
  %2925 = vmatprep.subr.mxu0 0.0
  %2926 = vmatpush1.msra.mxu0 0.0
  %2927 = vmatprep.subr.mxu0 0.0
  %2928 = vmatpush1.msra.mxu0 0.0
  %2929 = vmatprep.subr.mxu0 0.0
  %2930 = vmatpush1.msra.mxu0 0.0
  %2931 = vmatprep.subr.mxu0 0.0
  %2932 = vmatpush1.msra.mxu0 0.0
  %2933 = vmatprep.subr.mxu0 0.0
  %2934 = vmatpush1.msra.mxu0 0.0
  %2935 = vmatprep.subr.mxu0 0.0
  %2936 = vmatpush1.msra.mxu0 0.0
  %2937 = vmatprep.subr.mxu0 0.0
  %2938 = vmatpush1.msra.mxu0 0.0
  %2939 = vmatprep.mubr.f32.mxu0 0.0
  %2940 = vmatmul.mubr.f32.gmra.mrb[0].mxu0 %v2870
  %v2941 = vpop.f32.mrb[0].mxu0
  %v2942 = vadd.f32 0.0, %v2941
  %v2943 = vpop.f32.mrb[0].mxu0
  %2944 = vmatprep.mubr.f32.mxu0 0.0
  %2945 = vmatmul.mubr.f32.gmra.mrb[0].mxu0 %v2873
  %v2946 = vpop.f32.mrb[0].mxu0
  %v2947 = vadd.f32 0.0, %v2946
  %v2948 = vpop.f32.mrb[0].mxu0
  %2949 = vdwg.mxu0
  %v2950 = vxor.u32 %v2942, 2147483648
  %v2951 = vxor.u32 %v2947, 2147483648
  %v2952 = vmul.f32 %v2950, 1.442695
  %v2953 = vpow.pop %v2952
  %v2954 = vmul.f32 %v2951, 1.442695
  %v2955 = vpow.pop %v2954
  %v2956 = vadd.f32 %v2953, 1.0
  %v2957 = vadd.f32 %v2955, 1.0
  %v2958 = vrcp.pop %v2956
  %v2959 = vmul.f32 1.0, %v2958
  %v2960 = vrcp.pop %v2957
  %v2961 = vmul.f32 1.0, %v2960
  %v2962 = vmul.f32 %v2942, %v2959
  %v2963 = vmul.f32 %v2947, %v2961
  %2966 = vrot.lane.b32.xlu0 %v2942, 64
  %v2967 = vpop.permute.xlu0 %2966
  %2968 = vrot.lane.b32.xlu0 %v2947, 64
  %v2969 = vpop.permute.xlu0 %2968
  %v2972 = vmul.f32 %v2962, %v2967
  %v2973 = vmul.f32 %v2963, %v2969
  %v2974 = vld [vmem:[%s18] sm:$0xff]
  %v2975 = vld [vmem:[%s18 + $0x8] sm:$0xff]
  %v2976 = vld [vmem:[%s18 + $0x10] sm:$0xff]
  %v2977 = vld [vmem:[%s18 + $0x18] sm:$0xff]
  %v2978 = vld [vmem:[%s18 + $0x20] sm:$0xff]
  %v2979 = vld [vmem:[%s18 + $0x28] sm:$0xff]
  %v2980 = vld [vmem:[%s18 + $0x30] sm:$0xff]
  %v2981 = vld [vmem:[%s18 + $0x38] sm:$0xff]
  %v2983 = vsel %vm1567, %v2972, 0
  %v2986 = vsel %vm1567, %v2973, 0
  %2988 = vmatprep.subr.mxu0 0.0
  %2989 = vmatpush1.msra.mxu0 %v2974
  %2990 = vmatprep.subr.mxu0 0.0
  %2991 = vmatpush1.msra.mxu0 %v2975
  %2992 = vmatprep.subr.mxu0 0.0
  %2993 = vmatpush1.msra.mxu0 %v2976
  %2994 = vmatprep.subr.mxu0 0.0
  %2995 = vmatpush1.msra.mxu0 %v2977
  %2996 = vmatprep.subr.mxu0 0.0
  %2997 = vmatpush1.msra.mxu0 %v2978
  %2998 = vmatprep.subr.mxu0 0.0
  %2999 = vmatpush1.msra.mxu0 %v2979
  %3000 = vmatprep.subr.mxu0 0.0
  %3001 = vmatpush1.msra.mxu0 %v2980
  %3002 = vmatprep.subr.mxu0 0.0
  %3003 = vmatpush1.msra.mxu0 %v2981
  %3004 = vmatprep.subr.mxu0 0.0
  %3005 = vmatpush1.msra.mxu0 0.0
  %3006 = vmatprep.subr.mxu0 0.0
  %3007 = vmatpush1.msra.mxu0 0.0
  %3008 = vmatprep.subr.mxu0 0.0
  %3009 = vmatpush1.msra.mxu0 0.0
  %3010 = vmatprep.subr.mxu0 0.0
  %3011 = vmatpush1.msra.mxu0 0.0
  %3012 = vmatprep.subr.mxu0 0.0
  %3013 = vmatpush1.msra.mxu0 0.0
  %3014 = vmatprep.subr.mxu0 0.0
  %3015 = vmatpush1.msra.mxu0 0.0
  %3016 = vmatprep.subr.mxu0 0.0
  %3017 = vmatpush1.msra.mxu0 0.0
  %3018 = vmatprep.subr.mxu0 0.0
  %3019 = vmatpush1.msra.mxu0 0.0
  %3020 = vmatprep.subr.mxu0 0.0
  %3021 = vmatpush1.msra.mxu0 0.0
  %3022 = vmatprep.subr.mxu0 0.0
  %3023 = vmatpush1.msra.mxu0 0.0
  %3024 = vmatprep.subr.mxu0 0.0
  %3025 = vmatpush1.msra.mxu0 0.0
  %3026 = vmatprep.subr.mxu0 0.0
  %3027 = vmatpush1.msra.mxu0 0.0
  %3028 = vmatprep.subr.mxu0 0.0
  %3029 = vmatpush1.msra.mxu0 0.0
  %3030 = vmatprep.subr.mxu0 0.0
  %3031 = vmatpush1.msra.mxu0 0.0
  %3032 = vmatprep.subr.mxu0 0.0
  %3033 = vmatpush1.msra.mxu0 0.0
  %3034 = vmatprep.subr.mxu0 0.0
  %3035 = vmatpush1.msra.mxu0 0.0
  %3036 = vmatprep.subr.mxu0 0.0
  %3037 = vmatpush1.msra.mxu0 0.0
  %3038 = vmatprep.subr.mxu0 0.0
  %3039 = vmatpush1.msra.mxu0 0.0
  %3040 = vmatprep.subr.mxu0 0.0
  %3041 = vmatpush1.msra.mxu0 0.0
  %3042 = vmatprep.subr.mxu0 0.0
  %3043 = vmatpush1.msra.mxu0 0.0
  %3044 = vmatprep.subr.mxu0 0.0
  %3045 = vmatpush1.msra.mxu0 0.0
  %3046 = vmatprep.subr.mxu0 0.0
  %3047 = vmatpush1.msra.mxu0 0.0
  %3048 = vmatprep.subr.mxu0 0.0
  %3049 = vmatpush1.msra.mxu0 0.0
  %3050 = vmatprep.subr.mxu0 0.0
  %3051 = vmatpush1.msra.mxu0 0.0
  %3052 = vmatprep.mubr.f32.mxu0 0.0
  %3053 = vmatmul.mubr.f32.gmra.mrb[0].mxu0 %v2983
  %v3054 = vpop.f32.mrb[0].mxu0
  %v3055 = vadd.f32 0.0, %v3054
  %v3056 = vpop.f32.mrb[0].mxu0
  %3057 = vmatprep.mubr.f32.mxu0 0.0
  %3058 = vmatmul.mubr.f32.gmra.mrb[0].mxu0 %v2986
  %v3059 = vpop.f32.mrb[0].mxu0
  %v3060 = vadd.f32 0.0, %v3059
  %v3061 = vpop.f32.mrb[0].mxu0
  %3062 = vdwg.mxu0
  %v3063 = vadd.f32 %v2838, %v3055
  %v3064 = vadd.f32 %v2839, %v3060
  %v3065 = vld [vmem:[%s5] sm:$0x1]
  %v3066 = vmul.f32 %v3063, %v3063
  %v3067 = vmul.f32 %v3064, %v3064
  %v3068 = vsel %vm201, %v3066, 0.0
  %3069 = vadd.xlane.f32.xlu0 %v3068
  %v3070 = vpop.xlane.xlu0 %3069
  %v3071 = vsel %vm201, %v3067, 0.0
  %3072 = vadd.xlane.f32.xlu0 %v3071
  %v3073 = vpop.xlane.xlu0 %3072
  %v3074 = vmul.f32 %v3070, %v208
  %v3075 = vmul.f32 %v3073, %v208
  %v3076 = vadd.f32 %v3074, 1e-06
  %v3077 = vadd.f32 %v3075, 1e-06
  %v3078 = vrsqrt.pop %v3076
  %v3079 = vrsqrt.pop %v3077
  %v3080 = vmul.f32 %v3063, %v3078
  %v3081 = vmul.f32 %v3064, %v3079
  %v3083 = vlaneseq
  %v3084 = vshrl.u32 %v3083, 7
  %v3085 = vsub.s32 0, %v3084
  %v3086 = vrot.slane %v3065, %v3085
  %v3088 = vmul.f32 %v3080, %v3086
  %v3089 = vmul.f32 %v3081, %v3086
  %v3090 = vld [vmem:[%s6] sm:$0xff]
  %v3091 = vld [vmem:[%s6 + $0x8] sm:$0xff]
  %v3092 = vld [vmem:[%s6 + $0x10] sm:$0xff]
  %v3093 = vld [vmem:[%s6 + $0x18] sm:$0xff]
  %v3094 = vld [vmem:[%s6 + $0x20] sm:$0xff]
  %v3095 = vld [vmem:[%s6 + $0x28] sm:$0xff]
  %v3096 = vld [vmem:[%s6 + $0x30] sm:$0xff]
  %v3097 = vld [vmem:[%s6 + $0x38] sm:$0xff]
  %v3099 = vsel %vm201, %v3088, 0
  %v3102 = vsel %vm201, %v3089, 0
  %3104 = vmatprep.subr.mxu0 %v3091
  %3105 = vmatpush1.msra.mxu0 %v3090
  %3106 = vmatprep.subr.mxu0 %v3093
  %3107 = vmatpush1.msra.mxu0 %v3092
  %3108 = vmatprep.subr.mxu0 %v3095
  %3109 = vmatpush1.msra.mxu0 %v3094
  %3110 = vmatprep.subr.mxu0 %v3097
  %3111 = vmatpush1.msra.mxu0 %v3096
  %3112 = vmatprep.subr.mxu0 0.0
  %3113 = vmatpush1.msra.mxu0 0.0
  %3114 = vmatprep.subr.mxu0 0.0
  %3115 = vmatpush1.msra.mxu0 0.0
  %3116 = vmatprep.subr.mxu0 0.0
  %3117 = vmatpush1.msra.mxu0 0.0
  %3118 = vmatprep.subr.mxu0 0.0
  %3119 = vmatpush1.msra.mxu0 0.0
  %3120 = vmatprep.subr.mxu0 0.0
  %3121 = vmatpush1.msra.mxu0 0.0
  %3122 = vmatprep.subr.mxu0 0.0
  %3123 = vmatpush1.msra.mxu0 0.0
  %3124 = vmatprep.subr.mxu0 0.0
  %3125 = vmatpush1.msra.mxu0 0.0
  %3126 = vmatprep.subr.mxu0 0.0
  %3127 = vmatpush1.msra.mxu0 0.0
  %3128 = vmatprep.subr.mxu0 0.0
  %3129 = vmatpush1.msra.mxu0 0.0
  %3130 = vmatprep.subr.mxu0 0.0
  %3131 = vmatpush1.msra.mxu0 0.0
  %3132 = vmatprep.subr.mxu0 0.0
  %3133 = vmatpush1.msra.mxu0 0.0
  %3134 = vmatprep.subr.mxu0 0.0
  %3135 = vmatpush1.msra.mxu0 0.0
  %3136 = vmatprep.subr.mxu0 0.0
  %3137 = vmatpush1.msra.mxu0 0.0
  %3138 = vmatprep.subr.mxu0 0.0
  %3139 = vmatpush1.msra.mxu0 0.0
  %3140 = vmatprep.subr.mxu0 0.0
  %3141 = vmatpush1.msra.mxu0 0.0
  %3142 = vmatprep.subr.mxu0 0.0
  %3143 = vmatpush1.msra.mxu0 0.0
  %3144 = vmatprep.subr.mxu0 0.0
  %3145 = vmatpush1.msra.mxu0 0.0
  %3146 = vmatprep.subr.mxu0 0.0
  %3147 = vmatpush1.msra.mxu0 0.0
  %3148 = vmatprep.subr.mxu0 0.0
  %3149 = vmatpush1.msra.mxu0 0.0
  %3150 = vmatprep.subr.mxu0 0.0
  %3151 = vmatpush1.msra.mxu0 0.0
  %3152 = vmatprep.subr.mxu0 0.0
  %3153 = vmatpush1.msra.mxu0 0.0
  %3154 = vmatprep.subr.mxu0 0.0
  %3155 = vmatpush1.msra.mxu0 0.0
  %3156 = vmatprep.subr.mxu0 0.0
  %3157 = vmatpush1.msra.mxu0 0.0
  %3158 = vmatprep.subr.mxu0 0.0
  %3159 = vmatpush1.msra.mxu0 0.0
  %3160 = vmatprep.subr.mxu0 0.0
  %3161 = vmatpush1.msra.mxu0 0.0
  %3162 = vmatprep.subr.mxu0 0.0
  %3163 = vmatpush1.msra.mxu0 0.0
  %3164 = vmatprep.subr.mxu0 0.0
  %3165 = vmatpush1.msra.mxu0 0.0
  %3166 = vmatprep.subr.mxu0 0.0
  %3167 = vmatpush1.msra.mxu0 0.0
  %3168 = vmatprep.mubr.f32.mxu0 0.0
  %3169 = vmatmul.mubr.f32.gmra.mrb[0].mxu0 %v3099
  %v3170 = vpop.f32.mrb[0].mxu0
  %v3171 = vadd.f32 0.0, %v3170
  %v3172 = vpop.f32.mrb[0].mxu0
  %v3173 = vadd.f32 0.0, %v3172
  %3174 = vmatprep.mubr.f32.mxu0 0.0
  %3175 = vmatmul.mubr.f32.gmra.mrb[0].mxu0 %v3102
  %v3176 = vpop.f32.mrb[0].mxu0
  %v3177 = vadd.f32 0.0, %v3176
  %v3178 = vpop.f32.mrb[0].mxu0
  %v3179 = vadd.f32 0.0, %v3178
  %3180 = vdwg.mxu0
  %3181 = vst [vmem:[%s19] sm:$0xff] %v3171
  %3182 = vst [vmem:[%s19 + $0x8] sm:$0xff] %v3173
  %3183 = vst [vmem:[%s19 + $0x10] sm:$0xff] %v3177
  %3184 = vst [vmem:[%s19 + $0x18] sm:$0xff] %v3179
  // Predicated region
  $region78: #{decoder_forward.1} parent=0 // pred_check
    _
  $region79: #{decoder_forward.1} parent=0 // pred_check_branch
    %3186 = sbr.rel (0) target = $region81
  $region80: #{decoder_forward.1} parent=0 // pred_region
    _
  $region81: #{decoder_forward.1} parent=0 // pred_fallthru
    _
  // Predicated region
  $region82: #{decoder_forward.1} parent=0 // pred_check
    _
  $region83: #{decoder_forward.1} parent=0 // pred_check_branch
    %3188 = sbr.rel (0) target = $region85
  $region84: #{decoder_forward.1} parent=0 // pred_region
    _
  $region85: #{decoder_forward.1} parent=0 // pred_fallthru
    _

</llo_original>
